<compile_context>
chip_gen: v7x
topology: tpu7x:2x2x1
jax: 0.10.0
libtpu: 0.0.40
codegen_flags: <defaults>
</compile_context>

<pallas_src>
import math

import jax
import jax.numpy as jnp
from jax.experimental import pallas as pl
from jax.experimental.pallas import tpu as pltpu

PAD = 0  # Constants.PAD


# ----------------------------------------------------------------------------
# Pallas kernel (runs once; in-kernel fori_loop over time)
# ----------------------------------------------------------------------------
def make_decoder_kernel(num_layers, hidden_size, input_feed, seq_len, src_len,
                        n_weights):
    L, D = num_layers, hidden_size

    def kernel(embp_ref, ctx_ref, h0_ref, c0_ref, init_ref, *rest):
        w_refs = rest[:n_weights]
        out_ref, hN_ref, cN_ref, attn_ref = rest[n_weights:]

        # ---- parse the flat weight-ref list (trace-time only) ---------------
        idx = 0
        if input_feed:
            w_feed0_ref = w_refs[idx]; idx += 1
        else:
            w_feed0_ref = None
        w_ih_refs = [None]                      # layer-0 ih half is pre-applied
        w_hh_refs = [w_refs[idx]]; idx += 1
        b_refs = [None]                         # layer-0 bias folded into embp
        for _ in range(1, L):
            w_ih_refs.append(w_refs[idx]); idx += 1
            w_hh_refs.append(w_refs[idx]); idx += 1
            b_refs.append(w_refs[idx]); idx += 1
        w_in_ref = w_refs[idx]
        w_out_ctx_ref = w_refs[idx + 1]
        w_out_x_ref = w_refs[idx + 2]

        Bp = init_ref.shape[0]
        Sp = ctx_ref.shape[1]
        # mask for padded source positions (S padded up to a lane multiple)
        key_mask = jax.lax.broadcasted_iota(jnp.int32, (Bp, Sp), 1) < src_len

        def bdot(a, w_ref):
            w = w_ref[...]                       # bf16 weight (MXU operand)
            return jnp.dot(a.astype(w.dtype), w,
                           preferred_element_type=jnp.float32)

        def lstm_cell(pre, c_prev):
            # fused gate pre-activations (B, 4D); gate order i, f, g, o
            i_g = jax.nn.sigmoid(pre[:, 0 * D:1 * D])
            f_g = jax.nn.sigmoid(pre[:, 1 * D:2 * D])
            g_g = jnp.tanh(pre[:, 2 * D:3 * D])
            o_g = jax.nn.sigmoid(pre[:, 3 * D:4 * D])
            c_new = f_g * c_prev + i_g * g_g
            h_new = o_g * jnp.tanh(c_new)
            return h_new, c_new

        def step(t, carry):
            hs, cs, feed = carry                 # tuples of (Bp, D) f32

            # ---- StackedLSTM (inter-layer dropout == identity, eval mode) ---
            # Layer 0: emb projection + bias was hoisted out of the recurrence.
            pre = embp_ref[t]                    # (Bp, 4D) f32
            if input_feed:
                pre = pre + bdot(feed, w_feed0_ref)
            pre = pre + bdot(hs[0], w_hh_refs[0])
            h_new, c_new = lstm_cell(pre, cs[0])
            new_h, new_c = [h_new], [c_new]
            x = h_new
            for i in range(1, L):
                pre = (bdot(x, w_ih_refs[i]) + bdot(hs[i], w_hh_refs[i])
                       + b_refs[i][...])
                h_new, c_new = lstm_cell(pre, cs[i])
                new_h.append(h_new)
                new_c.append(c_new)
                x = h_new

            # ---- GlobalAttention (VPU/XLU path; elementwise kept in f32) ----
            # TODO(synk): tile over S (online softmax + chunked weighted sum)
            # for production S*D so the f32 upcast never materializes fully.
            target = bdot(x, w_in_ref)                            # (Bp, D)
            ctx = ctx_ref[...].astype(jnp.float32)                # (Bp, Sp, D)
            scores = jnp.sum(ctx * target[:, None, :], axis=-1)   # (Bp, Sp)
            scores = jnp.where(key_mask, scores, -jnp.inf)
            m = jnp.max(scores, axis=-1, keepdims=True)
            e = jnp.exp(scores - m)              # padded keys -> exp(-inf) = 0
            attn = e * pl.reciprocal(jnp.sum(e, axis=-1, keepdims=True),
                                     approx=True)
            weighted = jnp.sum(attn[:, :, None] * ctx, axis=1)    # (Bp, D)
            out = jnp.tanh(bdot(weighted, w_out_ctx_ref)
                           + bdot(x, w_out_x_ref))                # (Bp, D)

            out_ref[t] = out
            attn_ref[...] = attn       # overwritten each step; final = last t
            return (tuple(new_h), tuple(new_c), out)

        h_init = tuple(h0_ref[i] for i in range(L))
        c_init = tuple(c0_ref[i] for i in range(L))
        hs, cs, _ = jax.lax.fori_loop(0, seq_len, step,
                                      (h_init, c_init, init_ref[...]))
        for i in range(L):
            hN_ref[i] = hs[i]
            cN_ref[i] = cs[i]

    return kernel


# ----------------------------------------------------------------------------
# Wrapper (glue: gather, padding, bf16 weight prep, hoisted emb projection)
# ----------------------------------------------------------------------------
def attn_decoder_forward(params, dec_input, hidden, context, init_output,
                         *, input_feed=True):
    h0, c0 = hidden
    L, B, D = h0.shape
    T = int(dec_input.shape[0])
    E = int(params['embedding'].shape[1])
    S = int(context.shape[0])
    bf = jnp.bfloat16

    # glue: embedding lookup + layout transpose (== context.t())
    emb = params['embedding'][dec_input]              # (T, B, E)
    ctx = jnp.transpose(context, (1, 0, 2))           # (B, S, D)

    # pad batch to a sublane tile and source length to a full lane tile
    Bp = max(8, -(-B // 8) * 8)
    Sp = max(128, -(-S // 128) * 128)
    if Bp != B:
        emb = jnp.pad(emb, ((0, 0), (0, Bp - B), (0, 0)))
        ctx = jnp.pad(ctx, ((0, Bp - B), (0, 0), (0, 0)))
        h0 = jnp.pad(h0, ((0, 0), (0, Bp - B), (0, 0)))
        c0 = jnp.pad(c0, ((0, 0), (0, Bp - B), (0, 0)))
        init_output = jnp.pad(init_output, ((0, Bp - B), (0, 0)))
    if Sp != S:
        ctx = jnp.pad(ctx, ((0, 0), (0, Sp - S), (0, 0)))

    # ---- hoist the layer-0 embedding projection out of the recurrence ------
    w_ih0 = params['w_ih_0']
    if input_feed:
        w_emb, w_feed0 = w_ih0[:E], w_ih0[E:]
    else:
        w_emb, w_feed0 = w_ih0, None
    emb_proj = jnp.dot(emb.reshape(T * Bp, E).astype(bf), w_emb.astype(bf),
                       preferred_element_type=jnp.float32)
    emb_proj = emb_proj.reshape(T, Bp, 4 * D) + params['b_0']   # bias folded in

    # ---- weights: fused (in, 4D) layout, bf16 MXU operands ------------------
    weight_arrays = []
    if input_feed:
        weight_arrays.append(w_feed0.astype(bf))                 # (D, 4D)
    weight_arrays.append(params['w_hh_0'].astype(bf))            # (D, 4D)
    for i in range(1, L):
        weight_arrays.append(params[f'w_ih_{i}'].astype(bf))     # (D, 4D)
        weight_arrays.append(params[f'w_hh_{i}'].astype(bf))     # (D, 4D)
        weight_arrays.append(params[f'b_{i}'])                   # (1, 4D) f32
    weight_arrays.append(params['w_in'].astype(bf))              # (D, D)
    weight_arrays.append(params['w_out'][:D].astype(bf))         # context half
    weight_arrays.append(params['w_out'][D:].astype(bf))         # x half
    n_weights = len(weight_arrays)

    flat_inputs = [emb_proj, ctx.astype(bf), h0, c0, init_output] + weight_arrays
    out_shapes = (
        jax.ShapeDtypeStruct((T, Bp, D), jnp.float32),           # outputs
        jax.ShapeDtypeStruct((L, Bp, D), jnp.float32),           # h_n
        jax.ShapeDtypeStruct((L, Bp, D), jnp.float32),           # c_n
        jax.ShapeDtypeStruct((Bp, Sp), jnp.float32),             # last attn
    )

    # VMEM limit sized to the actual resident footprint, with headroom.
    resident = sum(int(a.size) * a.dtype.itemsize for a in flat_inputs)
    resident += sum(math.prod(s.shape) * jnp.dtype(s.dtype).itemsize
                    for s in out_shapes)
    vmem_limit = int(min(64 << 20, max(32 << 20, 2 * resident + (4 << 20))))

    kernel = make_decoder_kernel(L, D, input_feed, T, S, n_weights)
    vmem = pltpu.MemorySpace.VMEM
    outputs, h_n, c_n, attn = pl.pallas_call(
        kernel,
        out_shape=out_shapes,
        in_specs=[pl.BlockSpec(memory_space=vmem) for _ in flat_inputs],
        out_specs=tuple(pl.BlockSpec(memory_space=vmem) for _ in out_shapes),
        compiler_params=pltpu.CompilerParams(vmem_limit_bytes=vmem_limit),
    )(*flat_inputs)

    # drop batch / source-length padding
    return outputs[:, :B], (h_n[:, :B], c_n[:, :B]), attn[:B, :S]


# ----------------------------------------------------------------------------
# Deterministic parameter init (shapes from the module __init__)
# ----------------------------------------------------------------------------
def init_params(key, *, vocab, emb_size, hidden, num_layers, input_feed):
    D = hidden
    keys = iter(jax.random.split(key, 4 * num_layers + 3))
    params = {}
    emb = jax.random.normal(next(keys), (vocab, emb_size), jnp.float32) * 0.08
    params['embedding'] = emb.at[PAD].set(0.0)               # padding_idx = PAD
    in_size = emb_size + (D if input_feed else 0)
    for i in range(num_layers):
        params[f'w_ih_{i}'] = jax.random.normal(next(keys), (in_size, 4 * D),
                                                jnp.float32) * 0.08  # W_ih^T
        params[f'w_hh_{i}'] = jax.random.normal(next(keys), (D, 4 * D),
                                                jnp.float32) * 0.08  # W_hh^T
        b_ih = jax.random.normal(next(keys), (4 * D,), jnp.float32) * 0.08
        b_hh = jax.random.normal(next(keys), (4 * D,), jnp.float32) * 0.08
        params[f'b_{i}'] = (b_ih + b_hh)[None, :]
        in_size = D
    params['w_in'] = jax.random.normal(next(keys), (D, D), jnp.float32) * 0.08
    params['w_out'] = jax.random.normal(next(keys), (2 * D, D),
                                        jnp.float32) * 0.08
    return params


# ----------------------------------------------------------------------------
# Pure-JAX reference (same math as the PyTorch forward, eval-mode dropout)
# ----------------------------------------------------------------------------
def reference_forward(params, dec_input, hidden, context, init_output,
                      *, input_feed=True):
    h, c = hidden
    L, B, D = h.shape
    emb = params['embedding'][dec_input]
    ctx = jnp.transpose(context, (1, 0, 2))
    out = init_output
    outs, attn = [], None
    hp = jax.lax.Precision.HIGHEST
    for t in range(emb.shape[0]):
        x = jnp.concatenate([emb[t], out], axis=1) if input_feed else emb[t]
        new_h, new_c = [], []
        for i in range(L):
            gates = (jnp.dot(x, params[f'w_ih_{i}'], precision=hp)
                     + jnp.dot(h[i], params[f'w_hh_{i}'], precision=hp)
                     + params[f'b_{i}'])
            i_g = jax.nn.sigmoid(gates[:, :D])
            f_g = jax.nn.sigmoid(gates[:, D:2 * D])
            g_g = jnp.tanh(gates[:, 2 * D:3 * D])
            o_g = jax.nn.sigmoid(gates[:, 3 * D:])
            c_i = f_g * c[i] + i_g * g_g
            h_i = o_g * jnp.tanh(c_i)
            new_h.append(h_i)
            new_c.append(c_i)
            x = h_i
        h, c = jnp.stack(new_h), jnp.stack(new_c)
        target = jnp.dot(x, params['w_in'], precision=hp)
        scores = jnp.einsum('bsd,bd->bs', ctx, target, precision=hp)
        attn = jax.nn.softmax(scores, axis=-1)
        weighted = jnp.einsum('bs,bsd->bd', attn, ctx, precision=hp)
        cat = jnp.concatenate([weighted, x], axis=1)
        out = jnp.tanh(jnp.dot(cat, params['w_out'], precision=hp))
        outs.append(out)
    return jnp.stack(outs), (h, c), attn


# ----------------------------------------------------------------------------
if __name__ == "__main__":
    # config: num_layers=2, input_feed=True, word_emb_size=16,
    #         rnn_hidden_size=32, trg_vocab_size=50, dropout=0 (eval)
    T, B, S = 5, 2, 6
    E, D, L, V = 16, 32, 2, 50

    key = jax.random.PRNGKey(0)
    k_par, k_tok, k_ctx, k_h, k_c, k_o = jax.random.split(key, 6)

    params = init_params(k_par, vocab=V, emb_size=E, hidden=D,
                         num_layers=L, input_feed=True)
    dec_input = jax.random.randint(k_tok, (T, B), 1, V)                 # (T, B)
    context = jax.random.normal(k_ctx, (S, B, D), jnp.float32)          # (S, B, D)
    h0 = jax.random.normal(k_h, (L, B, D), jnp.float32) * 0.1
    c0 = jax.random.normal(k_c, (L, B, D), jnp.float32) * 0.1
    init_out = jax.random.normal(k_o, (B, D), jnp.float32) * 0.1

    outputs, (h_n, c_n), attn = attn_decoder_forward(
        params, dec_input, (h0, c0), context, init_out, input_feed=True)
    jax.block_until_ready((outputs, h_n, c_n, attn))

    ref_out, (ref_h, ref_c), ref_attn = reference_forward(
        params, dec_input, (h0, c0), context, init_out, input_feed=True)

    # Tolerance reflects bf16 MXU operands in the kernel vs. the f32
    # Precision.HIGHEST reference (per perf review: bf16 is a deliberate
    # throughput/VMEM trade on v5e/v6e/v7x).
    assert jnp.allclose(outputs, ref_out, atol=2e-2, rtol=2e-2)
    assert jnp.allclose(h_n, ref_h, atol=2e-2, rtol=2e-2)
    assert jnp.allclose(c_n, ref_c, atol=2e-2, rtol=2e-2)
    assert jnp.allclose(attn, ref_attn, atol=2e-2, rtol=2e-2)

    print("KERNEL_OK")
</pallas_src>

<mosaic_0001>
module attributes {stable_mosaic.version = 11 : i64} {
  func.func @kernel(%arg0: memref<5x8x128xf32, #tpu.memory_space<vmem>>, %arg1: memref<8x128x32xbf16, #tpu.memory_space<vmem>>, %arg2: memref<2x8x32xf32, #tpu.memory_space<vmem>>, %arg3: memref<2x8x32xf32, #tpu.memory_space<vmem>>, %arg4: memref<8x32xf32, #tpu.memory_space<vmem>>, %arg5: memref<32x128xbf16, #tpu.memory_space<vmem>>, %arg6: memref<32x128xbf16, #tpu.memory_space<vmem>>, %arg7: memref<32x128xbf16, #tpu.memory_space<vmem>>, %arg8: memref<32x128xbf16, #tpu.memory_space<vmem>>, %arg9: memref<1x128xf32, #tpu.memory_space<vmem>>, %arg10: memref<32x32xbf16, #tpu.memory_space<vmem>>, %arg11: memref<32x32xbf16, #tpu.memory_space<vmem>>, %arg12: memref<32x32xbf16, #tpu.memory_space<vmem>>, %arg13: memref<5x8x32xf32, #tpu.memory_space<vmem>>, %arg14: memref<2x8x32xf32, #tpu.memory_space<vmem>>, %arg15: memref<2x8x32xf32, #tpu.memory_space<vmem>>, %arg16: memref<8x128xf32, #tpu.memory_space<vmem>>) attributes {dimension_semantics = [], scalar_prefetch = 0 : i64, scratch_operands = 0 : i64, tpu.core_type = #tpu.core_type<tc>} {
    %0 = tpu.iota {dimensions = array<i32: 1>} : vector<8x128xi32>
    %c6_i32 = arith.constant 6 : i32
    %1 = vector.broadcast %c6_i32 : i32 to vector<8x128xi32>
    %2 = arith.cmpi slt, %0, %1 : vector<8x128xi32>
    %c0 = arith.constant 0 : index
    %c0_0 = arith.constant 0 : index
    %c0_1 = arith.constant 0 : index
    %3 = vector.load %arg2[%c0, %c0_0, %c0_1] : memref<2x8x32xf32, #tpu.memory_space<vmem>>, vector<1x8x32xf32>
    %4 = vector.shape_cast %3 : vector<1x8x32xf32> to vector<8x32xf32>
    %c1 = arith.constant 1 : index
    %c0_2 = arith.constant 0 : index
    %c0_3 = arith.constant 0 : index
    %5 = vector.load %arg2[%c1, %c0_2, %c0_3] : memref<2x8x32xf32, #tpu.memory_space<vmem>>, vector<1x8x32xf32>
    %6 = vector.shape_cast %5 : vector<1x8x32xf32> to vector<8x32xf32>
    %c0_4 = arith.constant 0 : index
    %c0_5 = arith.constant 0 : index
    %c0_6 = arith.constant 0 : index
    %7 = vector.load %arg3[%c0_4, %c0_5, %c0_6] : memref<2x8x32xf32, #tpu.memory_space<vmem>>, vector<1x8x32xf32>
    %8 = vector.shape_cast %7 : vector<1x8x32xf32> to vector<8x32xf32>
    %c1_7 = arith.constant 1 : index
    %c0_8 = arith.constant 0 : index
    %c0_9 = arith.constant 0 : index
    %9 = vector.load %arg3[%c1_7, %c0_8, %c0_9] : memref<2x8x32xf32, #tpu.memory_space<vmem>>, vector<1x8x32xf32>
    %10 = vector.shape_cast %9 : vector<1x8x32xf32> to vector<8x32xf32>
    %c0_10 = arith.constant 0 : index
    %c0_11 = arith.constant 0 : index
    %11 = vector.load %arg4[%c0_10, %c0_11] : memref<8x32xf32, #tpu.memory_space<vmem>>, vector<8x32xf32>
    %c0_i32 = arith.constant 0 : i32
    %c5_i32 = arith.constant 5 : i32
    %12 = arith.addi %c0_i32, %c5_i32 : i32
    %c1_i32 = arith.constant 1 : i32
    %13:5 = scf.for %arg17 = %c0_i32 to %12 step %c1_i32 iter_args(%arg18 = %4, %arg19 = %6, %arg20 = %8, %arg21 = %10, %arg22 = %11) -> (vector<8x32xf32>, vector<8x32xf32>, vector<8x32xf32>, vector<8x32xf32>, vector<8x32xf32>)  : i32 {
      %26 = arith.index_cast %arg17 : i32 to index
      %c0_25 = arith.constant 0 : index
      %c0_26 = arith.constant 0 : index
      %27 = vector.load %arg0[%26, %c0_25, %c0_26] : memref<5x8x128xf32, #tpu.memory_space<vmem>>, vector<1x8x128xf32>
      %28 = vector.shape_cast %27 : vector<1x8x128xf32> to vector<8x128xf32>
      %c0_27 = arith.constant 0 : index
      %c0_28 = arith.constant 0 : index
      %29 = vector.load %arg5[%c0_27, %c0_28] : memref<32x128xbf16, #tpu.memory_space<vmem>>, vector<32x128xbf16>
      %30 = arith.truncf %arg22 : vector<8x32xf32> to vector<8x32xbf16>
      %cst = arith.constant dense<0.000000e+00> : vector<8x128xf32>
      %31 = tpu.matmul %30, %29, %cst {dimension_numbers = #tpu.dot_dimension_numbers<[1], [0], [0], [1], [0, 0, 1, 1], [], []>} : vector<8x32xbf16>, vector<32x128xbf16>, vector<8x128xf32> -> vector<8x128xf32>
      %32 = arith.addf %28, %31 : vector<8x128xf32>
      %c0_29 = arith.constant 0 : index
      %c0_30 = arith.constant 0 : index
      %33 = vector.load %arg6[%c0_29, %c0_30] : memref<32x128xbf16, #tpu.memory_space<vmem>>, vector<32x128xbf16>
      %34 = arith.truncf %arg18 : vector<8x32xf32> to vector<8x32xbf16>
      %cst_31 = arith.constant dense<0.000000e+00> : vector<8x128xf32>
      %35 = tpu.matmul %34, %33, %cst_31 {dimension_numbers = #tpu.dot_dimension_numbers<[1], [0], [0], [1], [0, 0, 1, 1], [], []>} : vector<8x32xbf16>, vector<32x128xbf16>, vector<8x128xf32> -> vector<8x128xf32>
      %36 = arith.addf %32, %35 : vector<8x128xf32>
      %37 = vector.extract_strided_slice %36 {offsets = [0, 0], sizes = [8, 32], strides = [1, 1]} : vector<8x128xf32> to vector<8x32xf32>
      %38 = arith.negf %37 : vector<8x32xf32>
      %39 = math.exp %38 : vector<8x32xf32>
      %cst_32 = arith.constant 1.000000e+00 : f32
      %40 = vector.broadcast %cst_32 : f32 to vector<8x32xf32>
      %41 = arith.addf %40, %39 : vector<8x32xf32>
      %42 = arith.divf %40, %41 : vector<8x32xf32>
      %43 = vector.extract_strided_slice %36 {offsets = [0, 32], sizes = [8, 32], strides = [1, 1]} : vector<8x128xf32> to vector<8x32xf32>
      %44 = arith.negf %43 : vector<8x32xf32>
      %45 = math.exp %44 : vector<8x32xf32>
      %cst_33 = arith.constant 1.000000e+00 : f32
      %46 = vector.broadcast %cst_33 : f32 to vector<8x32xf32>
      %47 = arith.addf %46, %45 : vector<8x32xf32>
      %48 = arith.divf %46, %47 : vector<8x32xf32>
      %49 = vector.extract_strided_slice %36 {offsets = [0, 64], sizes = [8, 32], strides = [1, 1]} : vector<8x128xf32> to vector<8x32xf32>
      %50 = math.tanh %49 : vector<8x32xf32>
      %51 = vector.extract_strided_slice %36 {offsets = [0, 96], sizes = [8, 32], strides = [1, 1]} : vector<8x128xf32> to vector<8x32xf32>
      %52 = arith.negf %51 : vector<8x32xf32>
      %53 = math.exp %52 : vector<8x32xf32>
      %cst_34 = arith.constant 1.000000e+00 : f32
      %54 = vector.broadcast %cst_34 : f32 to vector<8x32xf32>
      %55 = arith.addf %54, %53 : vector<8x32xf32>
      %56 = arith.divf %54, %55 : vector<8x32xf32>
      %57 = arith.mulf %48, %arg20 : vector<8x32xf32>
      %58 = arith.mulf %42, %50 : vector<8x32xf32>
      %59 = arith.addf %57, %58 : vector<8x32xf32>
      %60 = math.tanh %59 : vector<8x32xf32>
      %61 = arith.mulf %56, %60 : vector<8x32xf32>
      %c0_35 = arith.constant 0 : index
      %c0_36 = arith.constant 0 : index
      %62 = vector.load %arg7[%c0_35, %c0_36] : memref<32x128xbf16, #tpu.memory_space<vmem>>, vector<32x128xbf16>
      %63 = arith.truncf %61 : vector<8x32xf32> to vector<8x32xbf16>
      %cst_37 = arith.constant dense<0.000000e+00> : vector<8x128xf32>
      %64 = tpu.matmul %63, %62, %cst_37 {dimension_numbers = #tpu.dot_dimension_numbers<[1], [0], [0], [1], [0, 0, 1, 1], [], []>} : vector<8x32xbf16>, vector<32x128xbf16>, vector<8x128xf32> -> vector<8x128xf32>
      %c0_38 = arith.constant 0 : index
      %c0_39 = arith.constant 0 : index
      %65 = vector.load %arg8[%c0_38, %c0_39] : memref<32x128xbf16, #tpu.memory_space<vmem>>, vector<32x128xbf16>
      %66 = arith.truncf %arg19 : vector<8x32xf32> to vector<8x32xbf16>
      %cst_40 = arith.constant dense<0.000000e+00> : vector<8x128xf32>
      %67 = tpu.matmul %66, %65, %cst_40 {dimension_numbers = #tpu.dot_dimension_numbers<[1], [0], [0], [1], [0, 0, 1, 1], [], []>} : vector<8x32xbf16>, vector<32x128xbf16>, vector<8x128xf32> -> vector<8x128xf32>
      %68 = arith.addf %64, %67 : vector<8x128xf32>
      %c0_41 = arith.constant 0 : index
      %c0_42 = arith.constant 0 : index
      %69 = vector.load %arg9[%c0_41, %c0_42] : memref<1x128xf32, #tpu.memory_space<vmem>>, vector<1x128xf32>
      %70 = vector.broadcast %69 : vector<1x128xf32> to vector<8x128xf32>
      %71 = arith.addf %68, %70 : vector<8x128xf32>
      %72 = vector.extract_strided_slice %71 {offsets = [0, 0], sizes = [8, 32], strides = [1, 1]} : vector<8x128xf32> to vector<8x32xf32>
      %73 = arith.negf %72 : vector<8x32xf32>
      %74 = math.exp %73 : vector<8x32xf32>
      %cst_43 = arith.constant 1.000000e+00 : f32
      %75 = vector.broadcast %cst_43 : f32 to vector<8x32xf32>
      %76 = arith.addf %75, %74 : vector<8x32xf32>
      %77 = arith.divf %75, %76 : vector<8x32xf32>
      %78 = vector.extract_strided_slice %71 {offsets = [0, 32], sizes = [8, 32], strides = [1, 1]} : vector<8x128xf32> to vector<8x32xf32>
      %79 = arith.negf %78 : vector<8x32xf32>
      %80 = math.exp %79 : vector<8x32xf32>
      %cst_44 = arith.constant 1.000000e+00 : f32
      %81 = vector.broadcast %cst_44 : f32 to vector<8x32xf32>
      %82 = arith.addf %81, %80 : vector<8x32xf32>
      %83 = arith.divf %81, %82 : vector<8x32xf32>
      %84 = vector.extract_strided_slice %71 {offsets = [0, 64], sizes = [8, 32], strides = [1, 1]} : vector<8x128xf32> to vector<8x32xf32>
      %85 = math.tanh %84 : vector<8x32xf32>
      %86 = vector.extract_strided_slice %71 {offsets = [0, 96], sizes = [8, 32], strides = [1, 1]} : vector<8x128xf32> to vector<8x32xf32>
      %87 = arith.negf %86 : vector<8x32xf32>
      %88 = math.exp %87 : vector<8x32xf32>
      %cst_45 = arith.constant 1.000000e+00 : f32
      %89 = vector.broadcast %cst_45 : f32 to vector<8x32xf32>
      %90 = arith.addf %89, %88 : vector<8x32xf32>
      %91 = arith.divf %89, %90 : vector<8x32xf32>
      %92 = arith.mulf %83, %arg21 : vector<8x32xf32>
      %93 = arith.mulf %77, %85 : vector<8x32xf32>
      %94 = arith.addf %92, %93 : vector<8x32xf32>
      %95 = math.tanh %94 : vector<8x32xf32>
      %96 = arith.mulf %91, %95 : vector<8x32xf32>
      %c0_46 = arith.constant 0 : index
      %c0_47 = arith.constant 0 : index
      %97 = vector.load %arg10[%c0_46, %c0_47] : memref<32x32xbf16, #tpu.memory_space<vmem>>, vector<32x32xbf16>
      %98 = arith.truncf %96 : vector<8x32xf32> to vector<8x32xbf16>
      %cst_48 = arith.constant dense<0.000000e+00> : vector<8x32xf32>
      %99 = tpu.matmul %98, %97, %cst_48 {dimension_numbers = #tpu.dot_dimension_numbers<[1], [0], [0], [1], [0, 0, 1, 1], [], []>} : vector<8x32xbf16>, vector<32x32xbf16>, vector<8x32xf32> -> vector<8x32xf32>
      %c0_49 = arith.constant 0 : index
      %c0_50 = arith.constant 0 : index
      %c0_51 = arith.constant 0 : index
      %100 = vector.load %arg1[%c0_49, %c0_50, %c0_51] : memref<8x128x32xbf16, #tpu.memory_space<vmem>>, vector<8x128x32xbf16>
      %101 = arith.extf %100 : vector<8x128x32xbf16> to vector<8x128x32xf32>
      %102 = vector.shape_cast %99 : vector<8x32xf32> to vector<8x1x32xf32>
      %103 = vector.broadcast %102 : vector<8x1x32xf32> to vector<8x128x32xf32>
      %104 = arith.mulf %101, %103 : vector<8x128x32xf32>
      %cst_52 = arith.constant dense<0.000000e+00> : vector<8x128xf32>
      %105 = vector.multi_reduction <add>, %104, %cst_52 [2] : vector<8x128x32xf32> to vector<8x128xf32>
      %cst_53 = arith.constant 0xFF800000 : f32
      %106 = vector.broadcast %cst_53 : f32 to vector<8x128xf32>
      %107 = arith.select %2, %105, %106 : vector<8x128xi1>, vector<8x128xf32>
      %cst_54 = arith.constant dense<0xFF800000> : vector<8xf32>
      %108 = vector.multi_reduction <maximumf>, %107, %cst_54 [1] : vector<8x128xf32> to vector<8xf32>
      %109 = vector.shape_cast %108 : vector<8xf32> to vector<8x1xf32>
      %110 = vector.broadcast %109 : vector<8x1xf32> to vector<8x128xf32>
      %111 = arith.subf %107, %110 : vector<8x128xf32>
      %112 = math.exp %111 : vector<8x128xf32>
      %cst_55 = arith.constant dense<0.000000e+00> : vector<8xf32>
      %113 = vector.multi_reduction <add>, %112, %cst_55 [1] : vector<8x128xf32> to vector<8xf32>
      %114 = vector.shape_cast %113 : vector<8xf32> to vector<8x1xf32>
      %115 = tpu.reciprocal %114 {approx = true} : vector<8x1xf32> -> vector<8x1xf32>
      %116 = vector.broadcast %115 : vector<8x1xf32> to vector<8x128xf32>
      %117 = arith.mulf %112, %116 : vector<8x128xf32>
      %118 = vector.shape_cast %117 : vector<8x128xf32> to vector<8x128x1xf32>
      %119 = vector.broadcast %118 : vector<8x128x1xf32> to vector<8x128x32xf32>
      %120 = arith.mulf %119, %101 : vector<8x128x32xf32>
      %cst_56 = arith.constant dense<0.000000e+00> : vector<8x32xf32>
      %121 = vector.multi_reduction <add>, %120, %cst_56 [1] : vector<8x128x32xf32> to vector<8x32xf32>
      %c0_57 = arith.constant 0 : index
      %c0_58 = arith.constant 0 : index
      %122 = vector.load %arg11[%c0_57, %c0_58] : memref<32x32xbf16, #tpu.memory_space<vmem>>, vector<32x32xbf16>
      %123 = arith.truncf %121 : vector<8x32xf32> to vector<8x32xbf16>
      %cst_59 = arith.constant dense<0.000000e+00> : vector<8x32xf32>
      %124 = tpu.matmul %123, %122, %cst_59 {dimension_numbers = #tpu.dot_dimension_numbers<[1], [0], [0], [1], [0, 0, 1, 1], [], []>} : vector<8x32xbf16>, vector<32x32xbf16>, vector<8x32xf32> -> vector<8x32xf32>
      %c0_60 = arith.constant 0 : index
      %c0_61 = arith.constant 0 : index
      %125 = vector.load %arg12[%c0_60, %c0_61] : memref<32x32xbf16, #tpu.memory_space<vmem>>, vector<32x32xbf16>
      %126 = arith.truncf %96 : vector<8x32xf32> to vector<8x32xbf16>
      %cst_62 = arith.constant dense<0.000000e+00> : vector<8x32xf32>
      %127 = tpu.matmul %126, %125, %cst_62 {dimension_numbers = #tpu.dot_dimension_numbers<[1], [0], [0], [1], [0, 0, 1, 1], [], []>} : vector<8x32xbf16>, vector<32x32xbf16>, vector<8x32xf32> -> vector<8x32xf32>
      %128 = arith.addf %124, %127 : vector<8x32xf32>
      %129 = math.tanh %128 : vector<8x32xf32>
      %130 = arith.index_cast %arg17 : i32 to index
      %c0_63 = arith.constant 0 : index
      %c0_64 = arith.constant 0 : index
      %131 = vector.load %arg13[%130, %c0_63, %c0_64] : memref<5x8x32xf32, #tpu.memory_space<vmem>>, vector<1x8x32xf32>
      %132 = vector.shape_cast %131 : vector<1x8x32xf32> to vector<8x32xf32>
      %133 = vector.shape_cast %129 : vector<8x32xf32> to vector<1x8x32xf32>
      tpu.vector_store %arg13[%130, %c0_63, %c0_64], %133 {strides = array<i32>} : memref<5x8x32xf32, #tpu.memory_space<vmem>>, vector<1x8x32xf32>,
      %c0_65 = arith.constant 0 : index
      %c0_66 = arith.constant 0 : index
      %134 = vector.load %arg16[%c0_65, %c0_66] : memref<8x128xf32, #tpu.memory_space<vmem>>, vector<8x128xf32>
      tpu.vector_store %arg16[%c0_65, %c0_66], %117 {strides = array<i32>} : memref<8x128xf32, #tpu.memory_space<vmem>>, vector<8x128xf32>,
      scf.yield %61, %96, %59, %94, %129 : vector<8x32xf32>, vector<8x32xf32>, vector<8x32xf32>, vector<8x32xf32>, vector<8x32xf32>
    }
    %c5_i32_12 = arith.constant 5 : i32
    %c0_13 = arith.constant 0 : index
    %c0_14 = arith.constant 0 : index
    %c0_15 = arith.constant 0 : index
    %14 = vector.load %arg14[%c0_13, %c0_14, %c0_15] : memref<2x8x32xf32, #tpu.memory_space<vmem>>, vector<1x8x32xf32>
    %15 = vector.shape_cast %14 : vector<1x8x32xf32> to vector<8x32xf32>
    %16 = vector.shape_cast %13#0 : vector<8x32xf32> to vector<1x8x32xf32>
    tpu.vector_store %arg14[%c0_13, %c0_14, %c0_15], %16 {strides = array<i32>} : memref<2x8x32xf32, #tpu.memory_space<vmem>>, vector<1x8x32xf32>,
    %c0_16 = arith.constant 0 : index
    %c0_17 = arith.constant 0 : index
    %c0_18 = arith.constant 0 : index
    %17 = vector.load %arg15[%c0_16, %c0_17, %c0_18] : memref<2x8x32xf32, #tpu.memory_space<vmem>>, vector<1x8x32xf32>
    %18 = vector.shape_cast %17 : vector<1x8x32xf32> to vector<8x32xf32>
    %19 = vector.shape_cast %13#2 : vector<8x32xf32> to vector<1x8x32xf32>
    tpu.vector_store %arg15[%c0_16, %c0_17, %c0_18], %19 {strides = array<i32>} : memref<2x8x32xf32, #tpu.memory_space<vmem>>, vector<1x8x32xf32>,
    %c1_19 = arith.constant 1 : index
    %c0_20 = arith.constant 0 : index
    %c0_21 = arith.constant 0 : index
    %20 = vector.load %arg14[%c1_19, %c0_20, %c0_21] : memref<2x8x32xf32, #tpu.memory_space<vmem>>, vector<1x8x32xf32>
    %21 = vector.shape_cast %20 : vector<1x8x32xf32> to vector<8x32xf32>
    %22 = vector.shape_cast %13#1 : vector<8x32xf32> to vector<1x8x32xf32>
    tpu.vector_store %arg14[%c1_19, %c0_20, %c0_21], %22 {strides = array<i32>} : memref<2x8x32xf32, #tpu.memory_space<vmem>>, vector<1x8x32xf32>,
    %c1_22 = arith.constant 1 : index
    %c0_23 = arith.constant 0 : index
    %c0_24 = arith.constant 0 : index
    %23 = vector.load %arg15[%c1_22, %c0_23, %c0_24] : memref<2x8x32xf32, #tpu.memory_space<vmem>>, vector<1x8x32xf32>
    %24 = vector.shape_cast %23 : vector<1x8x32xf32> to vector<8x32xf32>
    %25 = vector.shape_cast %13#3 : vector<8x32xf32> to vector<1x8x32xf32>
    tpu.vector_store %arg15[%c1_22, %c0_23, %c0_24], %25 {strides = array<i32>} : memref<2x8x32xf32, #tpu.memory_space<vmem>>, vector<1x8x32xf32>,
    return
  }
}

</mosaic_0001>

<llo_original>
// kernel: tpu_custom_call.1
$region0: #{tpu_custom_call.1}
  #allocation0 [shape = 'u32[]', space=smem, size = 0x4, offset = 0x4, fixed_abs, tag = 'smem constant byte address 0x4 - core index']
  #allocation1 [shape = 'u32[144,128]{1,0:T(1,128)}', space=vmem, size = 0x12000, scoped, tag = 'internal scratch']
  %s0 = inlined_call_operand.vmem [shape: f32[5,8,128], index: 0, kind: input, shape index: {}]
  %s1 = inlined_call_operand.vmem [shape: bf16[8,128,32], index: 1, kind: input, shape index: {}]
  %s2 = inlined_call_operand.vmem [shape: f32[2,8,32], index: 2, kind: input, shape index: {}]
  %s3 = inlined_call_operand.vmem [shape: f32[2,8,32], index: 3, kind: input, shape index: {}]
  %s4 = inlined_call_operand.vmem [shape: f32[8,32], index: 4, kind: input, shape index: {}]
  %s5 = inlined_call_operand.vmem [shape: bf16[32,128], index: 5, kind: input, shape index: {}]
  %s6 = inlined_call_operand.vmem [shape: bf16[32,128], index: 6, kind: input, shape index: {}]
  %s7 = inlined_call_operand.vmem [shape: bf16[32,128], index: 7, kind: input, shape index: {}]
  %s8 = inlined_call_operand.vmem [shape: bf16[32,128], index: 8, kind: input, shape index: {}]
  %s9 = inlined_call_operand.vmem [shape: f32[1,128], index: 9, kind: input, shape index: {}]
  %s10 = inlined_call_operand.vmem [shape: bf16[32,32], index: 10, kind: input, shape index: {}]
  %s11 = inlined_call_operand.vmem [shape: bf16[32,32], index: 11, kind: input, shape index: {}]
  %s12 = inlined_call_operand.vmem [shape: bf16[32,32], index: 12, kind: input, shape index: {}]
  %s13 = inlined_call_operand.hbm [shape: f32[5,8,32], index: 13, kind: output, shape index: {0}]
  %s14 = inlined_call_operand.hbm [shape: f32[2,8,32], index: 14, kind: output, shape index: {1}]
  %s15 = inlined_call_operand.hbm [shape: f32[2,8,32], index: 15, kind: output, shape index: {2}]
  %s16 = inlined_call_operand.hbm [shape: f32[8,128], index: 16, kind: output, shape index: {3}]
  %17 = xla_tuple %s13, %s14, %s15, %s16
  %s18 = sld [smem:[#allocation0]]
  $region93: #{tpu_custom_call.1} parent=0
    _
  %s20 = ssub.s32 1, %s18
  %s21 = scalar_select 0, %s20, %s18
  $region1: #{tpu_custom_call.1} parent=0
    #allocation2 [shape = 'u8[20480]{0}', space=vmem, size = 0x5000, scoped, tag = 'output window, operand 0, single buffered']
    #allocation3 [shape = 's32[1]{0}', space=sflag, size = 0x4, scoped, tag = 'scoped memory for tpu_custom_call.1']
    #allocation4 [shape = 'u8[8192]{0}', space=vmem, size = 0x2000, scoped, tag = 'output window, operand 1, single buffered']
    #allocation5 [shape = 's32[1]{0}', space=sflag, size = 0x4, scoped, tag = 'scoped memory for tpu_custom_call.1']
    #allocation6 [shape = 'u8[8192]{0}', space=vmem, size = 0x2000, scoped, tag = 'output window, operand 2, single buffered']
    #allocation7 [shape = 'u8[4096]{0}', space=vmem, size = 0x1000, scoped, tag = 'output window, operand 3, single buffered']
    #allocation8 [shape = 's32[1]{0}', space=sflag, size = 0x4, scoped, tag = 'scoped memory for tpu_custom_call.1']
    %22 = vsyncpa [#allocation3], 0
    %23 = vsyncpa [#allocation5], 0
    %24 = vsyncpa [#allocation8], 0
    // Predicated region
    $region2: #{tpu_custom_call.1} parent=1 // pred_check
      _
    $region3: #{tpu_custom_call.1} parent=1 // pred_check_branch
      %26 = sbr.rel (0) target = $region5
    $region4: #{tpu_custom_call.1} parent=1 // pred_region
      _
    $region5: #{tpu_custom_call.1} parent=1 // pred_fallthru
      _
    // Predicated region
    $region6: #{tpu_custom_call.1} parent=1 // pred_check
      _
    $region7: #{tpu_custom_call.1} parent=1 // pred_check_branch
      %28 = sbr.rel (0) target = $region9
    $region8: #{tpu_custom_call.1} parent=1 // pred_region
      _
    $region9: #{tpu_custom_call.1} parent=1 // pred_fallthru
      _
    // Predicated region
    $region10: #{tpu_custom_call.1} parent=1 // pred_check
      _
    $region11: #{tpu_custom_call.1} parent=1 // pred_check_branch
      %30 = sbr.rel (0) target = $region13
    $region12: #{tpu_custom_call.1} parent=1 // pred_region
      _
    $region13: #{tpu_custom_call.1} parent=1 // pred_fallthru
      _
    // Predicated region
    $region14: #{tpu_custom_call.1} parent=1 // pred_check
      _
    $region15: #{tpu_custom_call.1} parent=1 // pred_check_branch
      %32 = sbr.rel (0) target = $region17
    $region16: #{tpu_custom_call.1} parent=1 // pred_region
      _
    $region17: #{tpu_custom_call.1} parent=1 // pred_fallthru
      _
    // Predicated region
    $region18: #{tpu_custom_call.1} parent=1 // pred_check
      _
    $region19: #{tpu_custom_call.1} parent=1 // pred_check_branch
      %34 = sbr.rel (0) target = $region21
    $region20: #{tpu_custom_call.1} parent=1 // pred_region
      _
    $region21: #{tpu_custom_call.1} parent=1 // pred_fallthru
      _
    // Predicated region
    $region22: #{tpu_custom_call.1} parent=1 // pred_check
      _
    $region23: #{tpu_custom_call.1} parent=1 // pred_check_branch
      %36 = sbr.rel (0) target = $region25
    $region24: #{tpu_custom_call.1} parent=1 // pred_region
      _
    $region25: #{tpu_custom_call.1} parent=1 // pred_fallthru
      _
    // Predicated region
    $region26: #{tpu_custom_call.1} parent=1 // pred_check
      _
    $region27: #{tpu_custom_call.1} parent=1 // pred_check_branch
      %38 = sbr.rel (0) target = $region29
    $region28: #{tpu_custom_call.1} parent=1 // pred_region
      _
    $region29: #{tpu_custom_call.1} parent=1 // pred_fallthru
      _
    // Predicated region
    $region30: #{tpu_custom_call.1} parent=1 // pred_check
      _
    $region31: #{tpu_custom_call.1} parent=1 // pred_check_branch
      %40 = sbr.rel (0) target = $region33
    $region32: #{tpu_custom_call.1} parent=1 // pred_region
      _
    $region33: #{tpu_custom_call.1} parent=1 // pred_fallthru
      _
    // Predicated region
    $region34: #{tpu_custom_call.1} parent=1 // pred_check
      _
    $region35: #{tpu_custom_call.1} parent=1 // pred_check_branch
      %42 = sbr.rel (0) target = $region37
    $region36: #{tpu_custom_call.1} parent=1 // pred_region
      _
    $region37: #{tpu_custom_call.1} parent=1 // pred_fallthru
      _
    // Predicated region
    $region38: #{tpu_custom_call.1} parent=1 // pred_check
      _
    $region39: #{tpu_custom_call.1} parent=1 // pred_check_branch
      %44 = sbr.rel (0) target = $region41
    $region40: #{tpu_custom_call.1} parent=1 // pred_region
      _
    $region41: #{tpu_custom_call.1} parent=1 // pred_fallthru
      _
    // Predicated region
    $region42: #{tpu_custom_call.1} parent=1 // pred_check
      _
    $region43: #{tpu_custom_call.1} parent=1 // pred_check_branch
      %46 = sbr.rel (0) target = $region45
    $region44: #{tpu_custom_call.1} parent=1 // pred_region
      _
    $region45: #{tpu_custom_call.1} parent=1 // pred_fallthru
      _
    // Predicated region
    $region46: #{tpu_custom_call.1} parent=1 // pred_check
      _
    $region47: #{tpu_custom_call.1} parent=1 // pred_check_branch
      %48 = sbr.rel (0) target = $region49
    $region48: #{tpu_custom_call.1} parent=1 // pred_region
      _
    $region49: #{tpu_custom_call.1} parent=1 // pred_fallthru
      _
    // Predicated region
    $region50: #{tpu_custom_call.1} parent=1 // pred_check
      _
    $region51: #{tpu_custom_call.1} parent=1 // pred_check_branch
      %50 = sbr.rel (0) target = $region53
    $region52: #{tpu_custom_call.1} parent=1 // pred_region
      _
    $region53: #{tpu_custom_call.1} parent=1 // pred_fallthru
      _
    %v52 = vlaneseq
    %v53 = vand.u32 %v52, 127
    %vm54 = vcmp.lt.s32.totalorder %v53, 6
    %v55 = vld [vmem:[%s2] sm:$0xff]
    %s56 = scalar_lea.vmem %s2, 8
    %v57 = vld [vmem:[%s56] sm:$0xff]
    %v58 = vld [vmem:[%s3] sm:$0xff]
    %s59 = scalar_lea.vmem %s3, 8
    %v60 = vld [vmem:[%s59] sm:$0xff]
    %v61 = vld [vmem:[%s4] sm:$0xff]
    loop: start=0, step=1, limit=5
    $region54: #{tpu_custom_call.1} parent=1 // loop_pre_header
      _
    $region55: #{tpu_custom_call.1} parent=1 // loop_header
      %s63 = sphi 0, %s67
      %p64 = scmp.ge.s32.totalorder %s63, 5
      %v68 = vphi %v55, %v3235
      %v69 = vphi %v57, %v3239
      %v70 = vphi %v58, %v3243
      %v71 = vphi %v60, %v3247
      %v72 = vphi %v61, %v3229
    $region56: #{tpu_custom_call.1} parent=1 // loop_header_branch
      %66 = sbr.rel (%p64) target = $region60
    $region57: #{tpu_custom_call.1} parent=1 // loop_body
      %s73 = smul.u32 %s63, 8
      %s74 = scalar_lea.vmem %s0, %s73
      %v75 = vld [vmem:[%s74] sm:$0xff]
      %v76 = vld [vmem:[%s5] sm:$0xf]
      %v77 = vld [vmem:[%s5 + $0x4] sm:$0xf]
      %v78 = vld [vmem:[%s5 + $0x8] sm:$0xf]
      %v79 = vld [vmem:[%s5 + $0xc] sm:$0xf]
      %v80 = vpack.c.bf16 %v72, %v72
      %v85 = vunpack.c.l.b16 %v76
      %v86 = vunpack.c.l.b16 %v77
      %v87 = vunpack.c.l.b16 %v78
      %v88 = vunpack.c.l.b16 %v79
      %v89 = vpack.c.b16 %v86, %v85
      %v90 = vpack.c.b16 %v88, %v87
      %vm93 = vcmask 261120
      %v95 = vsel %vm93, %v80, 0
      %97 = vmatprep.subr.bf16.mxu0 0
      %98 = vmatpush1.bf16.msra.mxu0 %v89
      %99 = vmatprep.subr.bf16.mxu0 0
      %100 = vmatpush1.bf16.msra.mxu0 %v90
      %101 = vmatprep.subr.bf16.mxu0 0
      %102 = vmatpush1.bf16.msra.mxu0 0
      %103 = vmatprep.subr.bf16.mxu0 0
      %104 = vmatpush1.bf16.msra.mxu0 0
      %105 = vmatprep.subr.bf16.mxu0 0
      %106 = vmatpush1.bf16.msra.mxu0 0
      %107 = vmatprep.subr.bf16.mxu0 0
      %108 = vmatpush1.bf16.msra.mxu0 0
      %109 = vmatprep.subr.bf16.mxu0 0
      %110 = vmatpush1.bf16.msra.mxu0 0
      %111 = vmatprep.subr.bf16.mxu0 0
      %112 = vmatpush1.bf16.msra.mxu0 0
      %113 = vmatprep.subr.bf16.mxu0 0
      %114 = vmatpush1.bf16.msra.mxu0 0
      %115 = vmatprep.subr.bf16.mxu0 0
      %116 = vmatpush1.bf16.msra.mxu0 0
      %117 = vmatprep.subr.bf16.mxu0 0
      %118 = vmatpush1.bf16.msra.mxu0 0
      %119 = vmatprep.subr.bf16.mxu0 0
      %120 = vmatpush1.bf16.msra.mxu0 0
      %121 = vmatprep.subr.bf16.mxu0 0
      %122 = vmatpush1.bf16.msra.mxu0 0
      %123 = vmatprep.subr.bf16.mxu0 0
      %124 = vmatpush1.bf16.msra.mxu0 0
      %125 = vmatprep.subr.bf16.mxu0 0
      %126 = vmatpush1.bf16.msra.mxu0 0
      %127 = vmatprep.subr.bf16.mxu0 0
      %128 = vmatpush1.bf16.msra.mxu0 0
      %129 = vmatprep.mubr.bf16.mxu0 0
      %130 = vmatmul.mubr.bf16.gmra.mrb[0].mxu0 %v95
      %v131 = vpop.f32.mrb[0].mxu0
      %v132 = vadd.f32 0.0, %v131
      %v133 = vpop.f32.mrb[0].mxu0
      %v134 = vpop.f32.mrb[0].mxu0
      %v135 = vpop.f32.mrb[0].mxu0
      %136 = vdwg.mxu0
      %v137 = vadd.f32 %v75, %v132
      %v138 = vld [vmem:[%s6] sm:$0xf]
      %v139 = vld [vmem:[%s6 + $0x4] sm:$0xf]
      %v140 = vld [vmem:[%s6 + $0x8] sm:$0xf]
      %v141 = vld [vmem:[%s6 + $0xc] sm:$0xf]
      %v142 = vpack.c.bf16 %v68, %v68
      %v147 = vunpack.c.l.b16 %v138
      %v148 = vunpack.c.l.b16 %v139
      %v149 = vunpack.c.l.b16 %v140
      %v150 = vunpack.c.l.b16 %v141
      %v151 = vpack.c.b16 %v148, %v147
      %v152 = vpack.c.b16 %v150, %v149
      %v156 = vsel %vm93, %v142, 0
      %158 = vmatprep.subr.bf16.mxu0 0
      %159 = vmatpush1.bf16.msra.mxu0 %v151
      %160 = vmatprep.subr.bf16.mxu0 0
      %161 = vmatpush1.bf16.msra.mxu0 %v152
      %162 = vmatprep.subr.bf16.mxu0 0
      %163 = vmatpush1.bf16.msra.mxu0 0
      %164 = vmatprep.subr.bf16.mxu0 0
      %165 = vmatpush1.bf16.msra.mxu0 0
      %166 = vmatprep.subr.bf16.mxu0 0
      %167 = vmatpush1.bf16.msra.mxu0 0
      %168 = vmatprep.subr.bf16.mxu0 0
      %169 = vmatpush1.bf16.msra.mxu0 0
      %170 = vmatprep.subr.bf16.mxu0 0
      %171 = vmatpush1.bf16.msra.mxu0 0
      %172 = vmatprep.subr.bf16.mxu0 0
      %173 = vmatpush1.bf16.msra.mxu0 0
      %174 = vmatprep.subr.bf16.mxu0 0
      %175 = vmatpush1.bf16.msra.mxu0 0
      %176 = vmatprep.subr.bf16.mxu0 0
      %177 = vmatpush1.bf16.msra.mxu0 0
      %178 = vmatprep.subr.bf16.mxu0 0
      %179 = vmatpush1.bf16.msra.mxu0 0
      %180 = vmatprep.subr.bf16.mxu0 0
      %181 = vmatpush1.bf16.msra.mxu0 0
      %182 = vmatprep.subr.bf16.mxu0 0
      %183 = vmatpush1.bf16.msra.mxu0 0
      %184 = vmatprep.subr.bf16.mxu0 0
      %185 = vmatpush1.bf16.msra.mxu0 0
      %186 = vmatprep.subr.bf16.mxu0 0
      %187 = vmatpush1.bf16.msra.mxu0 0
      %188 = vmatprep.subr.bf16.mxu0 0
      %189 = vmatpush1.bf16.msra.mxu0 0
      %190 = vmatprep.mubr.bf16.mxu0 0
      %191 = vmatmul.mubr.bf16.gmra.mrb[0].mxu0 %v156
      %v192 = vpop.f32.mrb[0].mxu0
      %v193 = vadd.f32 0.0, %v192
      %v194 = vpop.f32.mrb[0].mxu0
      %v195 = vpop.f32.mrb[0].mxu0
      %v196 = vpop.f32.mrb[0].mxu0
      %197 = vdwg.mxu0
      %v198 = vadd.f32 %v137, %v193
      %v199 = vxor.u32 %v198, 2147483648
      %v200 = vmul.f32 %v199, 1.442695
      %v201 = vpow.pop %v200
      %v202 = vadd.f32 %v201, 1.0
      %v203 = vrcp.pop %v202
      %v204 = vmul.f32 1.0, %v203
      %v205 = vtanh.pop %v198
      %207 = vrot.lane.b32.xlu0 %v70, 32
      %v208 = vpop.permute.xlu0 %207
      %v210 = vmul.f32 %v204, %v208
      %212 = vrot.lane.b32.xlu0 %v205, 64
      %v213 = vpop.permute.xlu0 %212
      %v215 = vmul.f32 %v204, %v213
      %217 = vrot.lane.b32.xlu0 %v215, 32
      %v218 = vpop.permute.xlu0 %217
      %v220 = vadd.f32 %v210, %v218
      %v221 = vtanh.pop %v220
      %223 = vrot.lane.b32.xlu0 %v221, 64
      %v224 = vpop.permute.xlu0 %223
      %v226 = vmul.f32 %v204, %v224
      %v227 = vld [vmem:[%s7] sm:$0xf]
      %v228 = vld [vmem:[%s7 + $0x4] sm:$0xf]
      %v229 = vld [vmem:[%s7 + $0x8] sm:$0xf]
      %v230 = vld [vmem:[%s7 + $0xc] sm:$0xf]
      %v231 = vpack.c.bf16 %v226, %v226
      %v232 = vld [vmem:[%s8] sm:$0xf]
      %v233 = vld [vmem:[%s8 + $0x4] sm:$0xf]
      %v234 = vld [vmem:[%s8 + $0x8] sm:$0xf]
      %v235 = vld [vmem:[%s8 + $0xc] sm:$0xf]
      %v236 = vpack.c.bf16 %v69, %v69
      %v241 = vunpack.c.l.b16 %v232
      %v242 = vunpack.c.l.b16 %v233
      %v243 = vunpack.c.l.b16 %v234
      %v244 = vunpack.c.l.b16 %v235
      %v245 = vpack.c.b16 %v242, %v241
      %v246 = vpack.c.b16 %v244, %v243
      %v250 = vsel %vm93, %v236, 0
      %252 = vmatprep.subr.bf16.mxu0 0
      %253 = vmatpush1.bf16.msra.mxu0 %v245
      %254 = vmatprep.subr.bf16.mxu0 0
      %255 = vmatpush1.bf16.msra.mxu0 %v246
      %256 = vmatprep.subr.bf16.mxu0 0
      %257 = vmatpush1.bf16.msra.mxu0 0
      %258 = vmatprep.subr.bf16.mxu0 0
      %259 = vmatpush1.bf16.msra.mxu0 0
      %260 = vmatprep.subr.bf16.mxu0 0
      %261 = vmatpush1.bf16.msra.mxu0 0
      %262 = vmatprep.subr.bf16.mxu0 0
      %263 = vmatpush1.bf16.msra.mxu0 0
      %264 = vmatprep.subr.bf16.mxu0 0
      %265 = vmatpush1.bf16.msra.mxu0 0
      %266 = vmatprep.subr.bf16.mxu0 0
      %267 = vmatpush1.bf16.msra.mxu0 0
      %268 = vmatprep.subr.bf16.mxu0 0
      %269 = vmatpush1.bf16.msra.mxu0 0
      %270 = vmatprep.subr.bf16.mxu0 0
      %271 = vmatpush1.bf16.msra.mxu0 0
      %272 = vmatprep.subr.bf16.mxu0 0
      %273 = vmatpush1.bf16.msra.mxu0 0
      %274 = vmatprep.subr.bf16.mxu0 0
      %275 = vmatpush1.bf16.msra.mxu0 0
      %276 = vmatprep.subr.bf16.mxu0 0
      %277 = vmatpush1.bf16.msra.mxu0 0
      %278 = vmatprep.subr.bf16.mxu0 0
      %279 = vmatpush1.bf16.msra.mxu0 0
      %280 = vmatprep.subr.bf16.mxu0 0
      %281 = vmatpush1.bf16.msra.mxu0 0
      %282 = vmatprep.subr.bf16.mxu0 0
      %283 = vmatpush1.bf16.msra.mxu0 0
      %284 = vmatprep.mubr.bf16.mxu0 0
      %285 = vmatmul.mubr.bf16.gmra.mrb[0].mxu0 %v250
      %v286 = vpop.f32.mrb[0].mxu0
      %v287 = vadd.f32 0.0, %v286
      %v288 = vpop.f32.mrb[0].mxu0
      %v289 = vpop.f32.mrb[0].mxu0
      %v290 = vpop.f32.mrb[0].mxu0
      %291 = vdwg.mxu0
      %293 = vrot.lane.b32.xlu0 %v231, 32
      %v294 = vpop.permute.xlu0 %293
      %v299 = vunpack.c.l.b16 %v227
      %v300 = vunpack.c.l.b16 %v228
      %v301 = vunpack.c.l.b16 %v229
      %v302 = vunpack.c.l.b16 %v230
      %v303 = vpack.c.b16 %v300, %v299
      %v304 = vpack.c.b16 %v302, %v301
      %v308 = vsel %vm93, %v294, 0
      %310 = vmatprep.subr.bf16.mxu0 0
      %311 = vmatpush1.bf16.msra.mxu0 %v303
      %312 = vmatprep.subr.bf16.mxu0 0
      %313 = vmatpush1.bf16.msra.mxu0 %v304
      %314 = vmatprep.subr.bf16.mxu0 0
      %315 = vmatpush1.bf16.msra.mxu0 0
      %316 = vmatprep.subr.bf16.mxu0 0
      %317 = vmatpush1.bf16.msra.mxu0 0
      %318 = vmatprep.subr.bf16.mxu0 0
      %319 = vmatpush1.bf16.msra.mxu0 0
      %320 = vmatprep.subr.bf16.mxu0 0
      %321 = vmatpush1.bf16.msra.mxu0 0
      %322 = vmatprep.subr.bf16.mxu0 0
      %323 = vmatpush1.bf16.msra.mxu0 0
      %324 = vmatprep.subr.bf16.mxu0 0
      %325 = vmatpush1.bf16.msra.mxu0 0
      %326 = vmatprep.subr.bf16.mxu0 0
      %327 = vmatpush1.bf16.msra.mxu0 0
      %328 = vmatprep.subr.bf16.mxu0 0
      %329 = vmatpush1.bf16.msra.mxu0 0
      %330 = vmatprep.subr.bf16.mxu0 0
      %331 = vmatpush1.bf16.msra.mxu0 0
      %332 = vmatprep.subr.bf16.mxu0 0
      %333 = vmatpush1.bf16.msra.mxu0 0
      %334 = vmatprep.subr.bf16.mxu0 0
      %335 = vmatpush1.bf16.msra.mxu0 0
      %336 = vmatprep.subr.bf16.mxu0 0
      %337 = vmatpush1.bf16.msra.mxu0 0
      %338 = vmatprep.subr.bf16.mxu0 0
      %339 = vmatpush1.bf16.msra.mxu0 0
      %340 = vmatprep.subr.bf16.mxu0 0
      %341 = vmatpush1.bf16.msra.mxu0 0
      %342 = vmatprep.mubr.bf16.mxu0 0
      %343 = vmatmul.mubr.bf16.gmra.mrb[0].mxu0 %v308
      %v344 = vpop.f32.mrb[0].mxu0
      %v345 = vadd.f32 %v287, %v344
      %v346 = vpop.f32.mrb[0].mxu0
      %v347 = vpop.f32.mrb[0].mxu0
      %v348 = vpop.f32.mrb[0].mxu0
      %349 = vdwg.mxu0
      %v350 = vld [vmem:[%s9] sm:$0x1]
      %v352 = vlaneseq
      %v353 = vshrl.u32 %v352, 7
      %v354 = vsub.s32 0, %v353
      %v355 = vrot.slane %v350, %v354
      %v357 = vadd.f32 %v345, %v355
      %v358 = vxor.u32 %v357, 2147483648
      %v359 = vmul.f32 %v358, 1.442695
      %v360 = vpow.pop %v359
      %v361 = vadd.f32 %v360, 1.0
      %v362 = vrcp.pop %v361
      %v363 = vmul.f32 1.0, %v362
      %v364 = vtanh.pop %v357
      %366 = vrot.lane.b32.xlu0 %v71, 32
      %v367 = vpop.permute.xlu0 %366
      %v369 = vmul.f32 %v363, %v367
      %371 = vrot.lane.b32.xlu0 %v364, 64
      %v372 = vpop.permute.xlu0 %371
      %v374 = vmul.f32 %v363, %v372
      %376 = vrot.lane.b32.xlu0 %v374, 32
      %v377 = vpop.permute.xlu0 %376
      %v379 = vadd.f32 %v369, %v377
      %v380 = vtanh.pop %v379
      %382 = vrot.lane.b32.xlu0 %v380, 64
      %v383 = vpop.permute.xlu0 %382
      %v385 = vmul.f32 %v363, %v383
      %v386 = vld [vmem:[%s10] sm:$0xf]
      %v387 = vld [vmem:[%s10 + $0x4] sm:$0xf]
      %v388 = vld [vmem:[%s10 + $0x8] sm:$0xf]
      %v389 = vld [vmem:[%s10 + $0xc] sm:$0xf]
      %v390 = vpack.c.bf16 %v385, %v385
      %392 = vrot.lane.b32.xlu0 %v390, 32
      %v393 = vpop.permute.xlu0 %392
      %v398 = vunpack.c.l.b16 %v386
      %v399 = vunpack.c.l.b16 %v387
      %v400 = vunpack.c.l.b16 %v388
      %v401 = vunpack.c.l.b16 %v389
      %v402 = vpack.c.b16 %v399, %v398
      %v403 = vpack.c.b16 %v401, %v400
      %v407 = vsel %vm93, %v393, 0
      %409 = vmatprep.subr.bf16.mxu0 0
      %410 = vmatpush1.bf16.msra.mxu0 %v402
      %411 = vmatprep.subr.bf16.mxu0 0
      %412 = vmatpush1.bf16.msra.mxu0 %v403
      %413 = vmatprep.subr.bf16.mxu0 0
      %414 = vmatpush1.bf16.msra.mxu0 0
      %415 = vmatprep.subr.bf16.mxu0 0
      %416 = vmatpush1.bf16.msra.mxu0 0
      %417 = vmatprep.subr.bf16.mxu0 0
      %418 = vmatpush1.bf16.msra.mxu0 0
      %419 = vmatprep.subr.bf16.mxu0 0
      %420 = vmatpush1.bf16.msra.mxu0 0
      %421 = vmatprep.subr.bf16.mxu0 0
      %422 = vmatpush1.bf16.msra.mxu0 0
      %423 = vmatprep.subr.bf16.mxu0 0
      %424 = vmatpush1.bf16.msra.mxu0 0
      %425 = vmatprep.subr.bf16.mxu0 0
      %426 = vmatpush1.bf16.msra.mxu0 0
      %427 = vmatprep.subr.bf16.mxu0 0
      %428 = vmatpush1.bf16.msra.mxu0 0
      %429 = vmatprep.subr.bf16.mxu0 0
      %430 = vmatpush1.bf16.msra.mxu0 0
      %431 = vmatprep.subr.bf16.mxu0 0
      %432 = vmatpush1.bf16.msra.mxu0 0
      %433 = vmatprep.subr.bf16.mxu0 0
      %434 = vmatpush1.bf16.msra.mxu0 0
      %435 = vmatprep.subr.bf16.mxu0 0
      %436 = vmatpush1.bf16.msra.mxu0 0
      %437 = vmatprep.subr.bf16.mxu0 0
      %438 = vmatpush1.bf16.msra.mxu0 0
      %439 = vmatprep.subr.bf16.mxu0 0
      %440 = vmatpush1.bf16.msra.mxu0 0
      %441 = vmatprep.mubr.bf16.mxu0 0
      %442 = vmatmul.mubr.bf16.gmra.mrb[0].mxu0 %v407
      %v443 = vpop.f32.mrb[0].mxu0
      %v444 = vadd.f32 0.0, %v443
      %v445 = vpop.f32.mrb[0].mxu0
      %v446 = vpop.f32.mrb[0].mxu0
      %v447 = vpop.f32.mrb[0].mxu0
      %448 = vdwg.mxu0
      %v449 = vld [vmem:[%s1] sm:$0xf]
      %v450 = vld [vmem:[%s1 + $0x4] sm:$0xf]
      %v451 = vld [vmem:[%s1 + $0x8] sm:$0xf]
      %v452 = vld [vmem:[%s1 + $0xc] sm:$0xf]
      %v453 = vld [vmem:[%s1 + $0x10] sm:$0xf]
      %v454 = vld [vmem:[%s1 + $0x14] sm:$0xf]
      %v455 = vld [vmem:[%s1 + $0x18] sm:$0xf]
      %v456 = vld [vmem:[%s1 + $0x1c] sm:$0xf]
      %v457 = vld [vmem:[%s1 + $0x20] sm:$0xf]
      %v458 = vld [vmem:[%s1 + $0x24] sm:$0xf]
      %v459 = vld [vmem:[%s1 + $0x28] sm:$0xf]
      %v460 = vld [vmem:[%s1 + $0x2c] sm:$0xf]
      %v461 = vld [vmem:[%s1 + $0x30] sm:$0xf]
      %v462 = vld [vmem:[%s1 + $0x34] sm:$0xf]
      %v463 = vld [vmem:[%s1 + $0x38] sm:$0xf]
      %v464 = vld [vmem:[%s1 + $0x3c] sm:$0xf]
      %v465 = vld [vmem:[%s1 + $0x40] sm:$0xf]
      %v466 = vld [vmem:[%s1 + $0x44] sm:$0xf]
      %v467 = vld [vmem:[%s1 + $0x48] sm:$0xf]
      %v468 = vld [vmem:[%s1 + $0x4c] sm:$0xf]
      %v469 = vld [vmem:[%s1 + $0x50] sm:$0xf]
      %v470 = vld [vmem:[%s1 + $0x54] sm:$0xf]
      %v471 = vld [vmem:[%s1 + $0x58] sm:$0xf]
      %v472 = vld [vmem:[%s1 + $0x5c] sm:$0xf]
      %v473 = vld [vmem:[%s1 + $0x60] sm:$0xf]
      %v474 = vld [vmem:[%s1 + $0x64] sm:$0xf]
      %v475 = vld [vmem:[%s1 + $0x68] sm:$0xf]
      %v476 = vld [vmem:[%s1 + $0x6c] sm:$0xf]
      %v477 = vld [vmem:[%s1 + $0x70] sm:$0xf]
      %v478 = vld [vmem:[%s1 + $0x74] sm:$0xf]
      %v479 = vld [vmem:[%s1 + $0x78] sm:$0xf]
      %v480 = vld [vmem:[%s1 + $0x7c] sm:$0xf]
      %v481 = vld [vmem:[%s1 + $0x80] sm:$0xf]
      %v482 = vld [vmem:[%s1 + $0x84] sm:$0xf]
      %v483 = vld [vmem:[%s1 + $0x88] sm:$0xf]
      %v484 = vld [vmem:[%s1 + $0x8c] sm:$0xf]
      %v485 = vld [vmem:[%s1 + $0x90] sm:$0xf]
      %v486 = vld [vmem:[%s1 + $0x94] sm:$0xf]
      %v487 = vld [vmem:[%s1 + $0x98] sm:$0xf]
      %v488 = vld [vmem:[%s1 + $0x9c] sm:$0xf]
      %v489 = vld [vmem:[%s1 + $0xa0] sm:$0xf]
      %v490 = vld [vmem:[%s1 + $0xa4] sm:$0xf]
      %v491 = vld [vmem:[%s1 + $0xa8] sm:$0xf]
      %v492 = vld [vmem:[%s1 + $0xac] sm:$0xf]
      %v493 = vld [vmem:[%s1 + $0xb0] sm:$0xf]
      %v494 = vld [vmem:[%s1 + $0xb4] sm:$0xf]
      %v495 = vld [vmem:[%s1 + $0xb8] sm:$0xf]
      %v496 = vld [vmem:[%s1 + $0xbc] sm:$0xf]
      %v497 = vld [vmem:[%s1 + $0xc0] sm:$0xf]
      %v498 = vld [vmem:[%s1 + $0xc4] sm:$0xf]
      %v499 = vld [vmem:[%s1 + $0xc8] sm:$0xf]
      %v500 = vld [vmem:[%s1 + $0xcc] sm:$0xf]
      %v501 = vld [vmem:[%s1 + $0xd0] sm:$0xf]
      %v502 = vld [vmem:[%s1 + $0xd4] sm:$0xf]
      %v503 = vld [vmem:[%s1 + $0xd8] sm:$0xf]
      %v504 = vld [vmem:[%s1 + $0xdc] sm:$0xf]
      %v505 = vld [vmem:[%s1 + $0xe0] sm:$0xf]
      %v506 = vld [vmem:[%s1 + $0xe4] sm:$0xf]
      %v507 = vld [vmem:[%s1 + $0xe8] sm:$0xf]
      %v508 = vld [vmem:[%s1 + $0xec] sm:$0xf]
      %v509 = vld [vmem:[%s1 + $0xf0] sm:$0xf]
      %v510 = vld [vmem:[%s1 + $0xf4] sm:$0xf]
      %v511 = vld [vmem:[%s1 + $0xf8] sm:$0xf]
      %v512 = vld [vmem:[%s1 + $0xfc] sm:$0xf]
      %v513 = vld [vmem:[%s1 + $0x100] sm:$0xf]
      %v514 = vld [vmem:[%s1 + $0x104] sm:$0xf]
      %v515 = vld [vmem:[%s1 + $0x108] sm:$0xf]
      %v516 = vld [vmem:[%s1 + $0x10c] sm:$0xf]
      %v517 = vld [vmem:[%s1 + $0x110] sm:$0xf]
      %v518 = vld [vmem:[%s1 + $0x114] sm:$0xf]
      %v519 = vld [vmem:[%s1 + $0x118] sm:$0xf]
      %v520 = vld [vmem:[%s1 + $0x11c] sm:$0xf]
      %v521 = vld [vmem:[%s1 + $0x120] sm:$0xf]
      %v522 = vld [vmem:[%s1 + $0x124] sm:$0xf]
      %v523 = vld [vmem:[%s1 + $0x128] sm:$0xf]
      %v524 = vld [vmem:[%s1 + $0x12c] sm:$0xf]
      %v525 = vld [vmem:[%s1 + $0x130] sm:$0xf]
      %v526 = vld [vmem:[%s1 + $0x134] sm:$0xf]
      %v527 = vld [vmem:[%s1 + $0x138] sm:$0xf]
      %v528 = vld [vmem:[%s1 + $0x13c] sm:$0xf]
      %v529 = vld [vmem:[%s1 + $0x140] sm:$0xf]
      %v530 = vld [vmem:[%s1 + $0x144] sm:$0xf]
      %v531 = vld [vmem:[%s1 + $0x148] sm:$0xf]
      %v532 = vld [vmem:[%s1 + $0x14c] sm:$0xf]
      %v533 = vld [vmem:[%s1 + $0x150] sm:$0xf]
      %v534 = vld [vmem:[%s1 + $0x154] sm:$0xf]
      %v535 = vld [vmem:[%s1 + $0x158] sm:$0xf]
      %v536 = vld [vmem:[%s1 + $0x15c] sm:$0xf]
      %v537 = vld [vmem:[%s1 + $0x160] sm:$0xf]
      %v538 = vld [vmem:[%s1 + $0x164] sm:$0xf]
      %v539 = vld [vmem:[%s1 + $0x168] sm:$0xf]
      %v540 = vld [vmem:[%s1 + $0x16c] sm:$0xf]
      %v541 = vld [vmem:[%s1 + $0x170] sm:$0xf]
      %v542 = vld [vmem:[%s1 + $0x174] sm:$0xf]
      %v543 = vld [vmem:[%s1 + $0x178] sm:$0xf]
      %v544 = vld [vmem:[%s1 + $0x17c] sm:$0xf]
      %v545 = vld [vmem:[%s1 + $0x180] sm:$0xf]
      %v546 = vld [vmem:[%s1 + $0x184] sm:$0xf]
      %v547 = vld [vmem:[%s1 + $0x188] sm:$0xf]
      %v548 = vld [vmem:[%s1 + $0x18c] sm:$0xf]
      %v549 = vld [vmem:[%s1 + $0x190] sm:$0xf]
      %v550 = vld [vmem:[%s1 + $0x194] sm:$0xf]
      %v551 = vld [vmem:[%s1 + $0x198] sm:$0xf]
      %v552 = vld [vmem:[%s1 + $0x19c] sm:$0xf]
      %v553 = vld [vmem:[%s1 + $0x1a0] sm:$0xf]
      %v554 = vld [vmem:[%s1 + $0x1a4] sm:$0xf]
      %v555 = vld [vmem:[%s1 + $0x1a8] sm:$0xf]
      %v556 = vld [vmem:[%s1 + $0x1ac] sm:$0xf]
      %v557 = vld [vmem:[%s1 + $0x1b0] sm:$0xf]
      %v558 = vld [vmem:[%s1 + $0x1b4] sm:$0xf]
      %v559 = vld [vmem:[%s1 + $0x1b8] sm:$0xf]
      %v560 = vld [vmem:[%s1 + $0x1bc] sm:$0xf]
      %v561 = vld [vmem:[%s1 + $0x1c0] sm:$0xf]
      %v562 = vld [vmem:[%s1 + $0x1c4] sm:$0xf]
      %v563 = vld [vmem:[%s1 + $0x1c8] sm:$0xf]
      %v564 = vld [vmem:[%s1 + $0x1cc] sm:$0xf]
      %v565 = vld [vmem:[%s1 + $0x1d0] sm:$0xf]
      %v566 = vld [vmem:[%s1 + $0x1d4] sm:$0xf]
      %v567 = vld [vmem:[%s1 + $0x1d8] sm:$0xf]
      %v568 = vld [vmem:[%s1 + $0x1dc] sm:$0xf]
      %v569 = vld [vmem:[%s1 + $0x1e0] sm:$0xf]
      %v570 = vld [vmem:[%s1 + $0x1e4] sm:$0xf]
      %v571 = vld [vmem:[%s1 + $0x1e8] sm:$0xf]
      %v572 = vld [vmem:[%s1 + $0x1ec] sm:$0xf]
      %v573 = vld [vmem:[%s1 + $0x1f0] sm:$0xf]
      %v574 = vld [vmem:[%s1 + $0x1f4] sm:$0xf]
      %v575 = vld [vmem:[%s1 + $0x1f8] sm:$0xf]
      %v576 = vld [vmem:[%s1 + $0x1fc] sm:$0xf]
      %v577 = vunpack.c.l.bf16 %v449
      %v578 = vunpack.c.l.bf16 %v450
      %v579 = vunpack.c.l.bf16 %v451
      %v580 = vunpack.c.l.bf16 %v452
      %v581 = vunpack.c.l.bf16 %v453
      %v582 = vunpack.c.l.bf16 %v454
      %v583 = vunpack.c.l.bf16 %v455
      %v584 = vunpack.c.l.bf16 %v456
      %v585 = vunpack.c.l.bf16 %v457
      %v586 = vunpack.c.l.bf16 %v458
      %v587 = vunpack.c.l.bf16 %v459
      %v588 = vunpack.c.l.bf16 %v460
      %v589 = vunpack.c.l.bf16 %v461
      %v590 = vunpack.c.l.bf16 %v462
      %v591 = vunpack.c.l.bf16 %v463
      %v592 = vunpack.c.l.bf16 %v464
      %v593 = vunpack.c.l.bf16 %v465
      %v594 = vunpack.c.l.bf16 %v466
      %v595 = vunpack.c.l.bf16 %v467
      %v596 = vunpack.c.l.bf16 %v468
      %v597 = vunpack.c.l.bf16 %v469
      %v598 = vunpack.c.l.bf16 %v470
      %v599 = vunpack.c.l.bf16 %v471
      %v600 = vunpack.c.l.bf16 %v472
      %v601 = vunpack.c.l.bf16 %v473
      %v602 = vunpack.c.l.bf16 %v474
      %v603 = vunpack.c.l.bf16 %v475
      %v604 = vunpack.c.l.bf16 %v476
      %v605 = vunpack.c.l.bf16 %v477
      %v606 = vunpack.c.l.bf16 %v478
      %v607 = vunpack.c.l.bf16 %v479
      %v608 = vunpack.c.l.bf16 %v480
      %v609 = vunpack.c.l.bf16 %v481
      %v610 = vunpack.c.l.bf16 %v482
      %v611 = vunpack.c.l.bf16 %v483
      %v612 = vunpack.c.l.bf16 %v484
      %v613 = vunpack.c.l.bf16 %v485
      %v614 = vunpack.c.l.bf16 %v486
      %v615 = vunpack.c.l.bf16 %v487
      %v616 = vunpack.c.l.bf16 %v488
      %v617 = vunpack.c.l.bf16 %v489
      %v618 = vunpack.c.l.bf16 %v490
      %v619 = vunpack.c.l.bf16 %v491
      %v620 = vunpack.c.l.bf16 %v492
      %v621 = vunpack.c.l.bf16 %v493
      %v622 = vunpack.c.l.bf16 %v494
      %v623 = vunpack.c.l.bf16 %v495
      %v624 = vunpack.c.l.bf16 %v496
      %v625 = vunpack.c.l.bf16 %v497
      %v626 = vunpack.c.l.bf16 %v498
      %v627 = vunpack.c.l.bf16 %v499
      %v628 = vunpack.c.l.bf16 %v500
      %v629 = vunpack.c.l.bf16 %v501
      %v630 = vunpack.c.l.bf16 %v502
      %v631 = vunpack.c.l.bf16 %v503
      %v632 = vunpack.c.l.bf16 %v504
      %v633 = vunpack.c.l.bf16 %v505
      %v634 = vunpack.c.l.bf16 %v506
      %v635 = vunpack.c.l.bf16 %v507
      %v636 = vunpack.c.l.bf16 %v508
      %v637 = vunpack.c.l.bf16 %v509
      %v638 = vunpack.c.l.bf16 %v510
      %v639 = vunpack.c.l.bf16 %v511
      %v640 = vunpack.c.l.bf16 %v512
      %v641 = vunpack.c.l.bf16 %v513
      %v642 = vunpack.c.l.bf16 %v514
      %v643 = vunpack.c.l.bf16 %v515
      %v644 = vunpack.c.l.bf16 %v516
      %v645 = vunpack.c.l.bf16 %v517
      %v646 = vunpack.c.l.bf16 %v518
      %v647 = vunpack.c.l.bf16 %v519
      %v648 = vunpack.c.l.bf16 %v520
      %v649 = vunpack.c.l.bf16 %v521
      %v650 = vunpack.c.l.bf16 %v522
      %v651 = vunpack.c.l.bf16 %v523
      %v652 = vunpack.c.l.bf16 %v524
      %v653 = vunpack.c.l.bf16 %v525
      %v654 = vunpack.c.l.bf16 %v526
      %v655 = vunpack.c.l.bf16 %v527
      %v656 = vunpack.c.l.bf16 %v528
      %v657 = vunpack.c.l.bf16 %v529
      %v658 = vunpack.c.l.bf16 %v530
      %v659 = vunpack.c.l.bf16 %v531
      %v660 = vunpack.c.l.bf16 %v532
      %v661 = vunpack.c.l.bf16 %v533
      %v662 = vunpack.c.l.bf16 %v534
      %v663 = vunpack.c.l.bf16 %v535
      %v664 = vunpack.c.l.bf16 %v536
      %v665 = vunpack.c.l.bf16 %v537
      %v666 = vunpack.c.l.bf16 %v538
      %v667 = vunpack.c.l.bf16 %v539
      %v668 = vunpack.c.l.bf16 %v540
      %v669 = vunpack.c.l.bf16 %v541
      %v670 = vunpack.c.l.bf16 %v542
      %v671 = vunpack.c.l.bf16 %v543
      %v672 = vunpack.c.l.bf16 %v544
      %v673 = vunpack.c.l.bf16 %v545
      %v674 = vunpack.c.l.bf16 %v546
      %v675 = vunpack.c.l.bf16 %v547
      %v676 = vunpack.c.l.bf16 %v548
      %v677 = vunpack.c.l.bf16 %v549
      %v678 = vunpack.c.l.bf16 %v550
      %v679 = vunpack.c.l.bf16 %v551
      %v680 = vunpack.c.l.bf16 %v552
      %v681 = vunpack.c.l.bf16 %v553
      %v682 = vunpack.c.l.bf16 %v554
      %v683 = vunpack.c.l.bf16 %v555
      %v684 = vunpack.c.l.bf16 %v556
      %v685 = vunpack.c.l.bf16 %v557
      %v686 = vunpack.c.l.bf16 %v558
      %v687 = vunpack.c.l.bf16 %v559
      %v688 = vunpack.c.l.bf16 %v560
      %v689 = vunpack.c.l.bf16 %v561
      %v690 = vunpack.c.l.bf16 %v562
      %v691 = vunpack.c.l.bf16 %v563
      %v692 = vunpack.c.l.bf16 %v564
      %v693 = vunpack.c.l.bf16 %v565
      %v694 = vunpack.c.l.bf16 %v566
      %v695 = vunpack.c.l.bf16 %v567
      %v696 = vunpack.c.l.bf16 %v568
      %v697 = vunpack.c.l.bf16 %v569
      %v698 = vunpack.c.l.bf16 %v570
      %v699 = vunpack.c.l.bf16 %v571
      %v700 = vunpack.c.l.bf16 %v572
      %v701 = vunpack.c.l.bf16 %v573
      %v702 = vunpack.c.l.bf16 %v574
      %v703 = vunpack.c.l.bf16 %v575
      %v704 = vunpack.c.l.bf16 %v576
      %v706 = vcombine.high %v444, %v444
      %v708 = vunpack.c.l.s4 1966171168
      %v709 = vunpack.c.0.s8 %v708
      %v710 = vlaneseq
      %v711 = vshrl.u32 %v710, 7
      %v712 = vsub.s32 %v709, %v711
      %v713 = vrot.slane %v444, %v712
      %v715 = vunpack.c.l.s4 1966171168
      %v716 = vunpack.c.0.s8 %v715
      %v717 = vlaneseq
      %v718 = vshrl.u32 %v717, 7
      %v719 = vsub.s32 %v716, %v718
      %v720 = vrot.slane %v706, %v719
      %v721 = vcombine.high %v713, %v713
      %v722 = vcombine.high %v720, %v720
      %v724 = vunpack.c.l.s4 1966171168
      %v725 = vunpack.c.0.s8 %v724
      %v726 = vlaneseq
      %v727 = vshrl.u32 %v726, 7
      %v728 = vsub.s32 %v725, %v727
      %v729 = vrot.slane %v713, %v728
      %v731 = vunpack.c.l.s4 1966171168
      %v732 = vunpack.c.0.s8 %v731
      %v733 = vlaneseq
      %v734 = vshrl.u32 %v733, 7
      %v735 = vsub.s32 %v732, %v734
      %v736 = vrot.slane %v720, %v735
      %v738 = vunpack.c.l.s4 1966171168
      %v739 = vunpack.c.0.s8 %v738
      %v740 = vlaneseq
      %v741 = vshrl.u32 %v740, 7
      %v742 = vsub.s32 %v739, %v741
      %v743 = vrot.slane %v721, %v742
      %v745 = vunpack.c.l.s4 1966171168
      %v746 = vunpack.c.0.s8 %v745
      %v747 = vlaneseq
      %v748 = vshrl.u32 %v747, 7
      %v749 = vsub.s32 %v746, %v748
      %v750 = vrot.slane %v722, %v749
      %v751 = vcombine.high %v729, %v729
      %v752 = vcombine.high %v736, %v736
      %v753 = vcombine.high %v743, %v743
      %v754 = vcombine.high %v750, %v750
      %v755 = vlaneseq
      %v756 = vshrl.u32 %v755, 7
      %v757 = vsub.s32 0, %v756
      %v758 = vrot.slane %v729, %v757
      %v759 = vlaneseq
      %v760 = vshrl.u32 %v759, 7
      %v761 = vsub.s32 0, %v760
      %v762 = vrot.slane %v743, %v761
      %v763 = vlaneseq
      %v764 = vshrl.u32 %v763, 7
      %v765 = vsub.s32 0, %v764
      %v766 = vrot.slane %v751, %v765
      %v767 = vlaneseq
      %v768 = vshrl.u32 %v767, 7
      %v769 = vsub.s32 0, %v768
      %v770 = vrot.slane %v753, %v769
      %v771 = vlaneseq
      %v772 = vshrl.u32 %v771, 7
      %v773 = vsub.s32 0, %v772
      %v774 = vrot.slane %v736, %v773
      %v775 = vlaneseq
      %v776 = vshrl.u32 %v775, 7
      %v777 = vsub.s32 0, %v776
      %v778 = vrot.slane %v750, %v777
      %v779 = vlaneseq
      %v780 = vshrl.u32 %v779, 7
      %v781 = vsub.s32 0, %v780
      %v782 = vrot.slane %v752, %v781
      %v783 = vlaneseq
      %v784 = vshrl.u32 %v783, 7
      %v785 = vsub.s32 0, %v784
      %v786 = vrot.slane %v754, %v785
      %v795 = vmul.f32 %v577, %v758
      %v796 = vmul.f32 %v578, %v758
      %v797 = vmul.f32 %v579, %v758
      %v798 = vmul.f32 %v580, %v758
      %v799 = vmul.f32 %v581, %v758
      %v800 = vmul.f32 %v582, %v758
      %v801 = vmul.f32 %v583, %v758
      %v802 = vmul.f32 %v584, %v758
      %v803 = vmul.f32 %v585, %v758
      %v804 = vmul.f32 %v586, %v758
      %v805 = vmul.f32 %v587, %v758
      %v806 = vmul.f32 %v588, %v758
      %v807 = vmul.f32 %v589, %v758
      %v808 = vmul.f32 %v590, %v758
      %v809 = vmul.f32 %v591, %v758
      %v810 = vmul.f32 %v592, %v758
      %v811 = vmul.f32 %v593, %v762
      %v812 = vmul.f32 %v594, %v762
      %v813 = vmul.f32 %v595, %v762
      %v814 = vmul.f32 %v596, %v762
      %v815 = vmul.f32 %v597, %v762
      %v816 = vmul.f32 %v598, %v762
      %v817 = vmul.f32 %v599, %v762
      %v818 = vmul.f32 %v600, %v762
      %v819 = vmul.f32 %v601, %v762
      %v820 = vmul.f32 %v602, %v762
      %v821 = vmul.f32 %v603, %v762
      %v822 = vmul.f32 %v604, %v762
      %v823 = vmul.f32 %v605, %v762
      %v824 = vmul.f32 %v606, %v762
      %v825 = vmul.f32 %v607, %v762
      %v826 = vmul.f32 %v608, %v762
      %v827 = vmul.f32 %v609, %v766
      %v828 = vmul.f32 %v610, %v766
      %v829 = vmul.f32 %v611, %v766
      %v830 = vmul.f32 %v612, %v766
      %v831 = vmul.f32 %v613, %v766
      %v832 = vmul.f32 %v614, %v766
      %v833 = vmul.f32 %v615, %v766
      %v834 = vmul.f32 %v616, %v766
      %v835 = vmul.f32 %v617, %v766
      %v836 = vmul.f32 %v618, %v766
      %v837 = vmul.f32 %v619, %v766
      %v838 = vmul.f32 %v620, %v766
      %v839 = vmul.f32 %v621, %v766
      %v840 = vmul.f32 %v622, %v766
      %v841 = vmul.f32 %v623, %v766
      %v842 = vmul.f32 %v624, %v766
      %v843 = vmul.f32 %v625, %v770
      %v844 = vmul.f32 %v626, %v770
      %v845 = vmul.f32 %v627, %v770
      %v846 = vmul.f32 %v628, %v770
      %v847 = vmul.f32 %v629, %v770
      %v848 = vmul.f32 %v630, %v770
      %v849 = vmul.f32 %v631, %v770
      %v850 = vmul.f32 %v632, %v770
      %v851 = vmul.f32 %v633, %v770
      %v852 = vmul.f32 %v634, %v770
      %v853 = vmul.f32 %v635, %v770
      %v854 = vmul.f32 %v636, %v770
      %v855 = vmul.f32 %v637, %v770
      %v856 = vmul.f32 %v638, %v770
      %v857 = vmul.f32 %v639, %v770
      %v858 = vmul.f32 %v640, %v770
      %v859 = vmul.f32 %v641, %v774
      %v860 = vmul.f32 %v642, %v774
      %v861 = vmul.f32 %v643, %v774
      %v862 = vmul.f32 %v644, %v774
      %v863 = vmul.f32 %v645, %v774
      %v864 = vmul.f32 %v646, %v774
      %v865 = vmul.f32 %v647, %v774
      %v866 = vmul.f32 %v648, %v774
      %v867 = vmul.f32 %v649, %v774
      %v868 = vmul.f32 %v650, %v774
      %v869 = vmul.f32 %v651, %v774
      %v870 = vmul.f32 %v652, %v774
      %v871 = vmul.f32 %v653, %v774
      %v872 = vmul.f32 %v654, %v774
      %v873 = vmul.f32 %v655, %v774
      %v874 = vmul.f32 %v656, %v774
      %v875 = vmul.f32 %v657, %v778
      %v876 = vmul.f32 %v658, %v778
      %v877 = vmul.f32 %v659, %v778
      %v878 = vmul.f32 %v660, %v778
      %v879 = vmul.f32 %v661, %v778
      %v880 = vmul.f32 %v662, %v778
      %v881 = vmul.f32 %v663, %v778
      %v882 = vmul.f32 %v664, %v778
      %v883 = vmul.f32 %v665, %v778
      %v884 = vmul.f32 %v666, %v778
      %v885 = vmul.f32 %v667, %v778
      %v886 = vmul.f32 %v668, %v778
      %v887 = vmul.f32 %v669, %v778
      %v888 = vmul.f32 %v670, %v778
      %v889 = vmul.f32 %v671, %v778
      %v890 = vmul.f32 %v672, %v778
      %v891 = vmul.f32 %v673, %v782
      %v892 = vmul.f32 %v674, %v782
      %v893 = vmul.f32 %v675, %v782
      %v894 = vmul.f32 %v676, %v782
      %v895 = vmul.f32 %v677, %v782
      %v896 = vmul.f32 %v678, %v782
      %v897 = vmul.f32 %v679, %v782
      %v898 = vmul.f32 %v680, %v782
      %v899 = vmul.f32 %v681, %v782
      %v900 = vmul.f32 %v682, %v782
      %v901 = vmul.f32 %v683, %v782
      %v902 = vmul.f32 %v684, %v782
      %v903 = vmul.f32 %v685, %v782
      %v904 = vmul.f32 %v686, %v782
      %v905 = vmul.f32 %v687, %v782
      %v906 = vmul.f32 %v688, %v782
      %v907 = vmul.f32 %v689, %v786
      %v908 = vmul.f32 %v690, %v786
      %v909 = vmul.f32 %v691, %v786
      %v910 = vmul.f32 %v692, %v786
      %v911 = vmul.f32 %v693, %v786
      %v912 = vmul.f32 %v694, %v786
      %v913 = vmul.f32 %v695, %v786
      %v914 = vmul.f32 %v696, %v786
      %v915 = vmul.f32 %v697, %v786
      %v916 = vmul.f32 %v698, %v786
      %v917 = vmul.f32 %v699, %v786
      %v918 = vmul.f32 %v700, %v786
      %v919 = vmul.f32 %v701, %v786
      %v920 = vmul.f32 %v702, %v786
      %v921 = vmul.f32 %v703, %v786
      %v922 = vmul.f32 %v704, %v786
      %v923 = vsel %vm93, %v795, 0.0
      %924 = vadd.xlane.f32.xlu0 %v923
      %v925 = vpop.xlane.xlu0 %924
      %v926 = vsel %vm93, %v796, 0.0
      %927 = vadd.xlane.f32.xlu0 %v926
      %v928 = vpop.xlane.xlu0 %927
      %v929 = vsel %vm93, %v797, 0.0
      %930 = vadd.xlane.f32.xlu0 %v929
      %v931 = vpop.xlane.xlu0 %930
      %v932 = vsel %vm93, %v798, 0.0
      %933 = vadd.xlane.f32.xlu0 %v932
      %v934 = vpop.xlane.xlu0 %933
      %v935 = vsel %vm93, %v799, 0.0
      %936 = vadd.xlane.f32.xlu0 %v935
      %v937 = vpop.xlane.xlu0 %936
      %v938 = vsel %vm93, %v800, 0.0
      %939 = vadd.xlane.f32.xlu0 %v938
      %v940 = vpop.xlane.xlu0 %939
      %v941 = vsel %vm93, %v801, 0.0
      %942 = vadd.xlane.f32.xlu0 %v941
      %v943 = vpop.xlane.xlu0 %942
      %v944 = vsel %vm93, %v802, 0.0
      %945 = vadd.xlane.f32.xlu0 %v944
      %v946 = vpop.xlane.xlu0 %945
      %v947 = vsel %vm93, %v803, 0.0
      %948 = vadd.xlane.f32.xlu0 %v947
      %v949 = vpop.xlane.xlu0 %948
      %v950 = vsel %vm93, %v804, 0.0
      %951 = vadd.xlane.f32.xlu0 %v950
      %v952 = vpop.xlane.xlu0 %951
      %v953 = vsel %vm93, %v805, 0.0
      %954 = vadd.xlane.f32.xlu0 %v953
      %v955 = vpop.xlane.xlu0 %954
      %v956 = vsel %vm93, %v806, 0.0
      %957 = vadd.xlane.f32.xlu0 %v956
      %v958 = vpop.xlane.xlu0 %957
      %v959 = vsel %vm93, %v807, 0.0
      %960 = vadd.xlane.f32.xlu0 %v959
      %v961 = vpop.xlane.xlu0 %960
      %v962 = vsel %vm93, %v808, 0.0
      %963 = vadd.xlane.f32.xlu0 %v962
      %v964 = vpop.xlane.xlu0 %963
      %v965 = vsel %vm93, %v809, 0.0
      %966 = vadd.xlane.f32.xlu0 %v965
      %v967 = vpop.xlane.xlu0 %966
      %v968 = vsel %vm93, %v810, 0.0
      %969 = vadd.xlane.f32.xlu0 %v968
      %v970 = vpop.xlane.xlu0 %969
      %v971 = vsel %vm93, %v811, 0.0
      %972 = vadd.xlane.f32.xlu0 %v971
      %v973 = vpop.xlane.xlu0 %972
      %v974 = vsel %vm93, %v812, 0.0
      %975 = vadd.xlane.f32.xlu0 %v974
      %v976 = vpop.xlane.xlu0 %975
      %v977 = vsel %vm93, %v813, 0.0
      %978 = vadd.xlane.f32.xlu0 %v977
      %v979 = vpop.xlane.xlu0 %978
      %v980 = vsel %vm93, %v814, 0.0
      %981 = vadd.xlane.f32.xlu0 %v980
      %v982 = vpop.xlane.xlu0 %981
      %v983 = vsel %vm93, %v815, 0.0
      %984 = vadd.xlane.f32.xlu0 %v983
      %v985 = vpop.xlane.xlu0 %984
      %v986 = vsel %vm93, %v816, 0.0
      %987 = vadd.xlane.f32.xlu0 %v986
      %v988 = vpop.xlane.xlu0 %987
      %v989 = vsel %vm93, %v817, 0.0
      %990 = vadd.xlane.f32.xlu0 %v989
      %v991 = vpop.xlane.xlu0 %990
      %v992 = vsel %vm93, %v818, 0.0
      %993 = vadd.xlane.f32.xlu0 %v992
      %v994 = vpop.xlane.xlu0 %993
      %v995 = vsel %vm93, %v819, 0.0
      %996 = vadd.xlane.f32.xlu0 %v995
      %v997 = vpop.xlane.xlu0 %996
      %v998 = vsel %vm93, %v820, 0.0
      %999 = vadd.xlane.f32.xlu0 %v998
      %v1000 = vpop.xlane.xlu0 %999
      %v1001 = vsel %vm93, %v821, 0.0
      %1002 = vadd.xlane.f32.xlu0 %v1001
      %v1003 = vpop.xlane.xlu0 %1002
      %v1004 = vsel %vm93, %v822, 0.0
      %1005 = vadd.xlane.f32.xlu0 %v1004
      %v1006 = vpop.xlane.xlu0 %1005
      %v1007 = vsel %vm93, %v823, 0.0
      %1008 = vadd.xlane.f32.xlu0 %v1007
      %v1009 = vpop.xlane.xlu0 %1008
      %v1010 = vsel %vm93, %v824, 0.0
      %1011 = vadd.xlane.f32.xlu0 %v1010
      %v1012 = vpop.xlane.xlu0 %1011
      %v1013 = vsel %vm93, %v825, 0.0
      %1014 = vadd.xlane.f32.xlu0 %v1013
      %v1015 = vpop.xlane.xlu0 %1014
      %v1016 = vsel %vm93, %v826, 0.0
      %1017 = vadd.xlane.f32.xlu0 %v1016
      %v1018 = vpop.xlane.xlu0 %1017
      %v1019 = vsel %vm93, %v827, 0.0
      %1020 = vadd.xlane.f32.xlu0 %v1019
      %v1021 = vpop.xlane.xlu0 %1020
      %v1022 = vsel %vm93, %v828, 0.0
      %1023 = vadd.xlane.f32.xlu0 %v1022
      %v1024 = vpop.xlane.xlu0 %1023
      %v1025 = vsel %vm93, %v829, 0.0
      %1026 = vadd.xlane.f32.xlu0 %v1025
      %v1027 = vpop.xlane.xlu0 %1026
      %v1028 = vsel %vm93, %v830, 0.0
      %1029 = vadd.xlane.f32.xlu0 %v1028
      %v1030 = vpop.xlane.xlu0 %1029
      %v1031 = vsel %vm93, %v831, 0.0
      %1032 = vadd.xlane.f32.xlu0 %v1031
      %v1033 = vpop.xlane.xlu0 %1032
      %v1034 = vsel %vm93, %v832, 0.0
      %1035 = vadd.xlane.f32.xlu0 %v1034
      %v1036 = vpop.xlane.xlu0 %1035
      %v1037 = vsel %vm93, %v833, 0.0
      %1038 = vadd.xlane.f32.xlu0 %v1037
      %v1039 = vpop.xlane.xlu0 %1038
      %v1040 = vsel %vm93, %v834, 0.0
      %1041 = vadd.xlane.f32.xlu0 %v1040
      %v1042 = vpop.xlane.xlu0 %1041
      %v1043 = vsel %vm93, %v835, 0.0
      %1044 = vadd.xlane.f32.xlu0 %v1043
      %v1045 = vpop.xlane.xlu0 %1044
      %v1046 = vsel %vm93, %v836, 0.0
      %1047 = vadd.xlane.f32.xlu0 %v1046
      %v1048 = vpop.xlane.xlu0 %1047
      %v1049 = vsel %vm93, %v837, 0.0
      %1050 = vadd.xlane.f32.xlu0 %v1049
      %v1051 = vpop.xlane.xlu0 %1050
      %v1052 = vsel %vm93, %v838, 0.0
      %1053 = vadd.xlane.f32.xlu0 %v1052
      %v1054 = vpop.xlane.xlu0 %1053
      %v1055 = vsel %vm93, %v839, 0.0
      %1056 = vadd.xlane.f32.xlu0 %v1055
      %v1057 = vpop.xlane.xlu0 %1056
      %v1058 = vsel %vm93, %v840, 0.0
      %1059 = vadd.xlane.f32.xlu0 %v1058
      %v1060 = vpop.xlane.xlu0 %1059
      %v1061 = vsel %vm93, %v841, 0.0
      %1062 = vadd.xlane.f32.xlu0 %v1061
      %v1063 = vpop.xlane.xlu0 %1062
      %v1064 = vsel %vm93, %v842, 0.0
      %1065 = vadd.xlane.f32.xlu0 %v1064
      %v1066 = vpop.xlane.xlu0 %1065
      %v1067 = vsel %vm93, %v843, 0.0
      %1068 = vadd.xlane.f32.xlu0 %v1067
      %v1069 = vpop.xlane.xlu0 %1068
      %v1070 = vsel %vm93, %v844, 0.0
      %1071 = vadd.xlane.f32.xlu0 %v1070
      %v1072 = vpop.xlane.xlu0 %1071
      %v1073 = vsel %vm93, %v845, 0.0
      %1074 = vadd.xlane.f32.xlu0 %v1073
      %v1075 = vpop.xlane.xlu0 %1074
      %v1076 = vsel %vm93, %v846, 0.0
      %1077 = vadd.xlane.f32.xlu0 %v1076
      %v1078 = vpop.xlane.xlu0 %1077
      %v1079 = vsel %vm93, %v847, 0.0
      %1080 = vadd.xlane.f32.xlu0 %v1079
      %v1081 = vpop.xlane.xlu0 %1080
      %v1082 = vsel %vm93, %v848, 0.0
      %1083 = vadd.xlane.f32.xlu0 %v1082
      %v1084 = vpop.xlane.xlu0 %1083
      %v1085 = vsel %vm93, %v849, 0.0
      %1086 = vadd.xlane.f32.xlu0 %v1085
      %v1087 = vpop.xlane.xlu0 %1086
      %v1088 = vsel %vm93, %v850, 0.0
      %1089 = vadd.xlane.f32.xlu0 %v1088
      %v1090 = vpop.xlane.xlu0 %1089
      %v1091 = vsel %vm93, %v851, 0.0
      %1092 = vadd.xlane.f32.xlu0 %v1091
      %v1093 = vpop.xlane.xlu0 %1092
      %v1094 = vsel %vm93, %v852, 0.0
      %1095 = vadd.xlane.f32.xlu0 %v1094
      %v1096 = vpop.xlane.xlu0 %1095
      %v1097 = vsel %vm93, %v853, 0.0
      %1098 = vadd.xlane.f32.xlu0 %v1097
      %v1099 = vpop.xlane.xlu0 %1098
      %v1100 = vsel %vm93, %v854, 0.0
      %1101 = vadd.xlane.f32.xlu0 %v1100
      %v1102 = vpop.xlane.xlu0 %1101
      %v1103 = vsel %vm93, %v855, 0.0
      %1104 = vadd.xlane.f32.xlu0 %v1103
      %v1105 = vpop.xlane.xlu0 %1104
      %v1106 = vsel %vm93, %v856, 0.0
      %1107 = vadd.xlane.f32.xlu0 %v1106
      %v1108 = vpop.xlane.xlu0 %1107
      %v1109 = vsel %vm93, %v857, 0.0
      %1110 = vadd.xlane.f32.xlu0 %v1109
      %v1111 = vpop.xlane.xlu0 %1110
      %v1112 = vsel %vm93, %v858, 0.0
      %1113 = vadd.xlane.f32.xlu0 %v1112
      %v1114 = vpop.xlane.xlu0 %1113
      %v1115 = vsel %vm93, %v859, 0.0
      %1116 = vadd.xlane.f32.xlu0 %v1115
      %v1117 = vpop.xlane.xlu0 %1116
      %v1118 = vsel %vm93, %v860, 0.0
      %1119 = vadd.xlane.f32.xlu0 %v1118
      %v1120 = vpop.xlane.xlu0 %1119
      %v1121 = vsel %vm93, %v861, 0.0
      %1122 = vadd.xlane.f32.xlu0 %v1121
      %v1123 = vpop.xlane.xlu0 %1122
      %v1124 = vsel %vm93, %v862, 0.0
      %1125 = vadd.xlane.f32.xlu0 %v1124
      %v1126 = vpop.xlane.xlu0 %1125
      %v1127 = vsel %vm93, %v863, 0.0
      %1128 = vadd.xlane.f32.xlu0 %v1127
      %v1129 = vpop.xlane.xlu0 %1128
      %v1130 = vsel %vm93, %v864, 0.0
      %1131 = vadd.xlane.f32.xlu0 %v1130
      %v1132 = vpop.xlane.xlu0 %1131
      %v1133 = vsel %vm93, %v865, 0.0
      %1134 = vadd.xlane.f32.xlu0 %v1133
      %v1135 = vpop.xlane.xlu0 %1134
      %v1136 = vsel %vm93, %v866, 0.0
      %1137 = vadd.xlane.f32.xlu0 %v1136
      %v1138 = vpop.xlane.xlu0 %1137
      %v1139 = vsel %vm93, %v867, 0.0
      %1140 = vadd.xlane.f32.xlu0 %v1139
      %v1141 = vpop.xlane.xlu0 %1140
      %v1142 = vsel %vm93, %v868, 0.0
      %1143 = vadd.xlane.f32.xlu0 %v1142
      %v1144 = vpop.xlane.xlu0 %1143
      %v1145 = vsel %vm93, %v869, 0.0
      %1146 = vadd.xlane.f32.xlu0 %v1145
      %v1147 = vpop.xlane.xlu0 %1146
      %v1148 = vsel %vm93, %v870, 0.0
      %1149 = vadd.xlane.f32.xlu0 %v1148
      %v1150 = vpop.xlane.xlu0 %1149
      %v1151 = vsel %vm93, %v871, 0.0
      %1152 = vadd.xlane.f32.xlu0 %v1151
      %v1153 = vpop.xlane.xlu0 %1152
      %v1154 = vsel %vm93, %v872, 0.0
      %1155 = vadd.xlane.f32.xlu0 %v1154
      %v1156 = vpop.xlane.xlu0 %1155
      %v1157 = vsel %vm93, %v873, 0.0
      %1158 = vadd.xlane.f32.xlu0 %v1157
      %v1159 = vpop.xlane.xlu0 %1158
      %v1160 = vsel %vm93, %v874, 0.0
      %1161 = vadd.xlane.f32.xlu0 %v1160
      %v1162 = vpop.xlane.xlu0 %1161
      %v1163 = vsel %vm93, %v875, 0.0
      %1164 = vadd.xlane.f32.xlu0 %v1163
      %v1165 = vpop.xlane.xlu0 %1164
      %v1166 = vsel %vm93, %v876, 0.0
      %1167 = vadd.xlane.f32.xlu0 %v1166
      %v1168 = vpop.xlane.xlu0 %1167
      %v1169 = vsel %vm93, %v877, 0.0
      %1170 = vadd.xlane.f32.xlu0 %v1169
      %v1171 = vpop.xlane.xlu0 %1170
      %v1172 = vsel %vm93, %v878, 0.0
      %1173 = vadd.xlane.f32.xlu0 %v1172
      %v1174 = vpop.xlane.xlu0 %1173
      %v1175 = vsel %vm93, %v879, 0.0
      %1176 = vadd.xlane.f32.xlu0 %v1175
      %v1177 = vpop.xlane.xlu0 %1176
      %v1178 = vsel %vm93, %v880, 0.0
      %1179 = vadd.xlane.f32.xlu0 %v1178
      %v1180 = vpop.xlane.xlu0 %1179
      %v1181 = vsel %vm93, %v881, 0.0
      %1182 = vadd.xlane.f32.xlu0 %v1181
      %v1183 = vpop.xlane.xlu0 %1182
      %v1184 = vsel %vm93, %v882, 0.0
      %1185 = vadd.xlane.f32.xlu0 %v1184
      %v1186 = vpop.xlane.xlu0 %1185
      %v1187 = vsel %vm93, %v883, 0.0
      %1188 = vadd.xlane.f32.xlu0 %v1187
      %v1189 = vpop.xlane.xlu0 %1188
      %v1190 = vsel %vm93, %v884, 0.0
      %1191 = vadd.xlane.f32.xlu0 %v1190
      %v1192 = vpop.xlane.xlu0 %1191
      %v1193 = vsel %vm93, %v885, 0.0
      %1194 = vadd.xlane.f32.xlu0 %v1193
      %v1195 = vpop.xlane.xlu0 %1194
      %v1196 = vsel %vm93, %v886, 0.0
      %1197 = vadd.xlane.f32.xlu0 %v1196
      %v1198 = vpop.xlane.xlu0 %1197
      %v1199 = vsel %vm93, %v887, 0.0
      %1200 = vadd.xlane.f32.xlu0 %v1199
      %v1201 = vpop.xlane.xlu0 %1200
      %v1202 = vsel %vm93, %v888, 0.0
      %1203 = vadd.xlane.f32.xlu0 %v1202
      %v1204 = vpop.xlane.xlu0 %1203
      %v1205 = vsel %vm93, %v889, 0.0
      %1206 = vadd.xlane.f32.xlu0 %v1205
      %v1207 = vpop.xlane.xlu0 %1206
      %v1208 = vsel %vm93, %v890, 0.0
      %1209 = vadd.xlane.f32.xlu0 %v1208
      %v1210 = vpop.xlane.xlu0 %1209
      %v1211 = vsel %vm93, %v891, 0.0
      %1212 = vadd.xlane.f32.xlu0 %v1211
      %v1213 = vpop.xlane.xlu0 %1212
      %v1214 = vsel %vm93, %v892, 0.0
      %1215 = vadd.xlane.f32.xlu0 %v1214
      %v1216 = vpop.xlane.xlu0 %1215
      %v1217 = vsel %vm93, %v893, 0.0
      %1218 = vadd.xlane.f32.xlu0 %v1217
      %v1219 = vpop.xlane.xlu0 %1218
      %v1220 = vsel %vm93, %v894, 0.0
      %1221 = vadd.xlane.f32.xlu0 %v1220
      %v1222 = vpop.xlane.xlu0 %1221
      %v1223 = vsel %vm93, %v895, 0.0
      %1224 = vadd.xlane.f32.xlu0 %v1223
      %v1225 = vpop.xlane.xlu0 %1224
      %v1226 = vsel %vm93, %v896, 0.0
      %1227 = vadd.xlane.f32.xlu0 %v1226
      %v1228 = vpop.xlane.xlu0 %1227
      %v1229 = vsel %vm93, %v897, 0.0
      %1230 = vadd.xlane.f32.xlu0 %v1229
      %v1231 = vpop.xlane.xlu0 %1230
      %v1232 = vsel %vm93, %v898, 0.0
      %1233 = vadd.xlane.f32.xlu0 %v1232
      %v1234 = vpop.xlane.xlu0 %1233
      %v1235 = vsel %vm93, %v899, 0.0
      %1236 = vadd.xlane.f32.xlu0 %v1235
      %v1237 = vpop.xlane.xlu0 %1236
      %v1238 = vsel %vm93, %v900, 0.0
      %1239 = vadd.xlane.f32.xlu0 %v1238
      %v1240 = vpop.xlane.xlu0 %1239
      %v1241 = vsel %vm93, %v901, 0.0
      %1242 = vadd.xlane.f32.xlu0 %v1241
      %v1243 = vpop.xlane.xlu0 %1242
      %v1244 = vsel %vm93, %v902, 0.0
      %1245 = vadd.xlane.f32.xlu0 %v1244
      %v1246 = vpop.xlane.xlu0 %1245
      %v1247 = vsel %vm93, %v903, 0.0
      %1248 = vadd.xlane.f32.xlu0 %v1247
      %v1249 = vpop.xlane.xlu0 %1248
      %v1250 = vsel %vm93, %v904, 0.0
      %1251 = vadd.xlane.f32.xlu0 %v1250
      %v1252 = vpop.xlane.xlu0 %1251
      %v1253 = vsel %vm93, %v905, 0.0
      %1254 = vadd.xlane.f32.xlu0 %v1253
      %v1255 = vpop.xlane.xlu0 %1254
      %v1256 = vsel %vm93, %v906, 0.0
      %1257 = vadd.xlane.f32.xlu0 %v1256
      %v1258 = vpop.xlane.xlu0 %1257
      %v1259 = vsel %vm93, %v907, 0.0
      %1260 = vadd.xlane.f32.xlu0 %v1259
      %v1261 = vpop.xlane.xlu0 %1260
      %v1262 = vsel %vm93, %v908, 0.0
      %1263 = vadd.xlane.f32.xlu0 %v1262
      %v1264 = vpop.xlane.xlu0 %1263
      %v1265 = vsel %vm93, %v909, 0.0
      %1266 = vadd.xlane.f32.xlu0 %v1265
      %v1267 = vpop.xlane.xlu0 %1266
      %v1268 = vsel %vm93, %v910, 0.0
      %1269 = vadd.xlane.f32.xlu0 %v1268
      %v1270 = vpop.xlane.xlu0 %1269
      %v1271 = vsel %vm93, %v911, 0.0
      %1272 = vadd.xlane.f32.xlu0 %v1271
      %v1273 = vpop.xlane.xlu0 %1272
      %v1274 = vsel %vm93, %v912, 0.0
      %1275 = vadd.xlane.f32.xlu0 %v1274
      %v1276 = vpop.xlane.xlu0 %1275
      %v1277 = vsel %vm93, %v913, 0.0
      %1278 = vadd.xlane.f32.xlu0 %v1277
      %v1279 = vpop.xlane.xlu0 %1278
      %v1280 = vsel %vm93, %v914, 0.0
      %1281 = vadd.xlane.f32.xlu0 %v1280
      %v1282 = vpop.xlane.xlu0 %1281
      %v1283 = vsel %vm93, %v915, 0.0
      %1284 = vadd.xlane.f32.xlu0 %v1283
      %v1285 = vpop.xlane.xlu0 %1284
      %v1286 = vsel %vm93, %v916, 0.0
      %1287 = vadd.xlane.f32.xlu0 %v1286
      %v1288 = vpop.xlane.xlu0 %1287
      %v1289 = vsel %vm93, %v917, 0.0
      %1290 = vadd.xlane.f32.xlu0 %v1289
      %v1291 = vpop.xlane.xlu0 %1290
      %v1292 = vsel %vm93, %v918, 0.0
      %1293 = vadd.xlane.f32.xlu0 %v1292
      %v1294 = vpop.xlane.xlu0 %1293
      %v1295 = vsel %vm93, %v919, 0.0
      %1296 = vadd.xlane.f32.xlu0 %v1295
      %v1297 = vpop.xlane.xlu0 %1296
      %v1298 = vsel %vm93, %v920, 0.0
      %1299 = vadd.xlane.f32.xlu0 %v1298
      %v1300 = vpop.xlane.xlu0 %1299
      %v1301 = vsel %vm93, %v921, 0.0
      %1302 = vadd.xlane.f32.xlu0 %v1301
      %v1303 = vpop.xlane.xlu0 %1302
      %v1304 = vsel %vm93, %v922, 0.0
      %1305 = vadd.xlane.f32.xlu0 %v1304
      %v1306 = vpop.xlane.xlu0 %1305
      %v1435 = vlaneseq
      %v1436 = vshrl.u32 %v1435, 7
      %v1437 = vsub.s32 %v53, %v1436
      %v1438 = vrot.slane %v925, %v1437
      %v1439 = vadd.s32 %v53, 4294967288
      %v1440 = vlaneseq
      %v1441 = vshrl.u32 %v1440, 7
      %v1442 = vsub.s32 %v1439, %v1441
      %v1443 = vrot.slane %v928, %v1442
      %vm1444 = vcmask 130112
      %v1445 = vsel %vm1444, %v1443, %v1438
      %v1446 = vadd.s32 %v53, 4294967280
      %v1447 = vlaneseq
      %v1448 = vshrl.u32 %v1447, 7
      %v1449 = vsub.s32 %v1446, %v1448
      %v1450 = vrot.slane %v931, %v1449
      %vm1451 = vcmask 195712
      %v1452 = vsel %vm1451, %v1450, %v1445
      %v1453 = vadd.s32 %v53, 4294967272
      %v1454 = vlaneseq
      %v1455 = vshrl.u32 %v1454, 7
      %v1456 = vsub.s32 %v1453, %v1455
      %v1457 = vrot.slane %v934, %v1456
      %vm1458 = vcmask 261312
      %v1459 = vsel %vm1458, %v1457, %v1452
      %v1460 = vadd.s32 %v53, 4294967264
      %v1461 = vlaneseq
      %v1462 = vshrl.u32 %v1461, 7
      %v1463 = vsub.s32 %v1460, %v1462
      %v1464 = vrot.slane %v937, %v1463
      %vm1465 = vcmask 326912
      %v1466 = vsel %vm1465, %v1464, %v1459
      %v1467 = vadd.s32 %v53, 4294967256
      %v1468 = vlaneseq
      %v1469 = vshrl.u32 %v1468, 7
      %v1470 = vsub.s32 %v1467, %v1469
      %v1471 = vrot.slane %v940, %v1470
      %vm1472 = vcmask 392512
      %v1473 = vsel %vm1472, %v1471, %v1466
      %v1474 = vadd.s32 %v53, 4294967248
      %v1475 = vlaneseq
      %v1476 = vshrl.u32 %v1475, 7
      %v1477 = vsub.s32 %v1474, %v1476
      %v1478 = vrot.slane %v943, %v1477
      %vm1479 = vcmask 458112
      %v1480 = vsel %vm1479, %v1478, %v1473
      %v1481 = vadd.s32 %v53, 4294967240
      %v1482 = vlaneseq
      %v1483 = vshrl.u32 %v1482, 7
      %v1484 = vsub.s32 %v1481, %v1483
      %v1485 = vrot.slane %v946, %v1484
      %vm1486 = vcmask 523712
      %v1487 = vsel %vm1486, %v1485, %v1480
      %v1488 = vadd.s32 %v53, 4294967232
      %v1489 = vlaneseq
      %v1490 = vshrl.u32 %v1489, 7
      %v1491 = vsub.s32 %v1488, %v1490
      %v1492 = vrot.slane %v949, %v1491
      %vm1493 = vcmask 589312
      %v1494 = vsel %vm1493, %v1492, %v1487
      %v1495 = vadd.s32 %v53, 4294967224
      %v1496 = vlaneseq
      %v1497 = vshrl.u32 %v1496, 7
      %v1498 = vsub.s32 %v1495, %v1497
      %v1499 = vrot.slane %v952, %v1498
      %vm1500 = vcmask 654912
      %v1501 = vsel %vm1500, %v1499, %v1494
      %v1502 = vadd.s32 %v53, 4294967216
      %v1503 = vlaneseq
      %v1504 = vshrl.u32 %v1503, 7
      %v1505 = vsub.s32 %v1502, %v1504
      %v1506 = vrot.slane %v955, %v1505
      %vm1507 = vcmask 720512
      %v1508 = vsel %vm1507, %v1506, %v1501
      %v1509 = vadd.s32 %v53, 4294967208
      %v1510 = vlaneseq
      %v1511 = vshrl.u32 %v1510, 7
      %v1512 = vsub.s32 %v1509, %v1511
      %v1513 = vrot.slane %v958, %v1512
      %vm1514 = vcmask 786112
      %v1515 = vsel %vm1514, %v1513, %v1508
      %v1516 = vadd.s32 %v53, 4294967200
      %v1517 = vlaneseq
      %v1518 = vshrl.u32 %v1517, 7
      %v1519 = vsub.s32 %v1516, %v1518
      %v1520 = vrot.slane %v961, %v1519
      %vm1521 = vcmask 851712
      %v1522 = vsel %vm1521, %v1520, %v1515
      %v1523 = vadd.s32 %v53, 4294967192
      %v1524 = vlaneseq
      %v1525 = vshrl.u32 %v1524, 7
      %v1526 = vsub.s32 %v1523, %v1525
      %v1527 = vrot.slane %v964, %v1526
      %vm1528 = vcmask 917312
      %v1529 = vsel %vm1528, %v1527, %v1522
      %v1530 = vadd.s32 %v53, 4294967184
      %v1531 = vlaneseq
      %v1532 = vshrl.u32 %v1531, 7
      %v1533 = vsub.s32 %v1530, %v1532
      %v1534 = vrot.slane %v967, %v1533
      %vm1535 = vcmask 982912
      %v1536 = vsel %vm1535, %v1534, %v1529
      %v1537 = vadd.s32 %v53, 4294967176
      %v1538 = vlaneseq
      %v1539 = vshrl.u32 %v1538, 7
      %v1540 = vsub.s32 %v1537, %v1539
      %v1541 = vrot.slane %v970, %v1540
      %vm1542 = vcmask 1048512
      %v1543 = vsel %vm1542, %v1541, %v1536
      %v1544 = vlaneseq
      %v1545 = vshrl.u32 %v1544, 7
      %v1546 = vsub.s32 %v53, %v1545
      %v1547 = vrot.slane %v973, %v1546
      %v1548 = vlaneseq
      %v1549 = vshrl.u32 %v1548, 7
      %v1550 = vsub.s32 %v1439, %v1549
      %v1551 = vrot.slane %v976, %v1550
      %v1552 = vsel %vm1444, %v1551, %v1547
      %v1553 = vlaneseq
      %v1554 = vshrl.u32 %v1553, 7
      %v1555 = vsub.s32 %v1446, %v1554
      %v1556 = vrot.slane %v979, %v1555
      %v1557 = vsel %vm1451, %v1556, %v1552
      %v1558 = vlaneseq
      %v1559 = vshrl.u32 %v1558, 7
      %v1560 = vsub.s32 %v1453, %v1559
      %v1561 = vrot.slane %v982, %v1560
      %v1562 = vsel %vm1458, %v1561, %v1557
      %v1563 = vlaneseq
      %v1564 = vshrl.u32 %v1563, 7
      %v1565 = vsub.s32 %v1460, %v1564
      %v1566 = vrot.slane %v985, %v1565
      %v1567 = vsel %vm1465, %v1566, %v1562
      %v1568 = vlaneseq
      %v1569 = vshrl.u32 %v1568, 7
      %v1570 = vsub.s32 %v1467, %v1569
      %v1571 = vrot.slane %v988, %v1570
      %v1572 = vsel %vm1472, %v1571, %v1567
      %v1573 = vlaneseq
      %v1574 = vshrl.u32 %v1573, 7
      %v1575 = vsub.s32 %v1474, %v1574
      %v1576 = vrot.slane %v991, %v1575
      %v1577 = vsel %vm1479, %v1576, %v1572
      %v1578 = vlaneseq
      %v1579 = vshrl.u32 %v1578, 7
      %v1580 = vsub.s32 %v1481, %v1579
      %v1581 = vrot.slane %v994, %v1580
      %v1582 = vsel %vm1486, %v1581, %v1577
      %v1583 = vlaneseq
      %v1584 = vshrl.u32 %v1583, 7
      %v1585 = vsub.s32 %v1488, %v1584
      %v1586 = vrot.slane %v997, %v1585
      %v1587 = vsel %vm1493, %v1586, %v1582
      %v1588 = vlaneseq
      %v1589 = vshrl.u32 %v1588, 7
      %v1590 = vsub.s32 %v1495, %v1589
      %v1591 = vrot.slane %v1000, %v1590
      %v1592 = vsel %vm1500, %v1591, %v1587
      %v1593 = vlaneseq
      %v1594 = vshrl.u32 %v1593, 7
      %v1595 = vsub.s32 %v1502, %v1594
      %v1596 = vrot.slane %v1003, %v1595
      %v1597 = vsel %vm1507, %v1596, %v1592
      %v1598 = vlaneseq
      %v1599 = vshrl.u32 %v1598, 7
      %v1600 = vsub.s32 %v1509, %v1599
      %v1601 = vrot.slane %v1006, %v1600
      %v1602 = vsel %vm1514, %v1601, %v1597
      %v1603 = vlaneseq
      %v1604 = vshrl.u32 %v1603, 7
      %v1605 = vsub.s32 %v1516, %v1604
      %v1606 = vrot.slane %v1009, %v1605
      %v1607 = vsel %vm1521, %v1606, %v1602
      %v1608 = vlaneseq
      %v1609 = vshrl.u32 %v1608, 7
      %v1610 = vsub.s32 %v1523, %v1609
      %v1611 = vrot.slane %v1012, %v1610
      %v1612 = vsel %vm1528, %v1611, %v1607
      %v1613 = vlaneseq
      %v1614 = vshrl.u32 %v1613, 7
      %v1615 = vsub.s32 %v1530, %v1614
      %v1616 = vrot.slane %v1015, %v1615
      %v1617 = vsel %vm1535, %v1616, %v1612
      %v1618 = vlaneseq
      %v1619 = vshrl.u32 %v1618, 7
      %v1620 = vsub.s32 %v1537, %v1619
      %v1621 = vrot.slane %v1018, %v1620
      %v1622 = vsel %vm1542, %v1621, %v1617
      %v1623 = vlaneseq
      %v1624 = vshrl.u32 %v1623, 7
      %v1625 = vsub.s32 %v53, %v1624
      %v1626 = vrot.slane %v1021, %v1625
      %v1627 = vlaneseq
      %v1628 = vshrl.u32 %v1627, 7
      %v1629 = vsub.s32 %v1439, %v1628
      %v1630 = vrot.slane %v1024, %v1629
      %v1631 = vsel %vm1444, %v1630, %v1626
      %v1632 = vlaneseq
      %v1633 = vshrl.u32 %v1632, 7
      %v1634 = vsub.s32 %v1446, %v1633
      %v1635 = vrot.slane %v1027, %v1634
      %v1636 = vsel %vm1451, %v1635, %v1631
      %v1637 = vlaneseq
      %v1638 = vshrl.u32 %v1637, 7
      %v1639 = vsub.s32 %v1453, %v1638
      %v1640 = vrot.slane %v1030, %v1639
      %v1641 = vsel %vm1458, %v1640, %v1636
      %v1642 = vlaneseq
      %v1643 = vshrl.u32 %v1642, 7
      %v1644 = vsub.s32 %v1460, %v1643
      %v1645 = vrot.slane %v1033, %v1644
      %v1646 = vsel %vm1465, %v1645, %v1641
      %v1647 = vlaneseq
      %v1648 = vshrl.u32 %v1647, 7
      %v1649 = vsub.s32 %v1467, %v1648
      %v1650 = vrot.slane %v1036, %v1649
      %v1651 = vsel %vm1472, %v1650, %v1646
      %v1652 = vlaneseq
      %v1653 = vshrl.u32 %v1652, 7
      %v1654 = vsub.s32 %v1474, %v1653
      %v1655 = vrot.slane %v1039, %v1654
      %v1656 = vsel %vm1479, %v1655, %v1651
      %v1657 = vlaneseq
      %v1658 = vshrl.u32 %v1657, 7
      %v1659 = vsub.s32 %v1481, %v1658
      %v1660 = vrot.slane %v1042, %v1659
      %v1661 = vsel %vm1486, %v1660, %v1656
      %v1662 = vlaneseq
      %v1663 = vshrl.u32 %v1662, 7
      %v1664 = vsub.s32 %v1488, %v1663
      %v1665 = vrot.slane %v1045, %v1664
      %v1666 = vsel %vm1493, %v1665, %v1661
      %v1667 = vlaneseq
      %v1668 = vshrl.u32 %v1667, 7
      %v1669 = vsub.s32 %v1495, %v1668
      %v1670 = vrot.slane %v1048, %v1669
      %v1671 = vsel %vm1500, %v1670, %v1666
      %v1672 = vlaneseq
      %v1673 = vshrl.u32 %v1672, 7
      %v1674 = vsub.s32 %v1502, %v1673
      %v1675 = vrot.slane %v1051, %v1674
      %v1676 = vsel %vm1507, %v1675, %v1671
      %v1677 = vlaneseq
      %v1678 = vshrl.u32 %v1677, 7
      %v1679 = vsub.s32 %v1509, %v1678
      %v1680 = vrot.slane %v1054, %v1679
      %v1681 = vsel %vm1514, %v1680, %v1676
      %v1682 = vlaneseq
      %v1683 = vshrl.u32 %v1682, 7
      %v1684 = vsub.s32 %v1516, %v1683
      %v1685 = vrot.slane %v1057, %v1684
      %v1686 = vsel %vm1521, %v1685, %v1681
      %v1687 = vlaneseq
      %v1688 = vshrl.u32 %v1687, 7
      %v1689 = vsub.s32 %v1523, %v1688
      %v1690 = vrot.slane %v1060, %v1689
      %v1691 = vsel %vm1528, %v1690, %v1686
      %v1692 = vlaneseq
      %v1693 = vshrl.u32 %v1692, 7
      %v1694 = vsub.s32 %v1530, %v1693
      %v1695 = vrot.slane %v1063, %v1694
      %v1696 = vsel %vm1535, %v1695, %v1691
      %v1697 = vlaneseq
      %v1698 = vshrl.u32 %v1697, 7
      %v1699 = vsub.s32 %v1537, %v1698
      %v1700 = vrot.slane %v1066, %v1699
      %v1701 = vsel %vm1542, %v1700, %v1696
      %v1702 = vlaneseq
      %v1703 = vshrl.u32 %v1702, 7
      %v1704 = vsub.s32 %v53, %v1703
      %v1705 = vrot.slane %v1069, %v1704
      %v1706 = vlaneseq
      %v1707 = vshrl.u32 %v1706, 7
      %v1708 = vsub.s32 %v1439, %v1707
      %v1709 = vrot.slane %v1072, %v1708
      %v1710 = vsel %vm1444, %v1709, %v1705
      %v1711 = vlaneseq
      %v1712 = vshrl.u32 %v1711, 7
      %v1713 = vsub.s32 %v1446, %v1712
      %v1714 = vrot.slane %v1075, %v1713
      %v1715 = vsel %vm1451, %v1714, %v1710
      %v1716 = vlaneseq
      %v1717 = vshrl.u32 %v1716, 7
      %v1718 = vsub.s32 %v1453, %v1717
      %v1719 = vrot.slane %v1078, %v1718
      %v1720 = vsel %vm1458, %v1719, %v1715
      %v1721 = vlaneseq
      %v1722 = vshrl.u32 %v1721, 7
      %v1723 = vsub.s32 %v1460, %v1722
      %v1724 = vrot.slane %v1081, %v1723
      %v1725 = vsel %vm1465, %v1724, %v1720
      %v1726 = vlaneseq
      %v1727 = vshrl.u32 %v1726, 7
      %v1728 = vsub.s32 %v1467, %v1727
      %v1729 = vrot.slane %v1084, %v1728
      %v1730 = vsel %vm1472, %v1729, %v1725
      %v1731 = vlaneseq
      %v1732 = vshrl.u32 %v1731, 7
      %v1733 = vsub.s32 %v1474, %v1732
      %v1734 = vrot.slane %v1087, %v1733
      %v1735 = vsel %vm1479, %v1734, %v1730
      %v1736 = vlaneseq
      %v1737 = vshrl.u32 %v1736, 7
      %v1738 = vsub.s32 %v1481, %v1737
      %v1739 = vrot.slane %v1090, %v1738
      %v1740 = vsel %vm1486, %v1739, %v1735
      %v1741 = vlaneseq
      %v1742 = vshrl.u32 %v1741, 7
      %v1743 = vsub.s32 %v1488, %v1742
      %v1744 = vrot.slane %v1093, %v1743
      %v1745 = vsel %vm1493, %v1744, %v1740
      %v1746 = vlaneseq
      %v1747 = vshrl.u32 %v1746, 7
      %v1748 = vsub.s32 %v1495, %v1747
      %v1749 = vrot.slane %v1096, %v1748
      %v1750 = vsel %vm1500, %v1749, %v1745
      %v1751 = vlaneseq
      %v1752 = vshrl.u32 %v1751, 7
      %v1753 = vsub.s32 %v1502, %v1752
      %v1754 = vrot.slane %v1099, %v1753
      %v1755 = vsel %vm1507, %v1754, %v1750
      %v1756 = vlaneseq
      %v1757 = vshrl.u32 %v1756, 7
      %v1758 = vsub.s32 %v1509, %v1757
      %v1759 = vrot.slane %v1102, %v1758
      %v1760 = vsel %vm1514, %v1759, %v1755
      %v1761 = vlaneseq
      %v1762 = vshrl.u32 %v1761, 7
      %v1763 = vsub.s32 %v1516, %v1762
      %v1764 = vrot.slane %v1105, %v1763
      %v1765 = vsel %vm1521, %v1764, %v1760
      %v1766 = vlaneseq
      %v1767 = vshrl.u32 %v1766, 7
      %v1768 = vsub.s32 %v1523, %v1767
      %v1769 = vrot.slane %v1108, %v1768
      %v1770 = vsel %vm1528, %v1769, %v1765
      %v1771 = vlaneseq
      %v1772 = vshrl.u32 %v1771, 7
      %v1773 = vsub.s32 %v1530, %v1772
      %v1774 = vrot.slane %v1111, %v1773
      %v1775 = vsel %vm1535, %v1774, %v1770
      %v1776 = vlaneseq
      %v1777 = vshrl.u32 %v1776, 7
      %v1778 = vsub.s32 %v1537, %v1777
      %v1779 = vrot.slane %v1114, %v1778
      %v1780 = vsel %vm1542, %v1779, %v1775
      %v1781 = vlaneseq
      %v1782 = vshrl.u32 %v1781, 7
      %v1783 = vsub.s32 %v53, %v1782
      %v1784 = vrot.slane %v1117, %v1783
      %v1785 = vlaneseq
      %v1786 = vshrl.u32 %v1785, 7
      %v1787 = vsub.s32 %v1439, %v1786
      %v1788 = vrot.slane %v1120, %v1787
      %v1789 = vsel %vm1444, %v1788, %v1784
      %v1790 = vlaneseq
      %v1791 = vshrl.u32 %v1790, 7
      %v1792 = vsub.s32 %v1446, %v1791
      %v1793 = vrot.slane %v1123, %v1792
      %v1794 = vsel %vm1451, %v1793, %v1789
      %v1795 = vlaneseq
      %v1796 = vshrl.u32 %v1795, 7
      %v1797 = vsub.s32 %v1453, %v1796
      %v1798 = vrot.slane %v1126, %v1797
      %v1799 = vsel %vm1458, %v1798, %v1794
      %v1800 = vlaneseq
      %v1801 = vshrl.u32 %v1800, 7
      %v1802 = vsub.s32 %v1460, %v1801
      %v1803 = vrot.slane %v1129, %v1802
      %v1804 = vsel %vm1465, %v1803, %v1799
      %v1805 = vlaneseq
      %v1806 = vshrl.u32 %v1805, 7
      %v1807 = vsub.s32 %v1467, %v1806
      %v1808 = vrot.slane %v1132, %v1807
      %v1809 = vsel %vm1472, %v1808, %v1804
      %v1810 = vlaneseq
      %v1811 = vshrl.u32 %v1810, 7
      %v1812 = vsub.s32 %v1474, %v1811
      %v1813 = vrot.slane %v1135, %v1812
      %v1814 = vsel %vm1479, %v1813, %v1809
      %v1815 = vlaneseq
      %v1816 = vshrl.u32 %v1815, 7
      %v1817 = vsub.s32 %v1481, %v1816
      %v1818 = vrot.slane %v1138, %v1817
      %v1819 = vsel %vm1486, %v1818, %v1814
      %v1820 = vlaneseq
      %v1821 = vshrl.u32 %v1820, 7
      %v1822 = vsub.s32 %v1488, %v1821
      %v1823 = vrot.slane %v1141, %v1822
      %v1824 = vsel %vm1493, %v1823, %v1819
      %v1825 = vlaneseq
      %v1826 = vshrl.u32 %v1825, 7
      %v1827 = vsub.s32 %v1495, %v1826
      %v1828 = vrot.slane %v1144, %v1827
      %v1829 = vsel %vm1500, %v1828, %v1824
      %v1830 = vlaneseq
      %v1831 = vshrl.u32 %v1830, 7
      %v1832 = vsub.s32 %v1502, %v1831
      %v1833 = vrot.slane %v1147, %v1832
      %v1834 = vsel %vm1507, %v1833, %v1829
      %v1835 = vlaneseq
      %v1836 = vshrl.u32 %v1835, 7
      %v1837 = vsub.s32 %v1509, %v1836
      %v1838 = vrot.slane %v1150, %v1837
      %v1839 = vsel %vm1514, %v1838, %v1834
      %v1840 = vlaneseq
      %v1841 = vshrl.u32 %v1840, 7
      %v1842 = vsub.s32 %v1516, %v1841
      %v1843 = vrot.slane %v1153, %v1842
      %v1844 = vsel %vm1521, %v1843, %v1839
      %v1845 = vlaneseq
      %v1846 = vshrl.u32 %v1845, 7
      %v1847 = vsub.s32 %v1523, %v1846
      %v1848 = vrot.slane %v1156, %v1847
      %v1849 = vsel %vm1528, %v1848, %v1844
      %v1850 = vlaneseq
      %v1851 = vshrl.u32 %v1850, 7
      %v1852 = vsub.s32 %v1530, %v1851
      %v1853 = vrot.slane %v1159, %v1852
      %v1854 = vsel %vm1535, %v1853, %v1849
      %v1855 = vlaneseq
      %v1856 = vshrl.u32 %v1855, 7
      %v1857 = vsub.s32 %v1537, %v1856
      %v1858 = vrot.slane %v1162, %v1857
      %v1859 = vsel %vm1542, %v1858, %v1854
      %v1860 = vlaneseq
      %v1861 = vshrl.u32 %v1860, 7
      %v1862 = vsub.s32 %v53, %v1861
      %v1863 = vrot.slane %v1165, %v1862
      %v1864 = vlaneseq
      %v1865 = vshrl.u32 %v1864, 7
      %v1866 = vsub.s32 %v1439, %v1865
      %v1867 = vrot.slane %v1168, %v1866
      %v1868 = vsel %vm1444, %v1867, %v1863
      %v1869 = vlaneseq
      %v1870 = vshrl.u32 %v1869, 7
      %v1871 = vsub.s32 %v1446, %v1870
      %v1872 = vrot.slane %v1171, %v1871
      %v1873 = vsel %vm1451, %v1872, %v1868
      %v1874 = vlaneseq
      %v1875 = vshrl.u32 %v1874, 7
      %v1876 = vsub.s32 %v1453, %v1875
      %v1877 = vrot.slane %v1174, %v1876
      %v1878 = vsel %vm1458, %v1877, %v1873
      %v1879 = vlaneseq
      %v1880 = vshrl.u32 %v1879, 7
      %v1881 = vsub.s32 %v1460, %v1880
      %v1882 = vrot.slane %v1177, %v1881
      %v1883 = vsel %vm1465, %v1882, %v1878
      %v1884 = vlaneseq
      %v1885 = vshrl.u32 %v1884, 7
      %v1886 = vsub.s32 %v1467, %v1885
      %v1887 = vrot.slane %v1180, %v1886
      %v1888 = vsel %vm1472, %v1887, %v1883
      %v1889 = vlaneseq
      %v1890 = vshrl.u32 %v1889, 7
      %v1891 = vsub.s32 %v1474, %v1890
      %v1892 = vrot.slane %v1183, %v1891
      %v1893 = vsel %vm1479, %v1892, %v1888
      %v1894 = vlaneseq
      %v1895 = vshrl.u32 %v1894, 7
      %v1896 = vsub.s32 %v1481, %v1895
      %v1897 = vrot.slane %v1186, %v1896
      %v1898 = vsel %vm1486, %v1897, %v1893
      %v1899 = vlaneseq
      %v1900 = vshrl.u32 %v1899, 7
      %v1901 = vsub.s32 %v1488, %v1900
      %v1902 = vrot.slane %v1189, %v1901
      %v1903 = vsel %vm1493, %v1902, %v1898
      %v1904 = vlaneseq
      %v1905 = vshrl.u32 %v1904, 7
      %v1906 = vsub.s32 %v1495, %v1905
      %v1907 = vrot.slane %v1192, %v1906
      %v1908 = vsel %vm1500, %v1907, %v1903
      %v1909 = vlaneseq
      %v1910 = vshrl.u32 %v1909, 7
      %v1911 = vsub.s32 %v1502, %v1910
      %v1912 = vrot.slane %v1195, %v1911
      %v1913 = vsel %vm1507, %v1912, %v1908
      %v1914 = vlaneseq
      %v1915 = vshrl.u32 %v1914, 7
      %v1916 = vsub.s32 %v1509, %v1915
      %v1917 = vrot.slane %v1198, %v1916
      %v1918 = vsel %vm1514, %v1917, %v1913
      %v1919 = vlaneseq
      %v1920 = vshrl.u32 %v1919, 7
      %v1921 = vsub.s32 %v1516, %v1920
      %v1922 = vrot.slane %v1201, %v1921
      %v1923 = vsel %vm1521, %v1922, %v1918
      %v1924 = vlaneseq
      %v1925 = vshrl.u32 %v1924, 7
      %v1926 = vsub.s32 %v1523, %v1925
      %v1927 = vrot.slane %v1204, %v1926
      %v1928 = vsel %vm1528, %v1927, %v1923
      %v1929 = vlaneseq
      %v1930 = vshrl.u32 %v1929, 7
      %v1931 = vsub.s32 %v1530, %v1930
      %v1932 = vrot.slane %v1207, %v1931
      %v1933 = vsel %vm1535, %v1932, %v1928
      %v1934 = vlaneseq
      %v1935 = vshrl.u32 %v1934, 7
      %v1936 = vsub.s32 %v1537, %v1935
      %v1937 = vrot.slane %v1210, %v1936
      %v1938 = vsel %vm1542, %v1937, %v1933
      %v1939 = vlaneseq
      %v1940 = vshrl.u32 %v1939, 7
      %v1941 = vsub.s32 %v53, %v1940
      %v1942 = vrot.slane %v1213, %v1941
      %v1943 = vlaneseq
      %v1944 = vshrl.u32 %v1943, 7
      %v1945 = vsub.s32 %v1439, %v1944
      %v1946 = vrot.slane %v1216, %v1945
      %v1947 = vsel %vm1444, %v1946, %v1942
      %v1948 = vlaneseq
      %v1949 = vshrl.u32 %v1948, 7
      %v1950 = vsub.s32 %v1446, %v1949
      %v1951 = vrot.slane %v1219, %v1950
      %v1952 = vsel %vm1451, %v1951, %v1947
      %v1953 = vlaneseq
      %v1954 = vshrl.u32 %v1953, 7
      %v1955 = vsub.s32 %v1453, %v1954
      %v1956 = vrot.slane %v1222, %v1955
      %v1957 = vsel %vm1458, %v1956, %v1952
      %v1958 = vlaneseq
      %v1959 = vshrl.u32 %v1958, 7
      %v1960 = vsub.s32 %v1460, %v1959
      %v1961 = vrot.slane %v1225, %v1960
      %v1962 = vsel %vm1465, %v1961, %v1957
      %v1963 = vlaneseq
      %v1964 = vshrl.u32 %v1963, 7
      %v1965 = vsub.s32 %v1467, %v1964
      %v1966 = vrot.slane %v1228, %v1965
      %v1967 = vsel %vm1472, %v1966, %v1962
      %v1968 = vlaneseq
      %v1969 = vshrl.u32 %v1968, 7
      %v1970 = vsub.s32 %v1474, %v1969
      %v1971 = vrot.slane %v1231, %v1970
      %v1972 = vsel %vm1479, %v1971, %v1967
      %v1973 = vlaneseq
      %v1974 = vshrl.u32 %v1973, 7
      %v1975 = vsub.s32 %v1481, %v1974
      %v1976 = vrot.slane %v1234, %v1975
      %v1977 = vsel %vm1486, %v1976, %v1972
      %v1978 = vlaneseq
      %v1979 = vshrl.u32 %v1978, 7
      %v1980 = vsub.s32 %v1488, %v1979
      %v1981 = vrot.slane %v1237, %v1980
      %v1982 = vsel %vm1493, %v1981, %v1977
      %v1983 = vlaneseq
      %v1984 = vshrl.u32 %v1983, 7
      %v1985 = vsub.s32 %v1495, %v1984
      %v1986 = vrot.slane %v1240, %v1985
      %v1987 = vsel %vm1500, %v1986, %v1982
      %v1988 = vlaneseq
      %v1989 = vshrl.u32 %v1988, 7
      %v1990 = vsub.s32 %v1502, %v1989
      %v1991 = vrot.slane %v1243, %v1990
      %v1992 = vsel %vm1507, %v1991, %v1987
      %v1993 = vlaneseq
      %v1994 = vshrl.u32 %v1993, 7
      %v1995 = vsub.s32 %v1509, %v1994
      %v1996 = vrot.slane %v1246, %v1995
      %v1997 = vsel %vm1514, %v1996, %v1992
      %v1998 = vlaneseq
      %v1999 = vshrl.u32 %v1998, 7
      %v2000 = vsub.s32 %v1516, %v1999
      %v2001 = vrot.slane %v1249, %v2000
      %v2002 = vsel %vm1521, %v2001, %v1997
      %v2003 = vlaneseq
      %v2004 = vshrl.u32 %v2003, 7
      %v2005 = vsub.s32 %v1523, %v2004
      %v2006 = vrot.slane %v1252, %v2005
      %v2007 = vsel %vm1528, %v2006, %v2002
      %v2008 = vlaneseq
      %v2009 = vshrl.u32 %v2008, 7
      %v2010 = vsub.s32 %v1530, %v2009
      %v2011 = vrot.slane %v1255, %v2010
      %v2012 = vsel %vm1535, %v2011, %v2007
      %v2013 = vlaneseq
      %v2014 = vshrl.u32 %v2013, 7
      %v2015 = vsub.s32 %v1537, %v2014
      %v2016 = vrot.slane %v1258, %v2015
      %v2017 = vsel %vm1542, %v2016, %v2012
      %v2018 = vlaneseq
      %v2019 = vshrl.u32 %v2018, 7
      %v2020 = vsub.s32 %v53, %v2019
      %v2021 = vrot.slane %v1261, %v2020
      %v2022 = vlaneseq
      %v2023 = vshrl.u32 %v2022, 7
      %v2024 = vsub.s32 %v1439, %v2023
      %v2025 = vrot.slane %v1264, %v2024
      %v2026 = vsel %vm1444, %v2025, %v2021
      %v2027 = vlaneseq
      %v2028 = vshrl.u32 %v2027, 7
      %v2029 = vsub.s32 %v1446, %v2028
      %v2030 = vrot.slane %v1267, %v2029
      %v2031 = vsel %vm1451, %v2030, %v2026
      %v2032 = vlaneseq
      %v2033 = vshrl.u32 %v2032, 7
      %v2034 = vsub.s32 %v1453, %v2033
      %v2035 = vrot.slane %v1270, %v2034
      %v2036 = vsel %vm1458, %v2035, %v2031
      %v2037 = vlaneseq
      %v2038 = vshrl.u32 %v2037, 7
      %v2039 = vsub.s32 %v1460, %v2038
      %v2040 = vrot.slane %v1273, %v2039
      %v2041 = vsel %vm1465, %v2040, %v2036
      %v2042 = vlaneseq
      %v2043 = vshrl.u32 %v2042, 7
      %v2044 = vsub.s32 %v1467, %v2043
      %v2045 = vrot.slane %v1276, %v2044
      %v2046 = vsel %vm1472, %v2045, %v2041
      %v2047 = vlaneseq
      %v2048 = vshrl.u32 %v2047, 7
      %v2049 = vsub.s32 %v1474, %v2048
      %v2050 = vrot.slane %v1279, %v2049
      %v2051 = vsel %vm1479, %v2050, %v2046
      %v2052 = vlaneseq
      %v2053 = vshrl.u32 %v2052, 7
      %v2054 = vsub.s32 %v1481, %v2053
      %v2055 = vrot.slane %v1282, %v2054
      %v2056 = vsel %vm1486, %v2055, %v2051
      %v2057 = vlaneseq
      %v2058 = vshrl.u32 %v2057, 7
      %v2059 = vsub.s32 %v1488, %v2058
      %v2060 = vrot.slane %v1285, %v2059
      %v2061 = vsel %vm1493, %v2060, %v2056
      %v2062 = vlaneseq
      %v2063 = vshrl.u32 %v2062, 7
      %v2064 = vsub.s32 %v1495, %v2063
      %v2065 = vrot.slane %v1288, %v2064
      %v2066 = vsel %vm1500, %v2065, %v2061
      %v2067 = vlaneseq
      %v2068 = vshrl.u32 %v2067, 7
      %v2069 = vsub.s32 %v1502, %v2068
      %v2070 = vrot.slane %v1291, %v2069
      %v2071 = vsel %vm1507, %v2070, %v2066
      %v2072 = vlaneseq
      %v2073 = vshrl.u32 %v2072, 7
      %v2074 = vsub.s32 %v1509, %v2073
      %v2075 = vrot.slane %v1294, %v2074
      %v2076 = vsel %vm1514, %v2075, %v2071
      %v2077 = vlaneseq
      %v2078 = vshrl.u32 %v2077, 7
      %v2079 = vsub.s32 %v1516, %v2078
      %v2080 = vrot.slane %v1297, %v2079
      %v2081 = vsel %vm1521, %v2080, %v2076
      %v2082 = vlaneseq
      %v2083 = vshrl.u32 %v2082, 7
      %v2084 = vsub.s32 %v1523, %v2083
      %v2085 = vrot.slane %v1300, %v2084
      %v2086 = vsel %vm1528, %v2085, %v2081
      %v2087 = vlaneseq
      %v2088 = vshrl.u32 %v2087, 7
      %v2089 = vsub.s32 %v1530, %v2088
      %v2090 = vrot.slane %v1303, %v2089
      %v2091 = vsel %vm1535, %v2090, %v2086
      %v2092 = vlaneseq
      %v2093 = vshrl.u32 %v2092, 7
      %v2094 = vsub.s32 %v1537, %v2093
      %v2095 = vrot.slane %v1306, %v2094
      %v2096 = vsel %vm1542, %v2095, %v2091
      %vm2097 = vcmask 1041409
      %v2098 = vsel %vm2097, %v1622, %v1543
      %vm2099 = vcmask 1042434
      %v2100 = vsel %vm2099, %v1701, %v2098
      %vm2101 = vcmask 1043459
      %v2102 = vsel %vm2101, %v1780, %v2100
      %vm2103 = vcmask 1044484
      %v2104 = vsel %vm2103, %v1859, %v2102
      %vm2105 = vcmask 1045509
      %v2106 = vsel %vm2105, %v1938, %v2104
      %vm2107 = vcmask 1046534
      %v2108 = vsel %vm2107, %v2017, %v2106
      %vm2109 = vcmask 1047559
      %v2110 = vsel %vm2109, %v2096, %v2108
      %v2112 = vsel %vm54, %v2110, -inf
      %2113 = vmax.xlane.f32.xlu0 %v2112
      %v2114 = vpop.xlane.xlu0 %2113
      %v2115 = vsub.f32 %v2112, %v2114
      %v2116 = vmul.f32 %v2115, 1.442695
      %v2117 = vpow.pop %v2116
      %2118 = vadd.xlane.f32.xlu0 %v2117
      %v2119 = vpop.xlane.xlu0 %2118
      %v2120 = vrcp.pop %v2119
      %v2121 = vmul.f32 %v2117, %v2120
      %v2122 = vlaneseq
      %v2123 = vshrl.u32 %v2122, 7
      %v2124 = vsub.s32 0, %v2123
      %v2125 = vrot.slane %v2121, %v2124
      %2127 = vbcast.lane.b32.xlu0 %v2125, 256
      %v2128 = vpop.permute.xlu0 %2127
      %s2130 = sor.u32 256, 8
      %2131 = vbcast.lane.b32.xlu0 %v2125, %s2130
      %v2132 = vpop.permute.xlu0 %2131
      %s2134 = sor.u32 256, 16
      %2135 = vbcast.lane.b32.xlu0 %v2125, %s2134
      %v2136 = vpop.permute.xlu0 %2135
      %s2138 = sor.u32 256, 24
      %2139 = vbcast.lane.b32.xlu0 %v2125, %s2138
      %v2140 = vpop.permute.xlu0 %2139
      %s2142 = sor.u32 256, 32
      %2143 = vbcast.lane.b32.xlu0 %v2125, %s2142
      %v2144 = vpop.permute.xlu0 %2143
      %s2146 = sor.u32 256, 40
      %2147 = vbcast.lane.b32.xlu0 %v2125, %s2146
      %v2148 = vpop.permute.xlu0 %2147
      %s2150 = sor.u32 256, 48
      %2151 = vbcast.lane.b32.xlu0 %v2125, %s2150
      %v2152 = vpop.permute.xlu0 %2151
      %s2154 = sor.u32 256, 56
      %2155 = vbcast.lane.b32.xlu0 %v2125, %s2154
      %v2156 = vpop.permute.xlu0 %2155
      %s2158 = sor.u32 256, 64
      %2159 = vbcast.lane.b32.xlu0 %v2125, %s2158
      %v2160 = vpop.permute.xlu0 %2159
      %s2162 = sor.u32 256, 72
      %2163 = vbcast.lane.b32.xlu0 %v2125, %s2162
      %v2164 = vpop.permute.xlu0 %2163
      %s2166 = sor.u32 256, 80
      %2167 = vbcast.lane.b32.xlu0 %v2125, %s2166
      %v2168 = vpop.permute.xlu0 %2167
      %s2170 = sor.u32 256, 88
      %2171 = vbcast.lane.b32.xlu0 %v2125, %s2170
      %v2172 = vpop.permute.xlu0 %2171
      %s2174 = sor.u32 256, 96
      %2175 = vbcast.lane.b32.xlu0 %v2125, %s2174
      %v2176 = vpop.permute.xlu0 %2175
      %s2178 = sor.u32 256, 104
      %2179 = vbcast.lane.b32.xlu0 %v2125, %s2178
      %v2180 = vpop.permute.xlu0 %2179
      %s2182 = sor.u32 256, 112
      %2183 = vbcast.lane.b32.xlu0 %v2125, %s2182
      %v2184 = vpop.permute.xlu0 %2183
      %s2186 = sor.u32 256, 120
      %2187 = vbcast.lane.b32.xlu0 %v2125, %s2186
      %v2188 = vpop.permute.xlu0 %2187
      %v2189 = vlaneseq
      %v2190 = vshrl.u32 %v2189, 7
      %v2191 = vsub.s32 1, %v2190
      %v2192 = vrot.slane %v2121, %v2191
      %2194 = vbcast.lane.b32.xlu0 %v2192, 256
      %v2195 = vpop.permute.xlu0 %2194
      %s2197 = sor.u32 256, 8
      %2198 = vbcast.lane.b32.xlu0 %v2192, %s2197
      %v2199 = vpop.permute.xlu0 %2198
      %s2201 = sor.u32 256, 16
      %2202 = vbcast.lane.b32.xlu0 %v2192, %s2201
      %v2203 = vpop.permute.xlu0 %2202
      %s2205 = sor.u32 256, 24
      %2206 = vbcast.lane.b32.xlu0 %v2192, %s2205
      %v2207 = vpop.permute.xlu0 %2206
      %s2209 = sor.u32 256, 32
      %2210 = vbcast.lane.b32.xlu0 %v2192, %s2209
      %v2211 = vpop.permute.xlu0 %2210
      %s2213 = sor.u32 256, 40
      %2214 = vbcast.lane.b32.xlu0 %v2192, %s2213
      %v2215 = vpop.permute.xlu0 %2214
      %s2217 = sor.u32 256, 48
      %2218 = vbcast.lane.b32.xlu0 %v2192, %s2217
      %v2219 = vpop.permute.xlu0 %2218
      %s2221 = sor.u32 256, 56
      %2222 = vbcast.lane.b32.xlu0 %v2192, %s2221
      %v2223 = vpop.permute.xlu0 %2222
      %s2225 = sor.u32 256, 64
      %2226 = vbcast.lane.b32.xlu0 %v2192, %s2225
      %v2227 = vpop.permute.xlu0 %2226
      %s2229 = sor.u32 256, 72
      %2230 = vbcast.lane.b32.xlu0 %v2192, %s2229
      %v2231 = vpop.permute.xlu0 %2230
      %s2233 = sor.u32 256, 80
      %2234 = vbcast.lane.b32.xlu0 %v2192, %s2233
      %v2235 = vpop.permute.xlu0 %2234
      %s2237 = sor.u32 256, 88
      %2238 = vbcast.lane.b32.xlu0 %v2192, %s2237
      %v2239 = vpop.permute.xlu0 %2238
      %s2241 = sor.u32 256, 96
      %2242 = vbcast.lane.b32.xlu0 %v2192, %s2241
      %v2243 = vpop.permute.xlu0 %2242
      %s2245 = sor.u32 256, 104
      %2246 = vbcast.lane.b32.xlu0 %v2192, %s2245
      %v2247 = vpop.permute.xlu0 %2246
      %s2249 = sor.u32 256, 112
      %2250 = vbcast.lane.b32.xlu0 %v2192, %s2249
      %v2251 = vpop.permute.xlu0 %2250
      %s2253 = sor.u32 256, 120
      %2254 = vbcast.lane.b32.xlu0 %v2192, %s2253
      %v2255 = vpop.permute.xlu0 %2254
      %v2256 = vlaneseq
      %v2257 = vshrl.u32 %v2256, 7
      %v2258 = vsub.s32 2, %v2257
      %v2259 = vrot.slane %v2121, %v2258
      %2261 = vbcast.lane.b32.xlu0 %v2259, 256
      %v2262 = vpop.permute.xlu0 %2261
      %s2264 = sor.u32 256, 8
      %2265 = vbcast.lane.b32.xlu0 %v2259, %s2264
      %v2266 = vpop.permute.xlu0 %2265
      %s2268 = sor.u32 256, 16
      %2269 = vbcast.lane.b32.xlu0 %v2259, %s2268
      %v2270 = vpop.permute.xlu0 %2269
      %s2272 = sor.u32 256, 24
      %2273 = vbcast.lane.b32.xlu0 %v2259, %s2272
      %v2274 = vpop.permute.xlu0 %2273
      %s2276 = sor.u32 256, 32
      %2277 = vbcast.lane.b32.xlu0 %v2259, %s2276
      %v2278 = vpop.permute.xlu0 %2277
      %s2280 = sor.u32 256, 40
      %2281 = vbcast.lane.b32.xlu0 %v2259, %s2280
      %v2282 = vpop.permute.xlu0 %2281
      %s2284 = sor.u32 256, 48
      %2285 = vbcast.lane.b32.xlu0 %v2259, %s2284
      %v2286 = vpop.permute.xlu0 %2285
      %s2288 = sor.u32 256, 56
      %2289 = vbcast.lane.b32.xlu0 %v2259, %s2288
      %v2290 = vpop.permute.xlu0 %2289
      %s2292 = sor.u32 256, 64
      %2293 = vbcast.lane.b32.xlu0 %v2259, %s2292
      %v2294 = vpop.permute.xlu0 %2293
      %s2296 = sor.u32 256, 72
      %2297 = vbcast.lane.b32.xlu0 %v2259, %s2296
      %v2298 = vpop.permute.xlu0 %2297
      %s2300 = sor.u32 256, 80
      %2301 = vbcast.lane.b32.xlu0 %v2259, %s2300
      %v2302 = vpop.permute.xlu0 %2301
      %s2304 = sor.u32 256, 88
      %2305 = vbcast.lane.b32.xlu0 %v2259, %s2304
      %v2306 = vpop.permute.xlu0 %2305
      %s2308 = sor.u32 256, 96
      %2309 = vbcast.lane.b32.xlu0 %v2259, %s2308
      %v2310 = vpop.permute.xlu0 %2309
      %s2312 = sor.u32 256, 104
      %2313 = vbcast.lane.b32.xlu0 %v2259, %s2312
      %v2314 = vpop.permute.xlu0 %2313
      %s2316 = sor.u32 256, 112
      %2317 = vbcast.lane.b32.xlu0 %v2259, %s2316
      %v2318 = vpop.permute.xlu0 %2317
      %s2320 = sor.u32 256, 120
      %2321 = vbcast.lane.b32.xlu0 %v2259, %s2320
      %v2322 = vpop.permute.xlu0 %2321
      %v2323 = vlaneseq
      %v2324 = vshrl.u32 %v2323, 7
      %v2325 = vsub.s32 3, %v2324
      %v2326 = vrot.slane %v2121, %v2325
      %2328 = vbcast.lane.b32.xlu0 %v2326, 256
      %v2329 = vpop.permute.xlu0 %2328
      %s2331 = sor.u32 256, 8
      %2332 = vbcast.lane.b32.xlu0 %v2326, %s2331
      %v2333 = vpop.permute.xlu0 %2332
      %s2335 = sor.u32 256, 16
      %2336 = vbcast.lane.b32.xlu0 %v2326, %s2335
      %v2337 = vpop.permute.xlu0 %2336
      %s2339 = sor.u32 256, 24
      %2340 = vbcast.lane.b32.xlu0 %v2326, %s2339
      %v2341 = vpop.permute.xlu0 %2340
      %s2343 = sor.u32 256, 32
      %2344 = vbcast.lane.b32.xlu0 %v2326, %s2343
      %v2345 = vpop.permute.xlu0 %2344
      %s2347 = sor.u32 256, 40
      %2348 = vbcast.lane.b32.xlu0 %v2326, %s2347
      %v2349 = vpop.permute.xlu0 %2348
      %s2351 = sor.u32 256, 48
      %2352 = vbcast.lane.b32.xlu0 %v2326, %s2351
      %v2353 = vpop.permute.xlu0 %2352
      %s2355 = sor.u32 256, 56
      %2356 = vbcast.lane.b32.xlu0 %v2326, %s2355
      %v2357 = vpop.permute.xlu0 %2356
      %s2359 = sor.u32 256, 64
      %2360 = vbcast.lane.b32.xlu0 %v2326, %s2359
      %v2361 = vpop.permute.xlu0 %2360
      %s2363 = sor.u32 256, 72
      %2364 = vbcast.lane.b32.xlu0 %v2326, %s2363
      %v2365 = vpop.permute.xlu0 %2364
      %s2367 = sor.u32 256, 80
      %2368 = vbcast.lane.b32.xlu0 %v2326, %s2367
      %v2369 = vpop.permute.xlu0 %2368
      %s2371 = sor.u32 256, 88
      %2372 = vbcast.lane.b32.xlu0 %v2326, %s2371
      %v2373 = vpop.permute.xlu0 %2372
      %s2375 = sor.u32 256, 96
      %2376 = vbcast.lane.b32.xlu0 %v2326, %s2375
      %v2377 = vpop.permute.xlu0 %2376
      %s2379 = sor.u32 256, 104
      %2380 = vbcast.lane.b32.xlu0 %v2326, %s2379
      %v2381 = vpop.permute.xlu0 %2380
      %s2383 = sor.u32 256, 112
      %2384 = vbcast.lane.b32.xlu0 %v2326, %s2383
      %v2385 = vpop.permute.xlu0 %2384
      %s2387 = sor.u32 256, 120
      %2388 = vbcast.lane.b32.xlu0 %v2326, %s2387
      %v2389 = vpop.permute.xlu0 %2388
      %v2390 = vlaneseq
      %v2391 = vshrl.u32 %v2390, 7
      %v2392 = vsub.s32 4, %v2391
      %v2393 = vrot.slane %v2121, %v2392
      %2395 = vbcast.lane.b32.xlu0 %v2393, 256
      %v2396 = vpop.permute.xlu0 %2395
      %s2398 = sor.u32 256, 8
      %2399 = vbcast.lane.b32.xlu0 %v2393, %s2398
      %v2400 = vpop.permute.xlu0 %2399
      %s2402 = sor.u32 256, 16
      %2403 = vbcast.lane.b32.xlu0 %v2393, %s2402
      %v2404 = vpop.permute.xlu0 %2403
      %s2406 = sor.u32 256, 24
      %2407 = vbcast.lane.b32.xlu0 %v2393, %s2406
      %v2408 = vpop.permute.xlu0 %2407
      %s2410 = sor.u32 256, 32
      %2411 = vbcast.lane.b32.xlu0 %v2393, %s2410
      %v2412 = vpop.permute.xlu0 %2411
      %s2414 = sor.u32 256, 40
      %2415 = vbcast.lane.b32.xlu0 %v2393, %s2414
      %v2416 = vpop.permute.xlu0 %2415
      %s2418 = sor.u32 256, 48
      %2419 = vbcast.lane.b32.xlu0 %v2393, %s2418
      %v2420 = vpop.permute.xlu0 %2419
      %s2422 = sor.u32 256, 56
      %2423 = vbcast.lane.b32.xlu0 %v2393, %s2422
      %v2424 = vpop.permute.xlu0 %2423
      %s2426 = sor.u32 256, 64
      %2427 = vbcast.lane.b32.xlu0 %v2393, %s2426
      %v2428 = vpop.permute.xlu0 %2427
      %s2430 = sor.u32 256, 72
      %2431 = vbcast.lane.b32.xlu0 %v2393, %s2430
      %v2432 = vpop.permute.xlu0 %2431
      %s2434 = sor.u32 256, 80
      %2435 = vbcast.lane.b32.xlu0 %v2393, %s2434
      %v2436 = vpop.permute.xlu0 %2435
      %s2438 = sor.u32 256, 88
      %2439 = vbcast.lane.b32.xlu0 %v2393, %s2438
      %v2440 = vpop.permute.xlu0 %2439
      %s2442 = sor.u32 256, 96
      %2443 = vbcast.lane.b32.xlu0 %v2393, %s2442
      %v2444 = vpop.permute.xlu0 %2443
      %s2446 = sor.u32 256, 104
      %2447 = vbcast.lane.b32.xlu0 %v2393, %s2446
      %v2448 = vpop.permute.xlu0 %2447
      %s2450 = sor.u32 256, 112
      %2451 = vbcast.lane.b32.xlu0 %v2393, %s2450
      %v2452 = vpop.permute.xlu0 %2451
      %s2454 = sor.u32 256, 120
      %2455 = vbcast.lane.b32.xlu0 %v2393, %s2454
      %v2456 = vpop.permute.xlu0 %2455
      %v2457 = vlaneseq
      %v2458 = vshrl.u32 %v2457, 7
      %v2459 = vsub.s32 5, %v2458
      %v2460 = vrot.slane %v2121, %v2459
      %2462 = vbcast.lane.b32.xlu0 %v2460, 256
      %v2463 = vpop.permute.xlu0 %2462
      %s2465 = sor.u32 256, 8
      %2466 = vbcast.lane.b32.xlu0 %v2460, %s2465
      %v2467 = vpop.permute.xlu0 %2466
      %s2469 = sor.u32 256, 16
      %2470 = vbcast.lane.b32.xlu0 %v2460, %s2469
      %v2471 = vpop.permute.xlu0 %2470
      %s2473 = sor.u32 256, 24
      %2474 = vbcast.lane.b32.xlu0 %v2460, %s2473
      %v2475 = vpop.permute.xlu0 %2474
      %s2477 = sor.u32 256, 32
      %2478 = vbcast.lane.b32.xlu0 %v2460, %s2477
      %v2479 = vpop.permute.xlu0 %2478
      %s2481 = sor.u32 256, 40
      %2482 = vbcast.lane.b32.xlu0 %v2460, %s2481
      %v2483 = vpop.permute.xlu0 %2482
      %s2485 = sor.u32 256, 48
      %2486 = vbcast.lane.b32.xlu0 %v2460, %s2485
      %v2487 = vpop.permute.xlu0 %2486
      %s2489 = sor.u32 256, 56
      %2490 = vbcast.lane.b32.xlu0 %v2460, %s2489
      %v2491 = vpop.permute.xlu0 %2490
      %s2493 = sor.u32 256, 64
      %2494 = vbcast.lane.b32.xlu0 %v2460, %s2493
      %v2495 = vpop.permute.xlu0 %2494
      %s2497 = sor.u32 256, 72
      %2498 = vbcast.lane.b32.xlu0 %v2460, %s2497
      %v2499 = vpop.permute.xlu0 %2498
      %s2501 = sor.u32 256, 80
      %2502 = vbcast.lane.b32.xlu0 %v2460, %s2501
      %v2503 = vpop.permute.xlu0 %2502
      %s2505 = sor.u32 256, 88
      %2506 = vbcast.lane.b32.xlu0 %v2460, %s2505
      %v2507 = vpop.permute.xlu0 %2506
      %s2509 = sor.u32 256, 96
      %2510 = vbcast.lane.b32.xlu0 %v2460, %s2509
      %v2511 = vpop.permute.xlu0 %2510
      %s2513 = sor.u32 256, 104
      %2514 = vbcast.lane.b32.xlu0 %v2460, %s2513
      %v2515 = vpop.permute.xlu0 %2514
      %s2517 = sor.u32 256, 112
      %2518 = vbcast.lane.b32.xlu0 %v2460, %s2517
      %v2519 = vpop.permute.xlu0 %2518
      %s2521 = sor.u32 256, 120
      %2522 = vbcast.lane.b32.xlu0 %v2460, %s2521
      %v2523 = vpop.permute.xlu0 %2522
      %v2524 = vlaneseq
      %v2525 = vshrl.u32 %v2524, 7
      %v2526 = vsub.s32 6, %v2525
      %v2527 = vrot.slane %v2121, %v2526
      %2529 = vbcast.lane.b32.xlu0 %v2527, 256
      %v2530 = vpop.permute.xlu0 %2529
      %s2532 = sor.u32 256, 8
      %2533 = vbcast.lane.b32.xlu0 %v2527, %s2532
      %v2534 = vpop.permute.xlu0 %2533
      %s2536 = sor.u32 256, 16
      %2537 = vbcast.lane.b32.xlu0 %v2527, %s2536
      %v2538 = vpop.permute.xlu0 %2537
      %s2540 = sor.u32 256, 24
      %2541 = vbcast.lane.b32.xlu0 %v2527, %s2540
      %v2542 = vpop.permute.xlu0 %2541
      %s2544 = sor.u32 256, 32
      %2545 = vbcast.lane.b32.xlu0 %v2527, %s2544
      %v2546 = vpop.permute.xlu0 %2545
      %s2548 = sor.u32 256, 40
      %2549 = vbcast.lane.b32.xlu0 %v2527, %s2548
      %v2550 = vpop.permute.xlu0 %2549
      %s2552 = sor.u32 256, 48
      %2553 = vbcast.lane.b32.xlu0 %v2527, %s2552
      %v2554 = vpop.permute.xlu0 %2553
      %s2556 = sor.u32 256, 56
      %2557 = vbcast.lane.b32.xlu0 %v2527, %s2556
      %v2558 = vpop.permute.xlu0 %2557
      %s2560 = sor.u32 256, 64
      %2561 = vbcast.lane.b32.xlu0 %v2527, %s2560
      %v2562 = vpop.permute.xlu0 %2561
      %s2564 = sor.u32 256, 72
      %2565 = vbcast.lane.b32.xlu0 %v2527, %s2564
      %v2566 = vpop.permute.xlu0 %2565
      %s2568 = sor.u32 256, 80
      %2569 = vbcast.lane.b32.xlu0 %v2527, %s2568
      %v2570 = vpop.permute.xlu0 %2569
      %s2572 = sor.u32 256, 88
      %2573 = vbcast.lane.b32.xlu0 %v2527, %s2572
      %v2574 = vpop.permute.xlu0 %2573
      %s2576 = sor.u32 256, 96
      %2577 = vbcast.lane.b32.xlu0 %v2527, %s2576
      %v2578 = vpop.permute.xlu0 %2577
      %s2580 = sor.u32 256, 104
      %2581 = vbcast.lane.b32.xlu0 %v2527, %s2580
      %v2582 = vpop.permute.xlu0 %2581
      %s2584 = sor.u32 256, 112
      %2585 = vbcast.lane.b32.xlu0 %v2527, %s2584
      %v2586 = vpop.permute.xlu0 %2585
      %s2588 = sor.u32 256, 120
      %2589 = vbcast.lane.b32.xlu0 %v2527, %s2588
      %v2590 = vpop.permute.xlu0 %2589
      %v2591 = vlaneseq
      %v2592 = vshrl.u32 %v2591, 7
      %v2593 = vsub.s32 7, %v2592
      %v2594 = vrot.slane %v2121, %v2593
      %2596 = vbcast.lane.b32.xlu0 %v2594, 256
      %v2597 = vpop.permute.xlu0 %2596
      %s2599 = sor.u32 256, 8
      %2600 = vbcast.lane.b32.xlu0 %v2594, %s2599
      %v2601 = vpop.permute.xlu0 %2600
      %s2603 = sor.u32 256, 16
      %2604 = vbcast.lane.b32.xlu0 %v2594, %s2603
      %v2605 = vpop.permute.xlu0 %2604
      %s2607 = sor.u32 256, 24
      %2608 = vbcast.lane.b32.xlu0 %v2594, %s2607
      %v2609 = vpop.permute.xlu0 %2608
      %s2611 = sor.u32 256, 32
      %2612 = vbcast.lane.b32.xlu0 %v2594, %s2611
      %v2613 = vpop.permute.xlu0 %2612
      %s2615 = sor.u32 256, 40
      %2616 = vbcast.lane.b32.xlu0 %v2594, %s2615
      %v2617 = vpop.permute.xlu0 %2616
      %s2619 = sor.u32 256, 48
      %2620 = vbcast.lane.b32.xlu0 %v2594, %s2619
      %v2621 = vpop.permute.xlu0 %2620
      %s2623 = sor.u32 256, 56
      %2624 = vbcast.lane.b32.xlu0 %v2594, %s2623
      %v2625 = vpop.permute.xlu0 %2624
      %s2627 = sor.u32 256, 64
      %2628 = vbcast.lane.b32.xlu0 %v2594, %s2627
      %v2629 = vpop.permute.xlu0 %2628
      %s2631 = sor.u32 256, 72
      %2632 = vbcast.lane.b32.xlu0 %v2594, %s2631
      %v2633 = vpop.permute.xlu0 %2632
      %s2635 = sor.u32 256, 80
      %2636 = vbcast.lane.b32.xlu0 %v2594, %s2635
      %v2637 = vpop.permute.xlu0 %2636
      %s2639 = sor.u32 256, 88
      %2640 = vbcast.lane.b32.xlu0 %v2594, %s2639
      %v2641 = vpop.permute.xlu0 %2640
      %s2643 = sor.u32 256, 96
      %2644 = vbcast.lane.b32.xlu0 %v2594, %s2643
      %v2645 = vpop.permute.xlu0 %2644
      %s2647 = sor.u32 256, 104
      %2648 = vbcast.lane.b32.xlu0 %v2594, %s2647
      %v2649 = vpop.permute.xlu0 %2648
      %s2651 = sor.u32 256, 112
      %2652 = vbcast.lane.b32.xlu0 %v2594, %s2651
      %v2653 = vpop.permute.xlu0 %2652
      %s2655 = sor.u32 256, 120
      %2656 = vbcast.lane.b32.xlu0 %v2594, %s2655
      %v2657 = vpop.permute.xlu0 %2656
      %v2658 = vmul.f32 %v2128, %v577
      %v2659 = vmul.f32 %v2132, %v578
      %v2660 = vmul.f32 %v2136, %v579
      %v2661 = vmul.f32 %v2140, %v580
      %v2662 = vmul.f32 %v2144, %v581
      %v2663 = vmul.f32 %v2148, %v582
      %v2664 = vmul.f32 %v2152, %v583
      %v2665 = vmul.f32 %v2156, %v584
      %v2666 = vmul.f32 %v2160, %v585
      %v2667 = vmul.f32 %v2164, %v586
      %v2668 = vmul.f32 %v2168, %v587
      %v2669 = vmul.f32 %v2172, %v588
      %v2670 = vmul.f32 %v2176, %v589
      %v2671 = vmul.f32 %v2180, %v590
      %v2672 = vmul.f32 %v2184, %v591
      %v2673 = vmul.f32 %v2188, %v592
      %v2674 = vmul.f32 %v2195, %v593
      %v2675 = vmul.f32 %v2199, %v594
      %v2676 = vmul.f32 %v2203, %v595
      %v2677 = vmul.f32 %v2207, %v596
      %v2678 = vmul.f32 %v2211, %v597
      %v2679 = vmul.f32 %v2215, %v598
      %v2680 = vmul.f32 %v2219, %v599
      %v2681 = vmul.f32 %v2223, %v600
      %v2682 = vmul.f32 %v2227, %v601
      %v2683 = vmul.f32 %v2231, %v602
      %v2684 = vmul.f32 %v2235, %v603
      %v2685 = vmul.f32 %v2239, %v604
      %v2686 = vmul.f32 %v2243, %v605
      %v2687 = vmul.f32 %v2247, %v606
      %v2688 = vmul.f32 %v2251, %v607
      %v2689 = vmul.f32 %v2255, %v608
      %v2690 = vmul.f32 %v2262, %v609
      %v2691 = vmul.f32 %v2266, %v610
      %v2692 = vmul.f32 %v2270, %v611
      %v2693 = vmul.f32 %v2274, %v612
      %v2694 = vmul.f32 %v2278, %v613
      %v2695 = vmul.f32 %v2282, %v614
      %v2696 = vmul.f32 %v2286, %v615
      %v2697 = vmul.f32 %v2290, %v616
      %v2698 = vmul.f32 %v2294, %v617
      %v2699 = vmul.f32 %v2298, %v618
      %v2700 = vmul.f32 %v2302, %v619
      %v2701 = vmul.f32 %v2306, %v620
      %v2702 = vmul.f32 %v2310, %v621
      %v2703 = vmul.f32 %v2314, %v622
      %v2704 = vmul.f32 %v2318, %v623
      %v2705 = vmul.f32 %v2322, %v624
      %v2706 = vmul.f32 %v2329, %v625
      %v2707 = vmul.f32 %v2333, %v626
      %v2708 = vmul.f32 %v2337, %v627
      %v2709 = vmul.f32 %v2341, %v628
      %v2710 = vmul.f32 %v2345, %v629
      %v2711 = vmul.f32 %v2349, %v630
      %v2712 = vmul.f32 %v2353, %v631
      %v2713 = vmul.f32 %v2357, %v632
      %v2714 = vmul.f32 %v2361, %v633
      %v2715 = vmul.f32 %v2365, %v634
      %v2716 = vmul.f32 %v2369, %v635
      %v2717 = vmul.f32 %v2373, %v636
      %v2718 = vmul.f32 %v2377, %v637
      %v2719 = vmul.f32 %v2381, %v638
      %v2720 = vmul.f32 %v2385, %v639
      %v2721 = vmul.f32 %v2389, %v640
      %v2722 = vmul.f32 %v2396, %v641
      %v2723 = vmul.f32 %v2400, %v642
      %v2724 = vmul.f32 %v2404, %v643
      %v2725 = vmul.f32 %v2408, %v644
      %v2726 = vmul.f32 %v2412, %v645
      %v2727 = vmul.f32 %v2416, %v646
      %v2728 = vmul.f32 %v2420, %v647
      %v2729 = vmul.f32 %v2424, %v648
      %v2730 = vmul.f32 %v2428, %v649
      %v2731 = vmul.f32 %v2432, %v650
      %v2732 = vmul.f32 %v2436, %v651
      %v2733 = vmul.f32 %v2440, %v652
      %v2734 = vmul.f32 %v2444, %v653
      %v2735 = vmul.f32 %v2448, %v654
      %v2736 = vmul.f32 %v2452, %v655
      %v2737 = vmul.f32 %v2456, %v656
      %v2738 = vmul.f32 %v2463, %v657
      %v2739 = vmul.f32 %v2467, %v658
      %v2740 = vmul.f32 %v2471, %v659
      %v2741 = vmul.f32 %v2475, %v660
      %v2742 = vmul.f32 %v2479, %v661
      %v2743 = vmul.f32 %v2483, %v662
      %v2744 = vmul.f32 %v2487, %v663
      %v2745 = vmul.f32 %v2491, %v664
      %v2746 = vmul.f32 %v2495, %v665
      %v2747 = vmul.f32 %v2499, %v666
      %v2748 = vmul.f32 %v2503, %v667
      %v2749 = vmul.f32 %v2507, %v668
      %v2750 = vmul.f32 %v2511, %v669
      %v2751 = vmul.f32 %v2515, %v670
      %v2752 = vmul.f32 %v2519, %v671
      %v2753 = vmul.f32 %v2523, %v672
      %v2754 = vmul.f32 %v2530, %v673
      %v2755 = vmul.f32 %v2534, %v674
      %v2756 = vmul.f32 %v2538, %v675
      %v2757 = vmul.f32 %v2542, %v676
      %v2758 = vmul.f32 %v2546, %v677
      %v2759 = vmul.f32 %v2550, %v678
      %v2760 = vmul.f32 %v2554, %v679
      %v2761 = vmul.f32 %v2558, %v680
      %v2762 = vmul.f32 %v2562, %v681
      %v2763 = vmul.f32 %v2566, %v682
      %v2764 = vmul.f32 %v2570, %v683
      %v2765 = vmul.f32 %v2574, %v684
      %v2766 = vmul.f32 %v2578, %v685
      %v2767 = vmul.f32 %v2582, %v686
      %v2768 = vmul.f32 %v2586, %v687
      %v2769 = vmul.f32 %v2590, %v688
      %v2770 = vmul.f32 %v2597, %v689
      %v2771 = vmul.f32 %v2601, %v690
      %v2772 = vmul.f32 %v2605, %v691
      %v2773 = vmul.f32 %v2609, %v692
      %v2774 = vmul.f32 %v2613, %v693
      %v2775 = vmul.f32 %v2617, %v694
      %v2776 = vmul.f32 %v2621, %v695
      %v2777 = vmul.f32 %v2625, %v696
      %v2778 = vmul.f32 %v2629, %v697
      %v2779 = vmul.f32 %v2633, %v698
      %v2780 = vmul.f32 %v2637, %v699
      %v2781 = vmul.f32 %v2641, %v700
      %v2782 = vmul.f32 %v2645, %v701
      %v2783 = vmul.f32 %v2649, %v702
      %v2784 = vmul.f32 %v2653, %v703
      %v2785 = vmul.f32 %v2657, %v704
      %v2786 = vsel %vm93, %v2658, 0.0
      %v2787 = vsel %vm93, %v2659, 0.0
      %v2788 = vadd.f32 %v2786, %v2787
      %v2789 = vsel %vm93, %v2660, 0.0
      %v2790 = vadd.f32 %v2788, %v2789
      %v2791 = vsel %vm93, %v2661, 0.0
      %v2792 = vadd.f32 %v2790, %v2791
      %v2793 = vsel %vm93, %v2662, 0.0
      %v2794 = vadd.f32 %v2792, %v2793
      %v2795 = vsel %vm93, %v2663, 0.0
      %v2796 = vadd.f32 %v2794, %v2795
      %v2797 = vsel %vm93, %v2664, 0.0
      %v2798 = vadd.f32 %v2796, %v2797
      %v2799 = vsel %vm93, %v2665, 0.0
      %v2800 = vadd.f32 %v2798, %v2799
      %v2801 = vsel %vm93, %v2666, 0.0
      %v2802 = vadd.f32 %v2800, %v2801
      %v2803 = vsel %vm93, %v2667, 0.0
      %v2804 = vadd.f32 %v2802, %v2803
      %v2805 = vsel %vm93, %v2668, 0.0
      %v2806 = vadd.f32 %v2804, %v2805
      %v2807 = vsel %vm93, %v2669, 0.0
      %v2808 = vadd.f32 %v2806, %v2807
      %v2809 = vsel %vm93, %v2670, 0.0
      %v2810 = vadd.f32 %v2808, %v2809
      %v2811 = vsel %vm93, %v2671, 0.0
      %v2812 = vadd.f32 %v2810, %v2811
      %v2813 = vsel %vm93, %v2672, 0.0
      %v2814 = vadd.f32 %v2812, %v2813
      %v2815 = vsel %vm93, %v2673, 0.0
      %v2816 = vadd.f32 %v2814, %v2815
      %v2817 = vrot.slane %v2816, 4
      %v2818 = vadd.f32 %v2816, %v2817
      %v2819 = vrot.slane %v2818, 2
      %v2820 = vadd.f32 %v2818, %v2819
      %v2821 = vrot.slane %v2820, 1
      %v2822 = vadd.f32 %v2820, %v2821
      %v2823 = vsel %vm93, %v2674, 0.0
      %v2824 = vsel %vm93, %v2675, 0.0
      %v2825 = vadd.f32 %v2823, %v2824
      %v2826 = vsel %vm93, %v2676, 0.0
      %v2827 = vadd.f32 %v2825, %v2826
      %v2828 = vsel %vm93, %v2677, 0.0
      %v2829 = vadd.f32 %v2827, %v2828
      %v2830 = vsel %vm93, %v2678, 0.0
      %v2831 = vadd.f32 %v2829, %v2830
      %v2832 = vsel %vm93, %v2679, 0.0
      %v2833 = vadd.f32 %v2831, %v2832
      %v2834 = vsel %vm93, %v2680, 0.0
      %v2835 = vadd.f32 %v2833, %v2834
      %v2836 = vsel %vm93, %v2681, 0.0
      %v2837 = vadd.f32 %v2835, %v2836
      %v2838 = vsel %vm93, %v2682, 0.0
      %v2839 = vadd.f32 %v2837, %v2838
      %v2840 = vsel %vm93, %v2683, 0.0
      %v2841 = vadd.f32 %v2839, %v2840
      %v2842 = vsel %vm93, %v2684, 0.0
      %v2843 = vadd.f32 %v2841, %v2842
      %v2844 = vsel %vm93, %v2685, 0.0
      %v2845 = vadd.f32 %v2843, %v2844
      %v2846 = vsel %vm93, %v2686, 0.0
      %v2847 = vadd.f32 %v2845, %v2846
      %v2848 = vsel %vm93, %v2687, 0.0
      %v2849 = vadd.f32 %v2847, %v2848
      %v2850 = vsel %vm93, %v2688, 0.0
      %v2851 = vadd.f32 %v2849, %v2850
      %v2852 = vsel %vm93, %v2689, 0.0
      %v2853 = vadd.f32 %v2851, %v2852
      %v2854 = vrot.slane %v2853, 4
      %v2855 = vadd.f32 %v2853, %v2854
      %v2856 = vrot.slane %v2855, 2
      %v2857 = vadd.f32 %v2855, %v2856
      %v2858 = vrot.slane %v2857, 1
      %v2859 = vadd.f32 %v2857, %v2858
      %v2860 = vsel %vm93, %v2690, 0.0
      %v2861 = vsel %vm93, %v2691, 0.0
      %v2862 = vadd.f32 %v2860, %v2861
      %v2863 = vsel %vm93, %v2692, 0.0
      %v2864 = vadd.f32 %v2862, %v2863
      %v2865 = vsel %vm93, %v2693, 0.0
      %v2866 = vadd.f32 %v2864, %v2865
      %v2867 = vsel %vm93, %v2694, 0.0
      %v2868 = vadd.f32 %v2866, %v2867
      %v2869 = vsel %vm93, %v2695, 0.0
      %v2870 = vadd.f32 %v2868, %v2869
      %v2871 = vsel %vm93, %v2696, 0.0
      %v2872 = vadd.f32 %v2870, %v2871
      %v2873 = vsel %vm93, %v2697, 0.0
      %v2874 = vadd.f32 %v2872, %v2873
      %v2875 = vsel %vm93, %v2698, 0.0
      %v2876 = vadd.f32 %v2874, %v2875
      %v2877 = vsel %vm93, %v2699, 0.0
      %v2878 = vadd.f32 %v2876, %v2877
      %v2879 = vsel %vm93, %v2700, 0.0
      %v2880 = vadd.f32 %v2878, %v2879
      %v2881 = vsel %vm93, %v2701, 0.0
      %v2882 = vadd.f32 %v2880, %v2881
      %v2883 = vsel %vm93, %v2702, 0.0
      %v2884 = vadd.f32 %v2882, %v2883
      %v2885 = vsel %vm93, %v2703, 0.0
      %v2886 = vadd.f32 %v2884, %v2885
      %v2887 = vsel %vm93, %v2704, 0.0
      %v2888 = vadd.f32 %v2886, %v2887
      %v2889 = vsel %vm93, %v2705, 0.0
      %v2890 = vadd.f32 %v2888, %v2889
      %v2891 = vrot.slane %v2890, 4
      %v2892 = vadd.f32 %v2890, %v2891
      %v2893 = vrot.slane %v2892, 2
      %v2894 = vadd.f32 %v2892, %v2893
      %v2895 = vrot.slane %v2894, 1
      %v2896 = vadd.f32 %v2894, %v2895
      %v2897 = vsel %vm93, %v2706, 0.0
      %v2898 = vsel %vm93, %v2707, 0.0
      %v2899 = vadd.f32 %v2897, %v2898
      %v2900 = vsel %vm93, %v2708, 0.0
      %v2901 = vadd.f32 %v2899, %v2900
      %v2902 = vsel %vm93, %v2709, 0.0
      %v2903 = vadd.f32 %v2901, %v2902
      %v2904 = vsel %vm93, %v2710, 0.0
      %v2905 = vadd.f32 %v2903, %v2904
      %v2906 = vsel %vm93, %v2711, 0.0
      %v2907 = vadd.f32 %v2905, %v2906
      %v2908 = vsel %vm93, %v2712, 0.0
      %v2909 = vadd.f32 %v2907, %v2908
      %v2910 = vsel %vm93, %v2713, 0.0
      %v2911 = vadd.f32 %v2909, %v2910
      %v2912 = vsel %vm93, %v2714, 0.0
      %v2913 = vadd.f32 %v2911, %v2912
      %v2914 = vsel %vm93, %v2715, 0.0
      %v2915 = vadd.f32 %v2913, %v2914
      %v2916 = vsel %vm93, %v2716, 0.0
      %v2917 = vadd.f32 %v2915, %v2916
      %v2918 = vsel %vm93, %v2717, 0.0
      %v2919 = vadd.f32 %v2917, %v2918
      %v2920 = vsel %vm93, %v2718, 0.0
      %v2921 = vadd.f32 %v2919, %v2920
      %v2922 = vsel %vm93, %v2719, 0.0
      %v2923 = vadd.f32 %v2921, %v2922
      %v2924 = vsel %vm93, %v2720, 0.0
      %v2925 = vadd.f32 %v2923, %v2924
      %v2926 = vsel %vm93, %v2721, 0.0
      %v2927 = vadd.f32 %v2925, %v2926
      %v2928 = vrot.slane %v2927, 4
      %v2929 = vadd.f32 %v2927, %v2928
      %v2930 = vrot.slane %v2929, 2
      %v2931 = vadd.f32 %v2929, %v2930
      %v2932 = vrot.slane %v2931, 1
      %v2933 = vadd.f32 %v2931, %v2932
      %v2934 = vsel %vm93, %v2722, 0.0
      %v2935 = vsel %vm93, %v2723, 0.0
      %v2936 = vadd.f32 %v2934, %v2935
      %v2937 = vsel %vm93, %v2724, 0.0
      %v2938 = vadd.f32 %v2936, %v2937
      %v2939 = vsel %vm93, %v2725, 0.0
      %v2940 = vadd.f32 %v2938, %v2939
      %v2941 = vsel %vm93, %v2726, 0.0
      %v2942 = vadd.f32 %v2940, %v2941
      %v2943 = vsel %vm93, %v2727, 0.0
      %v2944 = vadd.f32 %v2942, %v2943
      %v2945 = vsel %vm93, %v2728, 0.0
      %v2946 = vadd.f32 %v2944, %v2945
      %v2947 = vsel %vm93, %v2729, 0.0
      %v2948 = vadd.f32 %v2946, %v2947
      %v2949 = vsel %vm93, %v2730, 0.0
      %v2950 = vadd.f32 %v2948, %v2949
      %v2951 = vsel %vm93, %v2731, 0.0
      %v2952 = vadd.f32 %v2950, %v2951
      %v2953 = vsel %vm93, %v2732, 0.0
      %v2954 = vadd.f32 %v2952, %v2953
      %v2955 = vsel %vm93, %v2733, 0.0
      %v2956 = vadd.f32 %v2954, %v2955
      %v2957 = vsel %vm93, %v2734, 0.0
      %v2958 = vadd.f32 %v2956, %v2957
      %v2959 = vsel %vm93, %v2735, 0.0
      %v2960 = vadd.f32 %v2958, %v2959
      %v2961 = vsel %vm93, %v2736, 0.0
      %v2962 = vadd.f32 %v2960, %v2961
      %v2963 = vsel %vm93, %v2737, 0.0
      %v2964 = vadd.f32 %v2962, %v2963
      %v2965 = vrot.slane %v2964, 4
      %v2966 = vadd.f32 %v2964, %v2965
      %v2967 = vrot.slane %v2966, 2
      %v2968 = vadd.f32 %v2966, %v2967
      %v2969 = vrot.slane %v2968, 1
      %v2970 = vadd.f32 %v2968, %v2969
      %v2971 = vsel %vm93, %v2738, 0.0
      %v2972 = vsel %vm93, %v2739, 0.0
      %v2973 = vadd.f32 %v2971, %v2972
      %v2974 = vsel %vm93, %v2740, 0.0
      %v2975 = vadd.f32 %v2973, %v2974
      %v2976 = vsel %vm93, %v2741, 0.0
      %v2977 = vadd.f32 %v2975, %v2976
      %v2978 = vsel %vm93, %v2742, 0.0
      %v2979 = vadd.f32 %v2977, %v2978
      %v2980 = vsel %vm93, %v2743, 0.0
      %v2981 = vadd.f32 %v2979, %v2980
      %v2982 = vsel %vm93, %v2744, 0.0
      %v2983 = vadd.f32 %v2981, %v2982
      %v2984 = vsel %vm93, %v2745, 0.0
      %v2985 = vadd.f32 %v2983, %v2984
      %v2986 = vsel %vm93, %v2746, 0.0
      %v2987 = vadd.f32 %v2985, %v2986
      %v2988 = vsel %vm93, %v2747, 0.0
      %v2989 = vadd.f32 %v2987, %v2988
      %v2990 = vsel %vm93, %v2748, 0.0
      %v2991 = vadd.f32 %v2989, %v2990
      %v2992 = vsel %vm93, %v2749, 0.0
      %v2993 = vadd.f32 %v2991, %v2992
      %v2994 = vsel %vm93, %v2750, 0.0
      %v2995 = vadd.f32 %v2993, %v2994
      %v2996 = vsel %vm93, %v2751, 0.0
      %v2997 = vadd.f32 %v2995, %v2996
      %v2998 = vsel %vm93, %v2752, 0.0
      %v2999 = vadd.f32 %v2997, %v2998
      %v3000 = vsel %vm93, %v2753, 0.0
      %v3001 = vadd.f32 %v2999, %v3000
      %v3002 = vrot.slane %v3001, 4
      %v3003 = vadd.f32 %v3001, %v3002
      %v3004 = vrot.slane %v3003, 2
      %v3005 = vadd.f32 %v3003, %v3004
      %v3006 = vrot.slane %v3005, 1
      %v3007 = vadd.f32 %v3005, %v3006
      %v3008 = vsel %vm93, %v2754, 0.0
      %v3009 = vsel %vm93, %v2755, 0.0
      %v3010 = vadd.f32 %v3008, %v3009
      %v3011 = vsel %vm93, %v2756, 0.0
      %v3012 = vadd.f32 %v3010, %v3011
      %v3013 = vsel %vm93, %v2757, 0.0
      %v3014 = vadd.f32 %v3012, %v3013
      %v3015 = vsel %vm93, %v2758, 0.0
      %v3016 = vadd.f32 %v3014, %v3015
      %v3017 = vsel %vm93, %v2759, 0.0
      %v3018 = vadd.f32 %v3016, %v3017
      %v3019 = vsel %vm93, %v2760, 0.0
      %v3020 = vadd.f32 %v3018, %v3019
      %v3021 = vsel %vm93, %v2761, 0.0
      %v3022 = vadd.f32 %v3020, %v3021
      %v3023 = vsel %vm93, %v2762, 0.0
      %v3024 = vadd.f32 %v3022, %v3023
      %v3025 = vsel %vm93, %v2763, 0.0
      %v3026 = vadd.f32 %v3024, %v3025
      %v3027 = vsel %vm93, %v2764, 0.0
      %v3028 = vadd.f32 %v3026, %v3027
      %v3029 = vsel %vm93, %v2765, 0.0
      %v3030 = vadd.f32 %v3028, %v3029
      %v3031 = vsel %vm93, %v2766, 0.0
      %v3032 = vadd.f32 %v3030, %v3031
      %v3033 = vsel %vm93, %v2767, 0.0
      %v3034 = vadd.f32 %v3032, %v3033
      %v3035 = vsel %vm93, %v2768, 0.0
      %v3036 = vadd.f32 %v3034, %v3035
      %v3037 = vsel %vm93, %v2769, 0.0
      %v3038 = vadd.f32 %v3036, %v3037
      %v3039 = vrot.slane %v3038, 4
      %v3040 = vadd.f32 %v3038, %v3039
      %v3041 = vrot.slane %v3040, 2
      %v3042 = vadd.f32 %v3040, %v3041
      %v3043 = vrot.slane %v3042, 1
      %v3044 = vadd.f32 %v3042, %v3043
      %v3045 = vsel %vm93, %v2770, 0.0
      %v3046 = vsel %vm93, %v2771, 0.0
      %v3047 = vadd.f32 %v3045, %v3046
      %v3048 = vsel %vm93, %v2772, 0.0
      %v3049 = vadd.f32 %v3047, %v3048
      %v3050 = vsel %vm93, %v2773, 0.0
      %v3051 = vadd.f32 %v3049, %v3050
      %v3052 = vsel %vm93, %v2774, 0.0
      %v3053 = vadd.f32 %v3051, %v3052
      %v3054 = vsel %vm93, %v2775, 0.0
      %v3055 = vadd.f32 %v3053, %v3054
      %v3056 = vsel %vm93, %v2776, 0.0
      %v3057 = vadd.f32 %v3055, %v3056
      %v3058 = vsel %vm93, %v2777, 0.0
      %v3059 = vadd.f32 %v3057, %v3058
      %v3060 = vsel %vm93, %v2778, 0.0
      %v3061 = vadd.f32 %v3059, %v3060
      %v3062 = vsel %vm93, %v2779, 0.0
      %v3063 = vadd.f32 %v3061, %v3062
      %v3064 = vsel %vm93, %v2780, 0.0
      %v3065 = vadd.f32 %v3063, %v3064
      %v3066 = vsel %vm93, %v2781, 0.0
      %v3067 = vadd.f32 %v3065, %v3066
      %v3068 = vsel %vm93, %v2782, 0.0
      %v3069 = vadd.f32 %v3067, %v3068
      %v3070 = vsel %vm93, %v2783, 0.0
      %v3071 = vadd.f32 %v3069, %v3070
      %v3072 = vsel %vm93, %v2784, 0.0
      %v3073 = vadd.f32 %v3071, %v3072
      %v3074 = vsel %vm93, %v2785, 0.0
      %v3075 = vadd.f32 %v3073, %v3074
      %v3076 = vrot.slane %v3075, 4
      %v3077 = vadd.f32 %v3075, %v3076
      %v3078 = vrot.slane %v3077, 2
      %v3079 = vadd.f32 %v3077, %v3078
      %v3080 = vrot.slane %v3079, 1
      %v3081 = vadd.f32 %v3079, %v3080
      %v3082 = vld [vmem:[%s11] sm:$0xf]
      %v3083 = vld [vmem:[%s11 + $0x4] sm:$0xf]
      %v3084 = vld [vmem:[%s11 + $0x8] sm:$0xf]
      %v3085 = vld [vmem:[%s11 + $0xc] sm:$0xf]
      %v3086 = vpack.c.bf16 %v2822, %v2822
      %v3087 = vpack.c.bf16 %v2859, %v2859
      %v3088 = vpack.c.bf16 %v2896, %v2896
      %v3089 = vpack.c.bf16 %v2933, %v2933
      %v3090 = vpack.c.bf16 %v2970, %v2970
      %v3091 = vpack.c.bf16 %v3007, %v3007
      %v3092 = vpack.c.bf16 %v3044, %v3044
      %v3093 = vpack.c.bf16 %v3081, %v3081
      %v3094 = vld [vmem:[%s12] sm:$0xf]
      %v3095 = vld [vmem:[%s12 + $0x4] sm:$0xf]
      %v3096 = vld [vmem:[%s12 + $0x8] sm:$0xf]
      %v3097 = vld [vmem:[%s12 + $0xc] sm:$0xf]
      %v3102 = vunpack.c.l.b16 %v3094
      %v3103 = vunpack.c.l.b16 %v3095
      %v3104 = vunpack.c.l.b16 %v3096
      %v3105 = vunpack.c.l.b16 %v3097
      %v3106 = vpack.c.b16 %v3103, %v3102
      %v3107 = vpack.c.b16 %v3105, %v3104
      %3110 = vmatprep.subr.bf16.mxu0 0
      %3111 = vmatpush1.bf16.msra.mxu0 %v3106
      %3112 = vmatprep.subr.bf16.mxu0 0
      %3113 = vmatpush1.bf16.msra.mxu0 %v3107
      %3114 = vmatprep.subr.bf16.mxu0 0
      %3115 = vmatpush1.bf16.msra.mxu0 0
      %3116 = vmatprep.subr.bf16.mxu0 0
      %3117 = vmatpush1.bf16.msra.mxu0 0
      %3118 = vmatprep.subr.bf16.mxu0 0
      %3119 = vmatpush1.bf16.msra.mxu0 0
      %3120 = vmatprep.subr.bf16.mxu0 0
      %3121 = vmatpush1.bf16.msra.mxu0 0
      %3122 = vmatprep.subr.bf16.mxu0 0
      %3123 = vmatpush1.bf16.msra.mxu0 0
      %3124 = vmatprep.subr.bf16.mxu0 0
      %3125 = vmatpush1.bf16.msra.mxu0 0
      %3126 = vmatprep.subr.bf16.mxu0 0
      %3127 = vmatpush1.bf16.msra.mxu0 0
      %3128 = vmatprep.subr.bf16.mxu0 0
      %3129 = vmatpush1.bf16.msra.mxu0 0
      %3130 = vmatprep.subr.bf16.mxu0 0
      %3131 = vmatpush1.bf16.msra.mxu0 0
      %3132 = vmatprep.subr.bf16.mxu0 0
      %3133 = vmatpush1.bf16.msra.mxu0 0
      %3134 = vmatprep.subr.bf16.mxu0 0
      %3135 = vmatpush1.bf16.msra.mxu0 0
      %3136 = vmatprep.subr.bf16.mxu0 0
      %3137 = vmatpush1.bf16.msra.mxu0 0
      %3138 = vmatprep.subr.bf16.mxu0 0
      %3139 = vmatpush1.bf16.msra.mxu0 0
      %3140 = vmatprep.subr.bf16.mxu0 0
      %3141 = vmatpush1.bf16.msra.mxu0 0
      %3142 = vmatprep.mubr.bf16.mxu0 0
      %3143 = vmatmul.mubr.bf16.gmra.mrb[0].mxu0 %v407
      %v3144 = vpop.f32.mrb[0].mxu0
      %v3145 = vadd.f32 0.0, %v3144
      %v3146 = vpop.f32.mrb[0].mxu0
      %v3147 = vpop.f32.mrb[0].mxu0
      %v3148 = vpop.f32.mrb[0].mxu0
      %3149 = vdwg.mxu0
      %v3158 = vunpack.c.l.b16 %v3086
      %v3159 = vunpack.c.l.b16 %v3087
      %v3160 = vunpack.c.l.b16 %v3088
      %v3161 = vunpack.c.l.b16 %v3089
      %v3162 = vunpack.c.l.b16 %v3090
      %v3163 = vunpack.c.l.b16 %v3091
      %v3164 = vunpack.c.l.b16 %v3092
      %v3165 = vunpack.c.l.b16 %v3093
      %v3166 = vsel %vm2097, %v3159, %v3158
      %v3167 = vsel %vm2099, %v3160, %v3166
      %v3168 = vsel %vm2101, %v3161, %v3167
      %v3169 = vsel %vm2103, %v3162, %v3168
      %v3170 = vsel %vm2105, %v3163, %v3169
      %v3171 = vsel %vm2107, %v3164, %v3170
      %v3172 = vsel %vm2109, %v3165, %v3171
      %v3173 = vpack.c.b16 %v3172, %v3172
      %v3178 = vunpack.c.l.b16 %v3082
      %v3179 = vunpack.c.l.b16 %v3083
      %v3180 = vunpack.c.l.b16 %v3084
      %v3181 = vunpack.c.l.b16 %v3085
      %v3182 = vpack.c.b16 %v3179, %v3178
      %v3183 = vpack.c.b16 %v3181, %v3180
      %v3187 = vsel %vm93, %v3173, 0
      %3189 = vmatprep.subr.bf16.mxu0 0
      %3190 = vmatpush1.bf16.msra.mxu0 %v3182
      %3191 = vmatprep.subr.bf16.mxu0 0
      %3192 = vmatpush1.bf16.msra.mxu0 %v3183
      %3193 = vmatprep.subr.bf16.mxu0 0
      %3194 = vmatpush1.bf16.msra.mxu0 0
      %3195 = vmatprep.subr.bf16.mxu0 0
      %3196 = vmatpush1.bf16.msra.mxu0 0
      %3197 = vmatprep.subr.bf16.mxu0 0
      %3198 = vmatpush1.bf16.msra.mxu0 0
      %3199 = vmatprep.subr.bf16.mxu0 0
      %3200 = vmatpush1.bf16.msra.mxu0 0
      %3201 = vmatprep.subr.bf16.mxu0 0
      %3202 = vmatpush1.bf16.msra.mxu0 0
      %3203 = vmatprep.subr.bf16.mxu0 0
      %3204 = vmatpush1.bf16.msra.mxu0 0
      %3205 = vmatprep.subr.bf16.mxu0 0
      %3206 = vmatpush1.bf16.msra.mxu0 0
      %3207 = vmatprep.subr.bf16.mxu0 0
      %3208 = vmatpush1.bf16.msra.mxu0 0
      %3209 = vmatprep.subr.bf16.mxu0 0
      %3210 = vmatpush1.bf16.msra.mxu0 0
      %3211 = vmatprep.subr.bf16.mxu0 0
      %3212 = vmatpush1.bf16.msra.mxu0 0
      %3213 = vmatprep.subr.bf16.mxu0 0
      %3214 = vmatpush1.bf16.msra.mxu0 0
      %3215 = vmatprep.subr.bf16.mxu0 0
      %3216 = vmatpush1.bf16.msra.mxu0 0
      %3217 = vmatprep.subr.bf16.mxu0 0
      %3218 = vmatpush1.bf16.msra.mxu0 0
      %3219 = vmatprep.subr.bf16.mxu0 0
      %3220 = vmatpush1.bf16.msra.mxu0 0
      %3221 = vmatprep.mubr.bf16.mxu0 0
      %3222 = vmatmul.mubr.bf16.gmra.mrb[0].mxu0 %v3187
      %v3223 = vpop.f32.mrb[0].mxu0
      %v3224 = vadd.f32 %v3145, %v3223
      %v3225 = vpop.f32.mrb[0].mxu0
      %v3226 = vpop.f32.mrb[0].mxu0
      %v3227 = vpop.f32.mrb[0].mxu0
      %3228 = vdwg.mxu0
      %v3229 = vtanh.pop %v3224
      %s3230 = scalar_lea.vmem [#allocation2], %s73
      %3231 = vst.msk [vmem:[%s3230] sm:$0xff] %vm93, %v3229
      %3232 = vst [vmem:[#allocation7] sm:$0xff] %v2121
      %3234 = vrot.lane.b32.xlu0 %v226, 32
      %v3235 = vpop.permute.xlu0 %3234
      %3238 = vrot.lane.b32.xlu0 %v385, 32
      %v3239 = vpop.permute.xlu0 %3238
      %3242 = vrot.lane.b32.xlu0 %v220, 96
      %v3243 = vpop.permute.xlu0 %3242
      %3246 = vrot.lane.b32.xlu0 %v379, 96
      %v3247 = vpop.permute.xlu0 %3246
    $region58: #{tpu_custom_call.1} parent=1 // loop_footer
      %s67 = sadd.s32 1, %s63
    $region59: #{tpu_custom_call.1} parent=1 // loop_footer_branch
      %62 = sbr.rel target = $region55
    $region60: #{tpu_custom_call.1} parent=1 // loop_exit
      _
    %vm3249 = vcmask 261120
    %3250 = vst.msk [vmem:[#allocation4] sm:$0xff] %vm3249, %v68
    %3251 = vst.msk [vmem:[#allocation6] sm:$0xff] %vm3249, %v70
    %s3252 = scalar_lea.vmem [#allocation4], 8
    %3253 = vst.msk [vmem:[%s3252] sm:$0xff] %vm3249, %v69
    %s3254 = scalar_lea.vmem [#allocation6], 8
    %3255 = vst.msk [vmem:[%s3254] sm:$0xff] %vm3249, %v71
    // Predicated region
    $region61: #{tpu_custom_call.1} parent=1 // pred_check
      _
    $region62: #{tpu_custom_call.1} parent=1 // pred_check_branch
      %3257 = sbr.rel (0) target = $region64
    $region63: #{tpu_custom_call.1} parent=1 // pred_region
      %s3259 = ssub.s32 640, 640
      %3260 = vsyncadd [#allocation3], %s3259
      %s3261 = sshll.u32 [#allocation2], 4
      %s3262 = int_to_ptr.vmem [resolvable:$true] %s3261
      %3267 = dma.vmem_to_hbm [thread:$0]  %s3262, 640, %s13, [#allocation3], 128, 128, 8
    $region64: #{tpu_custom_call.1} parent=1 // pred_fallthru
      _
    // Predicated region
    $region65: #{tpu_custom_call.1} parent=1 // pred_check
      _
    $region66: #{tpu_custom_call.1} parent=1 // pred_check_branch
      %3269 = sbr.rel (0) target = $region68
    $region67: #{tpu_custom_call.1} parent=1 // pred_region
      %s3271 = ssub.s32 256, 256
      %3272 = vsyncadd [#allocation5], %s3271
      %s3273 = sshll.u32 [#allocation4], 4
      %s3274 = int_to_ptr.vmem [resolvable:$true] %s3273
      %3279 = dma.vmem_to_hbm [thread:$0]  %s3274, 256, %s14, [#allocation5], 128, 128, 8
    $region68: #{tpu_custom_call.1} parent=1 // pred_fallthru
      _
    // Predicated region
    $region69: #{tpu_custom_call.1} parent=1 // pred_check
      _
    $region70: #{tpu_custom_call.1} parent=1 // pred_check_branch
      %3281 = sbr.rel (0) target = $region72
    $region71: #{tpu_custom_call.1} parent=1 // pred_region
      %s3283 = ssub.s32 256, 256
      %3284 = vsyncadd [#allocation5], %s3283
      %s3285 = sshll.u32 [#allocation6], 4
      %s3286 = int_to_ptr.vmem [resolvable:$true] %s3285
      %3291 = dma.vmem_to_hbm [thread:$0]  %s3286, 256, %s15, [#allocation5], 128, 128, 8
    $region72: #{tpu_custom_call.1} parent=1 // pred_fallthru
      _
    // Predicated region
    $region73: #{tpu_custom_call.1} parent=1 // pred_check
      _
    $region74: #{tpu_custom_call.1} parent=1 // pred_check_branch
      %3293 = sbr.rel (0) target = $region76
    $region75: #{tpu_custom_call.1} parent=1 // pred_region
      %s3295 = ssub.s32 128, 128
      %3296 = vsyncadd [#allocation8], %s3295
      %s3298 = sshll.u32 [#allocation7], 4
      %s3299 = int_to_ptr.vmem [resolvable:$true] %s3298
      %3301 = dma.vmem_to_hbm [thread:$0]  %s3299, 128, %s16, [#allocation8]
    $region76: #{tpu_custom_call.1} parent=1 // pred_fallthru
      _
    // Predicated region
    $region77: #{tpu_custom_call.1} parent=1 // pred_check
      _
    $region78: #{tpu_custom_call.1} parent=1 // pred_check_branch
      %3303 = sbr.rel (0) target = $region80
    $region79: #{tpu_custom_call.1} parent=1 // pred_region
      %3304 = dma.done [#allocation3], 640
    $region80: #{tpu_custom_call.1} parent=1 // pred_fallthru
      _
    // Predicated region
    $region81: #{tpu_custom_call.1} parent=1 // pred_check
      _
    $region82: #{tpu_custom_call.1} parent=1 // pred_check_branch
      %3306 = sbr.rel (0) target = $region84
    $region83: #{tpu_custom_call.1} parent=1 // pred_region
      %3307 = dma.done [#allocation5], 256
    $region84: #{tpu_custom_call.1} parent=1 // pred_fallthru
      _
    // Predicated region
    $region85: #{tpu_custom_call.1} parent=1 // pred_check
      _
    $region86: #{tpu_custom_call.1} parent=1 // pred_check_branch
      %3309 = sbr.rel (0) target = $region88
    $region87: #{tpu_custom_call.1} parent=1 // pred_region
      %3310 = dma.done [#allocation5], 256
    $region88: #{tpu_custom_call.1} parent=1 // pred_fallthru
      _
    // Predicated region
    $region89: #{tpu_custom_call.1} parent=1 // pred_check
      _
    $region90: #{tpu_custom_call.1} parent=1 // pred_check_branch
      %3312 = sbr.rel (0) target = $region92
    $region91: #{tpu_custom_call.1} parent=1 // pred_region
      %3313 = dma.done [#allocation8], 128
    $region92: #{tpu_custom_call.1} parent=1 // pred_fallthru
      _
    %3314 = vsyncpa [#allocation3], 1
    %3315 = vsyncpa [#allocation5], 1
    %3316 = vsyncpa [#allocation8], 1

</llo_original>
